<compile_context>
chip_gen: v7x
topology: tpu7x:2x2x1
jax: 0.10.0
libtpu: 0.0.40
codegen_flags: <defaults>
</compile_context>

<pallas_src>
import math
from functools import partial

import jax
import jax.numpy as jnp
from jax import lax
from jax.experimental import pallas as pl
from jax.experimental.pallas import tpu as pltpu

_LANE = 128
_SUBLANE = 8
_NUM_BATCH_SHARDS = 2   # grid size; maps to the 2 TensorCores on v7x via "parallel"


def _round_up(x, m):
    return ((x + m - 1) // m) * m


def _sigmoid(x):
    # sigmoid(x) == 0.5 * tanh(0.5 * x) + 0.5 : one EUP op instead of exp + divide.
    return 0.5 * jnp.tanh(0.5 * x) + 0.5


# ------------------------------------------------------------------
# Fused kernel: all LSTM layers + (BN-folded) FC head for one batch shard.
# ------------------------------------------------------------------
def _fused_lstm_kernel(*refs, num_layers, T, Bc, Hp):
    """One grid cell = one batch shard.

    Kernel ref views:
      inputs : x (T*Bc, Dp),
               [w_ih_l (Din_l, 4*Hp), w_hh_l (Hp, 4*Hp), b_l (1, 4*Hp)] * num_layers,
               w_fc (Hp, Op), b_fc (1, Op)
      outputs: out (T*Bc, Op)
      scratch: xg_scr (T*Bc, 4*Hp), hseq_scr (T*Bc, Hp)
    Rows are time-major within the shard: row = t * Bc + b_local.
    """
    n_in = 1 + 3 * num_layers + 2
    x_ref = refs[0]
    wfc_ref = refs[1 + 3 * num_layers]
    bfc_ref = refs[2 + 3 * num_layers]
    out_ref = refs[n_in]
    xg_scr = refs[n_in + 1]
    hseq_scr = refs[n_in + 2]

    # Bounded unroll of the serial time loop (largest of 8/4/2/1 dividing T).
    unroll = next(u for u in (8, 4, 2, 1) if T % u == 0)

    for layer in range(num_layers):
        wih_ref, whh_ref, b_ref = refs[1 + 3 * layer: 4 + 3 * layer]
        src_ref = x_ref if layer == 0 else hseq_scr

        # ---- Parallel phase: input projection (+ combined bias) for every timestep at once.
        xg_scr[...] = (
            jnp.dot(src_ref[...], wih_ref[...], preferred_element_type=jnp.float32)
            + b_ref[...]
        )

        # ---- Serial phase: h/c recurrence over time; h/c carried as loop values (vregs).
        whh = whh_ref[...]                       # (Hp, 4*Hp), loaded once, loop-invariant
        # TODO(synk): hold whh in MXU weight regs via pltpu.matmul_push_rhs/_acc_lhs here.

        def step(t, carry):
            h_prev, c_prev = carry
            row = pl.multiple_of(t * Bc, Bc)     # sublane-aligned (Bc multiple of 8)
            gates = xg_scr[pl.ds(row, Bc), :] + jnp.dot(
                h_prev, whh, preferred_element_type=jnp.float32)   # (Bc, 4*Hp); i,f,g,o
            i_g = _sigmoid(gates[:, 0 * Hp:1 * Hp])   # full 128-lane-aligned slices
            f_g = _sigmoid(gates[:, 1 * Hp:2 * Hp])
            g_g = jnp.tanh(gates[:, 2 * Hp:3 * Hp])
            o_g = _sigmoid(gates[:, 3 * Hp:4 * Hp])
            c_new = f_g * c_prev + i_g * g_g
            h_new = o_g * jnp.tanh(c_new)
            hseq_scr[pl.ds(row, Bc), :] = h_new      # unmasked, lane-dense store
            return h_new, c_new

        h0 = jnp.zeros((Bc, Hp), jnp.float32)
        c0 = jnp.zeros((Bc, Hp), jnp.float32)
        lax.fori_loop(0, T, step, (h0, c0), unroll=unroll)
        # inter-layer dropout: eval mode -> identity

    # ---- Head: BatchNorm (pre-folded into wfc/bfc) + Linear, one lane-dense matmul.
    out_ref[...] = (
        jnp.dot(hseq_scr[...], wfc_ref[...], preferred_element_type=jnp.float32)
        + bfc_ref[...]
    )


# ------------------------------------------------------------------
# Host-side weight prep
# ------------------------------------------------------------------
def _pad_gate_cols(w, H, Hp):
    """(K, 4H) -> (K, 4*Hp): gate block g placed at columns [g*Hp, g*Hp+H), rest zero."""
    out = jnp.zeros((w.shape[0], 4 * Hp), jnp.float32)
    for g in range(4):
        out = out.at[:, g * Hp: g * Hp + H].set(w[:, g * H:(g + 1) * H])
    return out


def _fold_batchnorm_into_fc(w_fc, b_fc, gamma, beta, mean, var, eps=1e-5):
    """Fold eval-mode BatchNorm1d into the Linear layer; returns RHS-major (H, O) weight."""
    scale = gamma / jnp.sqrt(var + eps)      # (H,)
    shift = beta - mean * scale              # (H,)
    w = (w_fc * scale[None, :]).T            # (H, O)
    b = b_fc + w_fc @ shift                  # (O,)
    return w, b


# ------------------------------------------------------------------
# Wrapper
# ------------------------------------------------------------------
@jax.jit
def lstm_model_forward(params, x_bsd):
    """x_bsd: (batch, seq, input_size) -> (batch, seq, output_size). Eval-mode forward."""
    B, T, D = x_bsd.shape
    H = params["lstm"][0][1].shape[1]        # w_hh is (4H, H)
    O = params["fc_w"].shape[0]

    G = _NUM_BATCH_SHARDS
    Bc = max(_SUBLANE, _round_up(-(-B // G), _SUBLANE))   # per-shard batch, multiple of 8
    B_pad = G * Bc
    Dp = max(_SUBLANE, _round_up(D, _SUBLANE))            # layer-0 feature dim, sublane-aligned
    Hp = max(_LANE, _round_up(H, _LANE))                  # hidden dim, lane-dense
    Op = max(_LANE, _round_up(O, _LANE))                  # output dim, lane-dense

    # --- input: pad batch + features; time-major per shard: (G, T*Bc, Dp), row = t*Bc + b_local.
    x = x_bsd.astype(jnp.float32)
    x = jnp.pad(x, ((0, B_pad - B), (0, 0), (0, Dp - D)))
    x = jnp.transpose(x, (1, 0, 2)).reshape(T, G, Bc, Dp)
    x_grid = jnp.transpose(x, (1, 0, 2, 3)).reshape(G, T * Bc, Dp)

    inputs = [x_grid]
    in_specs = [pl.BlockSpec((pl.Squeezed(), T * Bc, Dp), lambda g: (g, 0, 0))]

    # --- LSTM weights: pre-transpose to MXU RHS layout, pad each gate block to Hp lanes.
    w_bytes = 0
    for layer, (w_ih, w_hh, b) in enumerate(params["lstm"]):
        din = D if layer == 0 else H
        din_p = Dp if layer == 0 else Hp
        wih = _pad_gate_cols(w_ih.T.astype(jnp.float32), H, Hp)          # (din, 4*Hp)
        wih = jnp.pad(wih, ((0, din_p - din), (0, 0)))
        whh = _pad_gate_cols(w_hh.T.astype(jnp.float32), H, Hp)          # (H, 4*Hp)
        whh = jnp.pad(whh, ((0, Hp - H), (0, 0)))
        bp = _pad_gate_cols(b.reshape(1, 4 * H).astype(jnp.float32), H, Hp)
        inputs += [wih, whh, bp]
        in_specs += [
            pl.BlockSpec((din_p, 4 * Hp), lambda g: (0, 0)),
            pl.BlockSpec((Hp, 4 * Hp), lambda g: (0, 0)),
            pl.BlockSpec((1, 4 * Hp), lambda g: (0, 0)),
        ]
        w_bytes += (din_p + Hp + 1) * 4 * Hp * 4

    # --- fold eval BatchNorm into the FC head; pad to (Hp, Op) for a lane-dense output store.
    w_fc, b_fc = _fold_batchnorm_into_fc(
        params["fc_w"].astype(jnp.float32), params["fc_b"].astype(jnp.float32),
        params["bn_gamma"], params["bn_beta"], params["bn_mean"], params["bn_var"])
    wfc_p = jnp.zeros((Hp, Op), jnp.float32).at[:H, :O].set(w_fc)
    bfc_p = jnp.zeros((1, Op), jnp.float32).at[0, :O].set(b_fc)
    inputs += [wfc_p, bfc_p]
    in_specs += [pl.BlockSpec((Hp, Op), lambda g: (0, 0)),
                 pl.BlockSpec((1, Op), lambda g: (0, 0))]
    w_bytes += (Hp + 1) * Op * 4

    # --- explicit VMEM budget: x/out blocks (double-buffered) + weights + whole-shard scratch.
    rows = T * Bc
    vmem_bytes = (2 * rows * Dp + 2 * rows * Op + rows * (4 * Hp + Hp)) * 4 + 2 * w_bytes
    vmem_limit = int(min(max(2 * vmem_bytes, 8 << 20), 96 << 20))

    num_layers = len(params["lstm"])
    kernel = partial(_fused_lstm_kernel, num_layers=num_layers, T=T, Bc=Bc, Hp=Hp)

    out_grid = pl.pallas_call(
        kernel,
        grid=(G,),
        out_shape=jax.ShapeDtypeStruct((G, T * Bc, Op), jnp.float32),
        in_specs=in_specs,
        out_specs=pl.BlockSpec((pl.Squeezed(), T * Bc, Op), lambda g: (g, 0, 0)),
        scratch_shapes=[
            pltpu.VMEM((T * Bc, 4 * Hp), jnp.float32),   # precomputed input-gate pre-acts
            pltpu.VMEM((T * Bc, Hp), jnp.float32),       # per-timestep hidden states
        ],
        compiler_params=pltpu.CompilerParams(
            dimension_semantics=("parallel",),
            vmem_limit_bytes=vmem_limit),
    )(*inputs)

    # drop batch / output padding, back to (B, T, O)
    out = out_grid.reshape(G, T, Bc, Op)
    out = jnp.transpose(out, (1, 0, 2, 3)).reshape(T, B_pad, Op)[:, :B, :O]
    return jnp.transpose(out, (1, 0, 2))


# ------------------------------------------------------------------
# Parameter initialization (mirrors LSTMModel._init_weights, deterministic)
# ------------------------------------------------------------------
def _xavier_uniform(key, shape):
    fan_out, fan_in = shape
    a = math.sqrt(6.0 / (fan_in + fan_out))
    return jax.random.uniform(key, shape, jnp.float32, -a, a)


def _orthogonal(key, shape):
    rows, cols = shape
    n = max(rows, cols)
    a = jax.random.normal(key, (n, min(rows, cols)), jnp.float32)
    q, r = jnp.linalg.qr(a)
    q = q * jnp.sign(jnp.diagonal(r))[None, :]
    q = q[:rows, :cols] if rows >= cols else q[:cols, :rows].T
    return q.astype(jnp.float32)


def init_params(key, input_size, hidden_size, num_layers, output_size):
    params = {"lstm": []}
    H = hidden_size
    for layer in range(num_layers):
        d_in = input_size if layer == 0 else hidden_size
        key, k1, k2 = jax.random.split(key, 3)
        w_ih = _xavier_uniform(k1, (4 * H, d_in))
        w_hh = _orthogonal(k2, (4 * H, H))
        b_ih = jnp.zeros((4 * H,), jnp.float32).at[H:2 * H].set(1.0)  # forget-gate bias = 1
        b_hh = jnp.zeros((4 * H,), jnp.float32).at[H:2 * H].set(1.0)
        b = (b_ih + b_hh).reshape(1, 4 * H)
        params["lstm"].append((w_ih, w_hh, b))
    key, kf = jax.random.split(key)
    params["fc_w"] = _xavier_uniform(kf, (output_size, H))
    params["fc_b"] = jnp.zeros((output_size,), jnp.float32)
    params["bn_gamma"] = jnp.ones((H,), jnp.float32)
    params["bn_beta"] = jnp.zeros((H,), jnp.float32)
    params["bn_mean"] = jnp.zeros((H,), jnp.float32)   # fresh BatchNorm1d running stats
    params["bn_var"] = jnp.ones((H,), jnp.float32)
    return params


if __name__ == "__main__":
    input_size = 4
    hidden_size = 32
    num_layers = 2
    output_size = 1
    batch, seq = 2, 8

    key = jax.random.PRNGKey(0)
    key, kx, kp = jax.random.split(key, 3)
    x = jax.random.normal(kx, (batch, seq, input_size), jnp.float32)
    params = init_params(kp, input_size, hidden_size, num_layers, output_size)

    out = lstm_model_forward(params, x)
    out = jax.block_until_ready(out)
    assert out.shape == (batch, seq, output_size)
    assert bool(jnp.all(jnp.isfinite(out)))
    print("KERNEL_OK")
</pallas_src>

<mosaic_0001>
module attributes {stable_mosaic.version = 11 : i64} {
  func.func @_fused_lstm_kernel(%arg0: i32, %arg1: memref<1x64x8xf32, #tpu.memory_space<vmem>>, %arg2: memref<8x512xf32, #tpu.memory_space<vmem>>, %arg3: memref<128x512xf32, #tpu.memory_space<vmem>>, %arg4: memref<1x512xf32, #tpu.memory_space<vmem>>, %arg5: memref<128x512xf32, #tpu.memory_space<vmem>>, %arg6: memref<128x512xf32, #tpu.memory_space<vmem>>, %arg7: memref<1x512xf32, #tpu.memory_space<vmem>>, %arg8: memref<128x128xf32, #tpu.memory_space<vmem>>, %arg9: memref<1x128xf32, #tpu.memory_space<vmem>>, %arg10: memref<1x64x128xf32, #tpu.memory_space<vmem>>, %arg11: memref<64x512xf32, #tpu.memory_space<vmem>>, %arg12: memref<64x128xf32, #tpu.memory_space<vmem>>) attributes {dimension_semantics = [#tpu.dimension_semantics<parallel>], iteration_bounds = array<i64: 2>, scalar_prefetch = 0 : i64, scratch_operands = 2 : i64, tpu.core_type = #tpu.core_type<tc>, window_params = [{transform_indices = @transform_0, window_bounds = array<i64: 1, 64, 8>}, {pipeline_mode = #tpu.pipeline_mode<synchronous>, transform_indices = @transform_1, window_bounds = array<i64: 8, 512>}, {pipeline_mode = #tpu.pipeline_mode<synchronous>, transform_indices = @transform_2, window_bounds = array<i64: 128, 512>}, {pipeline_mode = #tpu.pipeline_mode<synchronous>, transform_indices = @transform_3, window_bounds = array<i64: 1, 512>}, {pipeline_mode = #tpu.pipeline_mode<synchronous>, transform_indices = @transform_4, window_bounds = array<i64: 128, 512>}, {pipeline_mode = #tpu.pipeline_mode<synchronous>, transform_indices = @transform_5, window_bounds = array<i64: 128, 512>}, {pipeline_mode = #tpu.pipeline_mode<synchronous>, transform_indices = @transform_6, window_bounds = array<i64: 1, 512>}, {pipeline_mode = #tpu.pipeline_mode<synchronous>, transform_indices = @transform_7, window_bounds = array<i64: 128, 128>}, {pipeline_mode = #tpu.pipeline_mode<synchronous>, transform_indices = @transform_8, window_bounds = array<i64: 1, 128>}, {transform_indices = @transform_9, window_bounds = array<i64: 1, 64, 128>}]} {
    %c0 = arith.constant 0 : index
    %c0_0 = arith.constant 0 : index
    %c0_1 = arith.constant 0 : index
    %0 = vector.load %arg1[%c0, %c0_0, %c0_1] : memref<1x64x8xf32, #tpu.memory_space<vmem>>, vector<1x64x8xf32>
    %1 = vector.shape_cast %0 : vector<1x64x8xf32> to vector<64x8xf32>
    %c0_2 = arith.constant 0 : index
    %c0_3 = arith.constant 0 : index
    %2 = vector.load %arg2[%c0_2, %c0_3] : memref<8x512xf32, #tpu.memory_space<vmem>>, vector<8x512xf32>
    %cst = arith.constant dense<0.000000e+00> : vector<64x512xf32>
    %3 = tpu.matmul %1, %2, %cst {dimension_numbers = #tpu.dot_dimension_numbers<[1], [0], [0], [1], [0, 0, 1, 1], [], []>} : vector<64x8xf32>, vector<8x512xf32>, vector<64x512xf32> -> vector<64x512xf32>
    %c0_4 = arith.constant 0 : index
    %c0_5 = arith.constant 0 : index
    %4 = vector.load %arg4[%c0_4, %c0_5] : memref<1x512xf32, #tpu.memory_space<vmem>>, vector<1x512xf32>
    %5 = vector.broadcast %4 : vector<1x512xf32> to vector<64x512xf32>
    %6 = arith.addf %3, %5 : vector<64x512xf32>
    %c0_6 = arith.constant 0 : index
    %c0_7 = arith.constant 0 : index
    %7 = vector.load %arg11[%c0_6, %c0_7] : memref<64x512xf32, #tpu.memory_space<vmem>>, vector<64x512xf32>
    tpu.vector_store %arg11[%c0_6, %c0_7], %6 {strides = array<i32>} : memref<64x512xf32, #tpu.memory_space<vmem>>, vector<64x512xf32>,
    %c0_8 = arith.constant 0 : index
    %c0_9 = arith.constant 0 : index
    %8 = vector.load %arg3[%c0_8, %c0_9] : memref<128x512xf32, #tpu.memory_space<vmem>>, vector<128x512xf32>
    %cst_10 = arith.constant 0.000000e+00 : f32
    %9 = vector.broadcast %cst_10 : f32 to vector<8x128xf32>
    %cst_11 = arith.constant 0.000000e+00 : f32
    %10 = vector.broadcast %cst_11 : f32 to vector<8x128xf32>
    %c0_i32 = arith.constant 0 : i32
    %c8_i32 = arith.constant 8 : i32
    %11 = arith.muli %c0_i32, %c8_i32 : i32
    %12 = tpu.assume_multiple %11, 8 : i32
    %13 = arith.index_cast %12 : i32 to index
    %c0_12 = arith.constant 0 : index
    %14 = vector.load %arg11[%13, %c0_12] : memref<64x512xf32, #tpu.memory_space<vmem>>, vector<8x512xf32>
    %cst_13 = arith.constant dense<0.000000e+00> : vector<8x512xf32>
    %15 = tpu.matmul %9, %8, %cst_13 {dimension_numbers = #tpu.dot_dimension_numbers<[1], [0], [0], [1], [0, 0, 1, 1], [], []>} : vector<8x128xf32>, vector<128x512xf32>, vector<8x512xf32> -> vector<8x512xf32>
    %16 = arith.addf %14, %15 : vector<8x512xf32>
    %17 = vector.extract_strided_slice %16 {offsets = [0, 0], sizes = [8, 128], strides = [1, 1]} : vector<8x512xf32> to vector<8x128xf32>
    %cst_14 = arith.constant 5.000000e-01 : f32
    %18 = vector.broadcast %cst_14 : f32 to vector<8x128xf32>
    %19 = arith.mulf %18, %17 : vector<8x128xf32>
    %20 = math.tanh %19 : vector<8x128xf32>
    %cst_15 = arith.constant 5.000000e-01 : f32
    %21 = vector.broadcast %cst_15 : f32 to vector<8x128xf32>
    %22 = arith.mulf %21, %20 : vector<8x128xf32>
    %cst_16 = arith.constant 5.000000e-01 : f32
    %23 = vector.broadcast %cst_16 : f32 to vector<8x128xf32>
    %24 = arith.addf %22, %23 : vector<8x128xf32>
    %25 = vector.extract_strided_slice %16 {offsets = [0, 128], sizes = [8, 128], strides = [1, 1]} : vector<8x512xf32> to vector<8x128xf32>
    %cst_17 = arith.constant 5.000000e-01 : f32
    %26 = vector.broadcast %cst_17 : f32 to vector<8x128xf32>
    %27 = arith.mulf %26, %25 : vector<8x128xf32>
    %28 = math.tanh %27 : vector<8x128xf32>
    %cst_18 = arith.constant 5.000000e-01 : f32
    %29 = vector.broadcast %cst_18 : f32 to vector<8x128xf32>
    %30 = arith.mulf %29, %28 : vector<8x128xf32>
    %cst_19 = arith.constant 5.000000e-01 : f32
    %31 = vector.broadcast %cst_19 : f32 to vector<8x128xf32>
    %32 = arith.addf %30, %31 : vector<8x128xf32>
    %33 = vector.extract_strided_slice %16 {offsets = [0, 256], sizes = [8, 128], strides = [1, 1]} : vector<8x512xf32> to vector<8x128xf32>
    %34 = math.tanh %33 : vector<8x128xf32>
    %35 = vector.extract_strided_slice %16 {offsets = [0, 384], sizes = [8, 128], strides = [1, 1]} : vector<8x512xf32> to vector<8x128xf32>
    %cst_20 = arith.constant 5.000000e-01 : f32
    %36 = vector.broadcast %cst_20 : f32 to vector<8x128xf32>
    %37 = arith.mulf %36, %35 : vector<8x128xf32>
    %38 = math.tanh %37 : vector<8x128xf32>
    %cst_21 = arith.constant 5.000000e-01 : f32
    %39 = vector.broadcast %cst_21 : f32 to vector<8x128xf32>
    %40 = arith.mulf %39, %38 : vector<8x128xf32>
    %cst_22 = arith.constant 5.000000e-01 : f32
    %41 = vector.broadcast %cst_22 : f32 to vector<8x128xf32>
    %42 = arith.addf %40, %41 : vector<8x128xf32>
    %43 = arith.mulf %32, %10 : vector<8x128xf32>
    %44 = arith.mulf %24, %34 : vector<8x128xf32>
    %45 = arith.addf %43, %44 : vector<8x128xf32>
    %46 = math.tanh %45 : vector<8x128xf32>
    %47 = arith.mulf %42, %46 : vector<8x128xf32>
    %48 = arith.index_cast %12 : i32 to index
    %c0_23 = arith.constant 0 : index
    %49 = vector.load %arg12[%48, %c0_23] : memref<64x128xf32, #tpu.memory_space<vmem>>, vector<8x128xf32>
    tpu.vector_store %arg12[%48, %c0_23], %47 {strides = array<i32>} : memref<64x128xf32, #tpu.memory_space<vmem>>, vector<8x128xf32>,
    %c1_i32 = arith.constant 1 : i32
    %c8_i32_24 = arith.constant 8 : i32
    %50 = arith.muli %c1_i32, %c8_i32_24 : i32
    %51 = tpu.assume_multiple %50, 8 : i32
    %52 = arith.index_cast %51 : i32 to index
    %c0_25 = arith.constant 0 : index
    %53 = vector.load %arg11[%52, %c0_25] : memref<64x512xf32, #tpu.memory_space<vmem>>, vector<8x512xf32>
    %cst_26 = arith.constant dense<0.000000e+00> : vector<8x512xf32>
    %54 = tpu.matmul %47, %8, %cst_26 {dimension_numbers = #tpu.dot_dimension_numbers<[1], [0], [0], [1], [0, 0, 1, 1], [], []>} : vector<8x128xf32>, vector<128x512xf32>, vector<8x512xf32> -> vector<8x512xf32>
    %55 = arith.addf %53, %54 : vector<8x512xf32>
    %56 = vector.extract_strided_slice %55 {offsets = [0, 0], sizes = [8, 128], strides = [1, 1]} : vector<8x512xf32> to vector<8x128xf32>
    %cst_27 = arith.constant 5.000000e-01 : f32
    %57 = vector.broadcast %cst_27 : f32 to vector<8x128xf32>
    %58 = arith.mulf %57, %56 : vector<8x128xf32>
    %59 = math.tanh %58 : vector<8x128xf32>
    %cst_28 = arith.constant 5.000000e-01 : f32
    %60 = vector.broadcast %cst_28 : f32 to vector<8x128xf32>
    %61 = arith.mulf %60, %59 : vector<8x128xf32>
    %cst_29 = arith.constant 5.000000e-01 : f32
    %62 = vector.broadcast %cst_29 : f32 to vector<8x128xf32>
    %63 = arith.addf %61, %62 : vector<8x128xf32>
    %64 = vector.extract_strided_slice %55 {offsets = [0, 128], sizes = [8, 128], strides = [1, 1]} : vector<8x512xf32> to vector<8x128xf32>
    %cst_30 = arith.constant 5.000000e-01 : f32
    %65 = vector.broadcast %cst_30 : f32 to vector<8x128xf32>
    %66 = arith.mulf %65, %64 : vector<8x128xf32>
    %67 = math.tanh %66 : vector<8x128xf32>
    %cst_31 = arith.constant 5.000000e-01 : f32
    %68 = vector.broadcast %cst_31 : f32 to vector<8x128xf32>
    %69 = arith.mulf %68, %67 : vector<8x128xf32>
    %cst_32 = arith.constant 5.000000e-01 : f32
    %70 = vector.broadcast %cst_32 : f32 to vector<8x128xf32>
    %71 = arith.addf %69, %70 : vector<8x128xf32>
    %72 = vector.extract_strided_slice %55 {offsets = [0, 256], sizes = [8, 128], strides = [1, 1]} : vector<8x512xf32> to vector<8x128xf32>
    %73 = math.tanh %72 : vector<8x128xf32>
    %74 = vector.extract_strided_slice %55 {offsets = [0, 384], sizes = [8, 128], strides = [1, 1]} : vector<8x512xf32> to vector<8x128xf32>
    %cst_33 = arith.constant 5.000000e-01 : f32
    %75 = vector.broadcast %cst_33 : f32 to vector<8x128xf32>
    %76 = arith.mulf %75, %74 : vector<8x128xf32>
    %77 = math.tanh %76 : vector<8x128xf32>
    %cst_34 = arith.constant 5.000000e-01 : f32
    %78 = vector.broadcast %cst_34 : f32 to vector<8x128xf32>
    %79 = arith.mulf %78, %77 : vector<8x128xf32>
    %cst_35 = arith.constant 5.000000e-01 : f32
    %80 = vector.broadcast %cst_35 : f32 to vector<8x128xf32>
    %81 = arith.addf %79, %80 : vector<8x128xf32>
    %82 = arith.mulf %71, %45 : vector<8x128xf32>
    %83 = arith.mulf %63, %73 : vector<8x128xf32>
    %84 = arith.addf %82, %83 : vector<8x128xf32>
    %85 = math.tanh %84 : vector<8x128xf32>
    %86 = arith.mulf %81, %85 : vector<8x128xf32>
    %87 = arith.index_cast %51 : i32 to index
    %c0_36 = arith.constant 0 : index
    %88 = vector.load %arg12[%87, %c0_36] : memref<64x128xf32, #tpu.memory_space<vmem>>, vector<8x128xf32>
    tpu.vector_store %arg12[%87, %c0_36], %86 {strides = array<i32>} : memref<64x128xf32, #tpu.memory_space<vmem>>, vector<8x128xf32>,
    %c2_i32 = arith.constant 2 : i32
    %c8_i32_37 = arith.constant 8 : i32
    %89 = arith.muli %c2_i32, %c8_i32_37 : i32
    %90 = tpu.assume_multiple %89, 8 : i32
    %91 = arith.index_cast %90 : i32 to index
    %c0_38 = arith.constant 0 : index
    %92 = vector.load %arg11[%91, %c0_38] : memref<64x512xf32, #tpu.memory_space<vmem>>, vector<8x512xf32>
    %cst_39 = arith.constant dense<0.000000e+00> : vector<8x512xf32>
    %93 = tpu.matmul %86, %8, %cst_39 {dimension_numbers = #tpu.dot_dimension_numbers<[1], [0], [0], [1], [0, 0, 1, 1], [], []>} : vector<8x128xf32>, vector<128x512xf32>, vector<8x512xf32> -> vector<8x512xf32>
    %94 = arith.addf %92, %93 : vector<8x512xf32>
    %95 = vector.extract_strided_slice %94 {offsets = [0, 0], sizes = [8, 128], strides = [1, 1]} : vector<8x512xf32> to vector<8x128xf32>
    %cst_40 = arith.constant 5.000000e-01 : f32
    %96 = vector.broadcast %cst_40 : f32 to vector<8x128xf32>
    %97 = arith.mulf %96, %95 : vector<8x128xf32>
    %98 = math.tanh %97 : vector<8x128xf32>
    %cst_41 = arith.constant 5.000000e-01 : f32
    %99 = vector.broadcast %cst_41 : f32 to vector<8x128xf32>
    %100 = arith.mulf %99, %98 : vector<8x128xf32>
    %cst_42 = arith.constant 5.000000e-01 : f32
    %101 = vector.broadcast %cst_42 : f32 to vector<8x128xf32>
    %102 = arith.addf %100, %101 : vector<8x128xf32>
    %103 = vector.extract_strided_slice %94 {offsets = [0, 128], sizes = [8, 128], strides = [1, 1]} : vector<8x512xf32> to vector<8x128xf32>
    %cst_43 = arith.constant 5.000000e-01 : f32
    %104 = vector.broadcast %cst_43 : f32 to vector<8x128xf32>
    %105 = arith.mulf %104, %103 : vector<8x128xf32>
    %106 = math.tanh %105 : vector<8x128xf32>
    %cst_44 = arith.constant 5.000000e-01 : f32
    %107 = vector.broadcast %cst_44 : f32 to vector<8x128xf32>
    %108 = arith.mulf %107, %106 : vector<8x128xf32>
    %cst_45 = arith.constant 5.000000e-01 : f32
    %109 = vector.broadcast %cst_45 : f32 to vector<8x128xf32>
    %110 = arith.addf %108, %109 : vector<8x128xf32>
    %111 = vector.extract_strided_slice %94 {offsets = [0, 256], sizes = [8, 128], strides = [1, 1]} : vector<8x512xf32> to vector<8x128xf32>
    %112 = math.tanh %111 : vector<8x128xf32>
    %113 = vector.extract_strided_slice %94 {offsets = [0, 384], sizes = [8, 128], strides = [1, 1]} : vector<8x512xf32> to vector<8x128xf32>
    %cst_46 = arith.constant 5.000000e-01 : f32
    %114 = vector.broadcast %cst_46 : f32 to vector<8x128xf32>
    %115 = arith.mulf %114, %113 : vector<8x128xf32>
    %116 = math.tanh %115 : vector<8x128xf32>
    %cst_47 = arith.constant 5.000000e-01 : f32
    %117 = vector.broadcast %cst_47 : f32 to vector<8x128xf32>
    %118 = arith.mulf %117, %116 : vector<8x128xf32>
    %cst_48 = arith.constant 5.000000e-01 : f32
    %119 = vector.broadcast %cst_48 : f32 to vector<8x128xf32>
    %120 = arith.addf %118, %119 : vector<8x128xf32>
    %121 = arith.mulf %110, %84 : vector<8x128xf32>
    %122 = arith.mulf %102, %112 : vector<8x128xf32>
    %123 = arith.addf %121, %122 : vector<8x128xf32>
    %124 = math.tanh %123 : vector<8x128xf32>
    %125 = arith.mulf %120, %124 : vector<8x128xf32>
    %126 = arith.index_cast %90 : i32 to index
    %c0_49 = arith.constant 0 : index
    %127 = vector.load %arg12[%126, %c0_49] : memref<64x128xf32, #tpu.memory_space<vmem>>, vector<8x128xf32>
    tpu.vector_store %arg12[%126, %c0_49], %125 {strides = array<i32>} : memref<64x128xf32, #tpu.memory_space<vmem>>, vector<8x128xf32>,
    %c3_i32 = arith.constant 3 : i32
    %c8_i32_50 = arith.constant 8 : i32
    %128 = arith.muli %c3_i32, %c8_i32_50 : i32
    %129 = tpu.assume_multiple %128, 8 : i32
    %130 = arith.index_cast %129 : i32 to index
    %c0_51 = arith.constant 0 : index
    %131 = vector.load %arg11[%130, %c0_51] : memref<64x512xf32, #tpu.memory_space<vmem>>, vector<8x512xf32>
    %cst_52 = arith.constant dense<0.000000e+00> : vector<8x512xf32>
    %132 = tpu.matmul %125, %8, %cst_52 {dimension_numbers = #tpu.dot_dimension_numbers<[1], [0], [0], [1], [0, 0, 1, 1], [], []>} : vector<8x128xf32>, vector<128x512xf32>, vector<8x512xf32> -> vector<8x512xf32>
    %133 = arith.addf %131, %132 : vector<8x512xf32>
    %134 = vector.extract_strided_slice %133 {offsets = [0, 0], sizes = [8, 128], strides = [1, 1]} : vector<8x512xf32> to vector<8x128xf32>
    %cst_53 = arith.constant 5.000000e-01 : f32
    %135 = vector.broadcast %cst_53 : f32 to vector<8x128xf32>
    %136 = arith.mulf %135, %134 : vector<8x128xf32>
    %137 = math.tanh %136 : vector<8x128xf32>
    %cst_54 = arith.constant 5.000000e-01 : f32
    %138 = vector.broadcast %cst_54 : f32 to vector<8x128xf32>
    %139 = arith.mulf %138, %137 : vector<8x128xf32>
    %cst_55 = arith.constant 5.000000e-01 : f32
    %140 = vector.broadcast %cst_55 : f32 to vector<8x128xf32>
    %141 = arith.addf %139, %140 : vector<8x128xf32>
    %142 = vector.extract_strided_slice %133 {offsets = [0, 128], sizes = [8, 128], strides = [1, 1]} : vector<8x512xf32> to vector<8x128xf32>
    %cst_56 = arith.constant 5.000000e-01 : f32
    %143 = vector.broadcast %cst_56 : f32 to vector<8x128xf32>
    %144 = arith.mulf %143, %142 : vector<8x128xf32>
    %145 = math.tanh %144 : vector<8x128xf32>
    %cst_57 = arith.constant 5.000000e-01 : f32
    %146 = vector.broadcast %cst_57 : f32 to vector<8x128xf32>
    %147 = arith.mulf %146, %145 : vector<8x128xf32>
    %cst_58 = arith.constant 5.000000e-01 : f32
    %148 = vector.broadcast %cst_58 : f32 to vector<8x128xf32>
    %149 = arith.addf %147, %148 : vector<8x128xf32>
    %150 = vector.extract_strided_slice %133 {offsets = [0, 256], sizes = [8, 128], strides = [1, 1]} : vector<8x512xf32> to vector<8x128xf32>
    %151 = math.tanh %150 : vector<8x128xf32>
    %152 = vector.extract_strided_slice %133 {offsets = [0, 384], sizes = [8, 128], strides = [1, 1]} : vector<8x512xf32> to vector<8x128xf32>
    %cst_59 = arith.constant 5.000000e-01 : f32
    %153 = vector.broadcast %cst_59 : f32 to vector<8x128xf32>
    %154 = arith.mulf %153, %152 : vector<8x128xf32>
    %155 = math.tanh %154 : vector<8x128xf32>
    %cst_60 = arith.constant 5.000000e-01 : f32
    %156 = vector.broadcast %cst_60 : f32 to vector<8x128xf32>
    %157 = arith.mulf %156, %155 : vector<8x128xf32>
    %cst_61 = arith.constant 5.000000e-01 : f32
    %158 = vector.broadcast %cst_61 : f32 to vector<8x128xf32>
    %159 = arith.addf %157, %158 : vector<8x128xf32>
    %160 = arith.mulf %149, %123 : vector<8x128xf32>
    %161 = arith.mulf %141, %151 : vector<8x128xf32>
    %162 = arith.addf %160, %161 : vector<8x128xf32>
    %163 = math.tanh %162 : vector<8x128xf32>
    %164 = arith.mulf %159, %163 : vector<8x128xf32>
    %165 = arith.index_cast %129 : i32 to index
    %c0_62 = arith.constant 0 : index
    %166 = vector.load %arg12[%165, %c0_62] : memref<64x128xf32, #tpu.memory_space<vmem>>, vector<8x128xf32>
    tpu.vector_store %arg12[%165, %c0_62], %164 {strides = array<i32>} : memref<64x128xf32, #tpu.memory_space<vmem>>, vector<8x128xf32>,
    %c4_i32 = arith.constant 4 : i32
    %c8_i32_63 = arith.constant 8 : i32
    %167 = arith.muli %c4_i32, %c8_i32_63 : i32
    %168 = tpu.assume_multiple %167, 8 : i32
    %169 = arith.index_cast %168 : i32 to index
    %c0_64 = arith.constant 0 : index
    %170 = vector.load %arg11[%169, %c0_64] : memref<64x512xf32, #tpu.memory_space<vmem>>, vector<8x512xf32>
    %cst_65 = arith.constant dense<0.000000e+00> : vector<8x512xf32>
    %171 = tpu.matmul %164, %8, %cst_65 {dimension_numbers = #tpu.dot_dimension_numbers<[1], [0], [0], [1], [0, 0, 1, 1], [], []>} : vector<8x128xf32>, vector<128x512xf32>, vector<8x512xf32> -> vector<8x512xf32>
    %172 = arith.addf %170, %171 : vector<8x512xf32>
    %173 = vector.extract_strided_slice %172 {offsets = [0, 0], sizes = [8, 128], strides = [1, 1]} : vector<8x512xf32> to vector<8x128xf32>
    %cst_66 = arith.constant 5.000000e-01 : f32
    %174 = vector.broadcast %cst_66 : f32 to vector<8x128xf32>
    %175 = arith.mulf %174, %173 : vector<8x128xf32>
    %176 = math.tanh %175 : vector<8x128xf32>
    %cst_67 = arith.constant 5.000000e-01 : f32
    %177 = vector.broadcast %cst_67 : f32 to vector<8x128xf32>
    %178 = arith.mulf %177, %176 : vector<8x128xf32>
    %cst_68 = arith.constant 5.000000e-01 : f32
    %179 = vector.broadcast %cst_68 : f32 to vector<8x128xf32>
    %180 = arith.addf %178, %179 : vector<8x128xf32>
    %181 = vector.extract_strided_slice %172 {offsets = [0, 128], sizes = [8, 128], strides = [1, 1]} : vector<8x512xf32> to vector<8x128xf32>
    %cst_69 = arith.constant 5.000000e-01 : f32
    %182 = vector.broadcast %cst_69 : f32 to vector<8x128xf32>
    %183 = arith.mulf %182, %181 : vector<8x128xf32>
    %184 = math.tanh %183 : vector<8x128xf32>
    %cst_70 = arith.constant 5.000000e-01 : f32
    %185 = vector.broadcast %cst_70 : f32 to vector<8x128xf32>
    %186 = arith.mulf %185, %184 : vector<8x128xf32>
    %cst_71 = arith.constant 5.000000e-01 : f32
    %187 = vector.broadcast %cst_71 : f32 to vector<8x128xf32>
    %188 = arith.addf %186, %187 : vector<8x128xf32>
    %189 = vector.extract_strided_slice %172 {offsets = [0, 256], sizes = [8, 128], strides = [1, 1]} : vector<8x512xf32> to vector<8x128xf32>
    %190 = math.tanh %189 : vector<8x128xf32>
    %191 = vector.extract_strided_slice %172 {offsets = [0, 384], sizes = [8, 128], strides = [1, 1]} : vector<8x512xf32> to vector<8x128xf32>
    %cst_72 = arith.constant 5.000000e-01 : f32
    %192 = vector.broadcast %cst_72 : f32 to vector<8x128xf32>
    %193 = arith.mulf %192, %191 : vector<8x128xf32>
    %194 = math.tanh %193 : vector<8x128xf32>
    %cst_73 = arith.constant 5.000000e-01 : f32
    %195 = vector.broadcast %cst_73 : f32 to vector<8x128xf32>
    %196 = arith.mulf %195, %194 : vector<8x128xf32>
    %cst_74 = arith.constant 5.000000e-01 : f32
    %197 = vector.broadcast %cst_74 : f32 to vector<8x128xf32>
    %198 = arith.addf %196, %197 : vector<8x128xf32>
    %199 = arith.mulf %188, %162 : vector<8x128xf32>
    %200 = arith.mulf %180, %190 : vector<8x128xf32>
    %201 = arith.addf %199, %200 : vector<8x128xf32>
    %202 = math.tanh %201 : vector<8x128xf32>
    %203 = arith.mulf %198, %202 : vector<8x128xf32>
    %204 = arith.index_cast %168 : i32 to index
    %c0_75 = arith.constant 0 : index
    %205 = vector.load %arg12[%204, %c0_75] : memref<64x128xf32, #tpu.memory_space<vmem>>, vector<8x128xf32>
    tpu.vector_store %arg12[%204, %c0_75], %203 {strides = array<i32>} : memref<64x128xf32, #tpu.memory_space<vmem>>, vector<8x128xf32>,
    %c5_i32 = arith.constant 5 : i32
    %c8_i32_76 = arith.constant 8 : i32
    %206 = arith.muli %c5_i32, %c8_i32_76 : i32
    %207 = tpu.assume_multiple %206, 8 : i32
    %208 = arith.index_cast %207 : i32 to index
    %c0_77 = arith.constant 0 : index
    %209 = vector.load %arg11[%208, %c0_77] : memref<64x512xf32, #tpu.memory_space<vmem>>, vector<8x512xf32>
    %cst_78 = arith.constant dense<0.000000e+00> : vector<8x512xf32>
    %210 = tpu.matmul %203, %8, %cst_78 {dimension_numbers = #tpu.dot_dimension_numbers<[1], [0], [0], [1], [0, 0, 1, 1], [], []>} : vector<8x128xf32>, vector<128x512xf32>, vector<8x512xf32> -> vector<8x512xf32>
    %211 = arith.addf %209, %210 : vector<8x512xf32>
    %212 = vector.extract_strided_slice %211 {offsets = [0, 0], sizes = [8, 128], strides = [1, 1]} : vector<8x512xf32> to vector<8x128xf32>
    %cst_79 = arith.constant 5.000000e-01 : f32
    %213 = vector.broadcast %cst_79 : f32 to vector<8x128xf32>
    %214 = arith.mulf %213, %212 : vector<8x128xf32>
    %215 = math.tanh %214 : vector<8x128xf32>
    %cst_80 = arith.constant 5.000000e-01 : f32
    %216 = vector.broadcast %cst_80 : f32 to vector<8x128xf32>
    %217 = arith.mulf %216, %215 : vector<8x128xf32>
    %cst_81 = arith.constant 5.000000e-01 : f32
    %218 = vector.broadcast %cst_81 : f32 to vector<8x128xf32>
    %219 = arith.addf %217, %218 : vector<8x128xf32>
    %220 = vector.extract_strided_slice %211 {offsets = [0, 128], sizes = [8, 128], strides = [1, 1]} : vector<8x512xf32> to vector<8x128xf32>
    %cst_82 = arith.constant 5.000000e-01 : f32
    %221 = vector.broadcast %cst_82 : f32 to vector<8x128xf32>
    %222 = arith.mulf %221, %220 : vector<8x128xf32>
    %223 = math.tanh %222 : vector<8x128xf32>
    %cst_83 = arith.constant 5.000000e-01 : f32
    %224 = vector.broadcast %cst_83 : f32 to vector<8x128xf32>
    %225 = arith.mulf %224, %223 : vector<8x128xf32>
    %cst_84 = arith.constant 5.000000e-01 : f32
    %226 = vector.broadcast %cst_84 : f32 to vector<8x128xf32>
    %227 = arith.addf %225, %226 : vector<8x128xf32>
    %228 = vector.extract_strided_slice %211 {offsets = [0, 256], sizes = [8, 128], strides = [1, 1]} : vector<8x512xf32> to vector<8x128xf32>
    %229 = math.tanh %228 : vector<8x128xf32>
    %230 = vector.extract_strided_slice %211 {offsets = [0, 384], sizes = [8, 128], strides = [1, 1]} : vector<8x512xf32> to vector<8x128xf32>
    %cst_85 = arith.constant 5.000000e-01 : f32
    %231 = vector.broadcast %cst_85 : f32 to vector<8x128xf32>
    %232 = arith.mulf %231, %230 : vector<8x128xf32>
    %233 = math.tanh %232 : vector<8x128xf32>
    %cst_86 = arith.constant 5.000000e-01 : f32
    %234 = vector.broadcast %cst_86 : f32 to vector<8x128xf32>
    %235 = arith.mulf %234, %233 : vector<8x128xf32>
    %cst_87 = arith.constant 5.000000e-01 : f32
    %236 = vector.broadcast %cst_87 : f32 to vector<8x128xf32>
    %237 = arith.addf %235, %236 : vector<8x128xf32>
    %238 = arith.mulf %227, %201 : vector<8x128xf32>
    %239 = arith.mulf %219, %229 : vector<8x128xf32>
    %240 = arith.addf %238, %239 : vector<8x128xf32>
    %241 = math.tanh %240 : vector<8x128xf32>
    %242 = arith.mulf %237, %241 : vector<8x128xf32>
    %243 = arith.index_cast %207 : i32 to index
    %c0_88 = arith.constant 0 : index
    %244 = vector.load %arg12[%243, %c0_88] : memref<64x128xf32, #tpu.memory_space<vmem>>, vector<8x128xf32>
    tpu.vector_store %arg12[%243, %c0_88], %242 {strides = array<i32>} : memref<64x128xf32, #tpu.memory_space<vmem>>, vector<8x128xf32>,
    %c6_i32 = arith.constant 6 : i32
    %c8_i32_89 = arith.constant 8 : i32
    %245 = arith.muli %c6_i32, %c8_i32_89 : i32
    %246 = tpu.assume_multiple %245, 8 : i32
    %247 = arith.index_cast %246 : i32 to index
    %c0_90 = arith.constant 0 : index
    %248 = vector.load %arg11[%247, %c0_90] : memref<64x512xf32, #tpu.memory_space<vmem>>, vector<8x512xf32>
    %cst_91 = arith.constant dense<0.000000e+00> : vector<8x512xf32>
    %249 = tpu.matmul %242, %8, %cst_91 {dimension_numbers = #tpu.dot_dimension_numbers<[1], [0], [0], [1], [0, 0, 1, 1], [], []>} : vector<8x128xf32>, vector<128x512xf32>, vector<8x512xf32> -> vector<8x512xf32>
    %250 = arith.addf %248, %249 : vector<8x512xf32>
    %251 = vector.extract_strided_slice %250 {offsets = [0, 0], sizes = [8, 128], strides = [1, 1]} : vector<8x512xf32> to vector<8x128xf32>
    %cst_92 = arith.constant 5.000000e-01 : f32
    %252 = vector.broadcast %cst_92 : f32 to vector<8x128xf32>
    %253 = arith.mulf %252, %251 : vector<8x128xf32>
    %254 = math.tanh %253 : vector<8x128xf32>
    %cst_93 = arith.constant 5.000000e-01 : f32
    %255 = vector.broadcast %cst_93 : f32 to vector<8x128xf32>
    %256 = arith.mulf %255, %254 : vector<8x128xf32>
    %cst_94 = arith.constant 5.000000e-01 : f32
    %257 = vector.broadcast %cst_94 : f32 to vector<8x128xf32>
    %258 = arith.addf %256, %257 : vector<8x128xf32>
    %259 = vector.extract_strided_slice %250 {offsets = [0, 128], sizes = [8, 128], strides = [1, 1]} : vector<8x512xf32> to vector<8x128xf32>
    %cst_95 = arith.constant 5.000000e-01 : f32
    %260 = vector.broadcast %cst_95 : f32 to vector<8x128xf32>
    %261 = arith.mulf %260, %259 : vector<8x128xf32>
    %262 = math.tanh %261 : vector<8x128xf32>
    %cst_96 = arith.constant 5.000000e-01 : f32
    %263 = vector.broadcast %cst_96 : f32 to vector<8x128xf32>
    %264 = arith.mulf %263, %262 : vector<8x128xf32>
    %cst_97 = arith.constant 5.000000e-01 : f32
    %265 = vector.broadcast %cst_97 : f32 to vector<8x128xf32>
    %266 = arith.addf %264, %265 : vector<8x128xf32>
    %267 = vector.extract_strided_slice %250 {offsets = [0, 256], sizes = [8, 128], strides = [1, 1]} : vector<8x512xf32> to vector<8x128xf32>
    %268 = math.tanh %267 : vector<8x128xf32>
    %269 = vector.extract_strided_slice %250 {offsets = [0, 384], sizes = [8, 128], strides = [1, 1]} : vector<8x512xf32> to vector<8x128xf32>
    %cst_98 = arith.constant 5.000000e-01 : f32
    %270 = vector.broadcast %cst_98 : f32 to vector<8x128xf32>
    %271 = arith.mulf %270, %269 : vector<8x128xf32>
    %272 = math.tanh %271 : vector<8x128xf32>
    %cst_99 = arith.constant 5.000000e-01 : f32
    %273 = vector.broadcast %cst_99 : f32 to vector<8x128xf32>
    %274 = arith.mulf %273, %272 : vector<8x128xf32>
    %cst_100 = arith.constant 5.000000e-01 : f32
    %275 = vector.broadcast %cst_100 : f32 to vector<8x128xf32>
    %276 = arith.addf %274, %275 : vector<8x128xf32>
    %277 = arith.mulf %266, %240 : vector<8x128xf32>
    %278 = arith.mulf %258, %268 : vector<8x128xf32>
    %279 = arith.addf %277, %278 : vector<8x128xf32>
    %280 = math.tanh %279 : vector<8x128xf32>
    %281 = arith.mulf %276, %280 : vector<8x128xf32>
    %282 = arith.index_cast %246 : i32 to index
    %c0_101 = arith.constant 0 : index
    %283 = vector.load %arg12[%282, %c0_101] : memref<64x128xf32, #tpu.memory_space<vmem>>, vector<8x128xf32>
    tpu.vector_store %arg12[%282, %c0_101], %281 {strides = array<i32>} : memref<64x128xf32, #tpu.memory_space<vmem>>, vector<8x128xf32>,
    %c7_i32 = arith.constant 7 : i32
    %c8_i32_102 = arith.constant 8 : i32
    %284 = arith.muli %c7_i32, %c8_i32_102 : i32
    %285 = tpu.assume_multiple %284, 8 : i32
    %286 = arith.index_cast %285 : i32 to index
    %c0_103 = arith.constant 0 : index
    %287 = vector.load %arg11[%286, %c0_103] : memref<64x512xf32, #tpu.memory_space<vmem>>, vector<8x512xf32>
    %cst_104 = arith.constant dense<0.000000e+00> : vector<8x512xf32>
    %288 = tpu.matmul %281, %8, %cst_104 {dimension_numbers = #tpu.dot_dimension_numbers<[1], [0], [0], [1], [0, 0, 1, 1], [], []>} : vector<8x128xf32>, vector<128x512xf32>, vector<8x512xf32> -> vector<8x512xf32>
    %289 = arith.addf %287, %288 : vector<8x512xf32>
    %290 = vector.extract_strided_slice %289 {offsets = [0, 0], sizes = [8, 128], strides = [1, 1]} : vector<8x512xf32> to vector<8x128xf32>
    %cst_105 = arith.constant 5.000000e-01 : f32
    %291 = vector.broadcast %cst_105 : f32 to vector<8x128xf32>
    %292 = arith.mulf %291, %290 : vector<8x128xf32>
    %293 = math.tanh %292 : vector<8x128xf32>
    %cst_106 = arith.constant 5.000000e-01 : f32
    %294 = vector.broadcast %cst_106 : f32 to vector<8x128xf32>
    %295 = arith.mulf %294, %293 : vector<8x128xf32>
    %cst_107 = arith.constant 5.000000e-01 : f32
    %296 = vector.broadcast %cst_107 : f32 to vector<8x128xf32>
    %297 = arith.addf %295, %296 : vector<8x128xf32>
    %298 = vector.extract_strided_slice %289 {offsets = [0, 128], sizes = [8, 128], strides = [1, 1]} : vector<8x512xf32> to vector<8x128xf32>
    %cst_108 = arith.constant 5.000000e-01 : f32
    %299 = vector.broadcast %cst_108 : f32 to vector<8x128xf32>
    %300 = arith.mulf %299, %298 : vector<8x128xf32>
    %301 = math.tanh %300 : vector<8x128xf32>
    %cst_109 = arith.constant 5.000000e-01 : f32
    %302 = vector.broadcast %cst_109 : f32 to vector<8x128xf32>
    %303 = arith.mulf %302, %301 : vector<8x128xf32>
    %cst_110 = arith.constant 5.000000e-01 : f32
    %304 = vector.broadcast %cst_110 : f32 to vector<8x128xf32>
    %305 = arith.addf %303, %304 : vector<8x128xf32>
    %306 = vector.extract_strided_slice %289 {offsets = [0, 256], sizes = [8, 128], strides = [1, 1]} : vector<8x512xf32> to vector<8x128xf32>
    %307 = math.tanh %306 : vector<8x128xf32>
    %308 = vector.extract_strided_slice %289 {offsets = [0, 384], sizes = [8, 128], strides = [1, 1]} : vector<8x512xf32> to vector<8x128xf32>
    %cst_111 = arith.constant 5.000000e-01 : f32
    %309 = vector.broadcast %cst_111 : f32 to vector<8x128xf32>
    %310 = arith.mulf %309, %308 : vector<8x128xf32>
    %311 = math.tanh %310 : vector<8x128xf32>
    %cst_112 = arith.constant 5.000000e-01 : f32
    %312 = vector.broadcast %cst_112 : f32 to vector<8x128xf32>
    %313 = arith.mulf %312, %311 : vector<8x128xf32>
    %cst_113 = arith.constant 5.000000e-01 : f32
    %314 = vector.broadcast %cst_113 : f32 to vector<8x128xf32>
    %315 = arith.addf %313, %314 : vector<8x128xf32>
    %316 = arith.mulf %305, %279 : vector<8x128xf32>
    %317 = arith.mulf %297, %307 : vector<8x128xf32>
    %318 = arith.addf %316, %317 : vector<8x128xf32>
    %319 = math.tanh %318 : vector<8x128xf32>
    %320 = arith.mulf %315, %319 : vector<8x128xf32>
    %321 = arith.index_cast %285 : i32 to index
    %c0_114 = arith.constant 0 : index
    %322 = vector.load %arg12[%321, %c0_114] : memref<64x128xf32, #tpu.memory_space<vmem>>, vector<8x128xf32>
    tpu.vector_store %arg12[%321, %c0_114], %320 {strides = array<i32>} : memref<64x128xf32, #tpu.memory_space<vmem>>, vector<8x128xf32>,
    %c8_i32_115 = arith.constant 8 : i32
    %c0_116 = arith.constant 0 : index
    %c0_117 = arith.constant 0 : index
    %323 = vector.load %arg12[%c0_116, %c0_117] : memref<64x128xf32, #tpu.memory_space<vmem>>, vector<64x128xf32>
    %c0_118 = arith.constant 0 : index
    %c0_119 = arith.constant 0 : index
    %324 = vector.load %arg5[%c0_118, %c0_119] : memref<128x512xf32, #tpu.memory_space<vmem>>, vector<128x512xf32>
    %cst_120 = arith.constant dense<0.000000e+00> : vector<64x512xf32>
    %325 = tpu.matmul %323, %324, %cst_120 {dimension_numbers = #tpu.dot_dimension_numbers<[1], [0], [0], [1], [0, 0, 1, 1], [], []>} : vector<64x128xf32>, vector<128x512xf32>, vector<64x512xf32> -> vector<64x512xf32>
    %c0_121 = arith.constant 0 : index
    %c0_122 = arith.constant 0 : index
    %326 = vector.load %arg7[%c0_121, %c0_122] : memref<1x512xf32, #tpu.memory_space<vmem>>, vector<1x512xf32>
    %327 = vector.broadcast %326 : vector<1x512xf32> to vector<64x512xf32>
    %328 = arith.addf %325, %327 : vector<64x512xf32>
    %c0_123 = arith.constant 0 : index
    %c0_124 = arith.constant 0 : index
    %329 = vector.load %arg11[%c0_123, %c0_124] : memref<64x512xf32, #tpu.memory_space<vmem>>, vector<64x512xf32>
    tpu.vector_store %arg11[%c0_123, %c0_124], %328 {strides = array<i32>} : memref<64x512xf32, #tpu.memory_space<vmem>>, vector<64x512xf32>,
    %c0_125 = arith.constant 0 : index
    %c0_126 = arith.constant 0 : index
    %330 = vector.load %arg6[%c0_125, %c0_126] : memref<128x512xf32, #tpu.memory_space<vmem>>, vector<128x512xf32>
    %cst_127 = arith.constant 0.000000e+00 : f32
    %331 = vector.broadcast %cst_127 : f32 to vector<8x128xf32>
    %cst_128 = arith.constant 0.000000e+00 : f32
    %332 = vector.broadcast %cst_128 : f32 to vector<8x128xf32>
    %c0_i32_129 = arith.constant 0 : i32
    %c8_i32_130 = arith.constant 8 : i32
    %333 = arith.muli %c0_i32_129, %c8_i32_130 : i32
    %334 = tpu.assume_multiple %333, 8 : i32
    %335 = arith.index_cast %334 : i32 to index
    %c0_131 = arith.constant 0 : index
    %336 = vector.load %arg11[%335, %c0_131] : memref<64x512xf32, #tpu.memory_space<vmem>>, vector<8x512xf32>
    %cst_132 = arith.constant dense<0.000000e+00> : vector<8x512xf32>
    %337 = tpu.matmul %331, %330, %cst_132 {dimension_numbers = #tpu.dot_dimension_numbers<[1], [0], [0], [1], [0, 0, 1, 1], [], []>} : vector<8x128xf32>, vector<128x512xf32>, vector<8x512xf32> -> vector<8x512xf32>
    %338 = arith.addf %336, %337 : vector<8x512xf32>
    %339 = vector.extract_strided_slice %338 {offsets = [0, 0], sizes = [8, 128], strides = [1, 1]} : vector<8x512xf32> to vector<8x128xf32>
    %cst_133 = arith.constant 5.000000e-01 : f32
    %340 = vector.broadcast %cst_133 : f32 to vector<8x128xf32>
    %341 = arith.mulf %340, %339 : vector<8x128xf32>
    %342 = math.tanh %341 : vector<8x128xf32>
    %cst_134 = arith.constant 5.000000e-01 : f32
    %343 = vector.broadcast %cst_134 : f32 to vector<8x128xf32>
    %344 = arith.mulf %343, %342 : vector<8x128xf32>
    %cst_135 = arith.constant 5.000000e-01 : f32
    %345 = vector.broadcast %cst_135 : f32 to vector<8x128xf32>
    %346 = arith.addf %344, %345 : vector<8x128xf32>
    %347 = vector.extract_strided_slice %338 {offsets = [0, 128], sizes = [8, 128], strides = [1, 1]} : vector<8x512xf32> to vector<8x128xf32>
    %cst_136 = arith.constant 5.000000e-01 : f32
    %348 = vector.broadcast %cst_136 : f32 to vector<8x128xf32>
    %349 = arith.mulf %348, %347 : vector<8x128xf32>
    %350 = math.tanh %349 : vector<8x128xf32>
    %cst_137 = arith.constant 5.000000e-01 : f32
    %351 = vector.broadcast %cst_137 : f32 to vector<8x128xf32>
    %352 = arith.mulf %351, %350 : vector<8x128xf32>
    %cst_138 = arith.constant 5.000000e-01 : f32
    %353 = vector.broadcast %cst_138 : f32 to vector<8x128xf32>
    %354 = arith.addf %352, %353 : vector<8x128xf32>
    %355 = vector.extract_strided_slice %338 {offsets = [0, 256], sizes = [8, 128], strides = [1, 1]} : vector<8x512xf32> to vector<8x128xf32>
    %356 = math.tanh %355 : vector<8x128xf32>
    %357 = vector.extract_strided_slice %338 {offsets = [0, 384], sizes = [8, 128], strides = [1, 1]} : vector<8x512xf32> to vector<8x128xf32>
    %cst_139 = arith.constant 5.000000e-01 : f32
    %358 = vector.broadcast %cst_139 : f32 to vector<8x128xf32>
    %359 = arith.mulf %358, %357 : vector<8x128xf32>
    %360 = math.tanh %359 : vector<8x128xf32>
    %cst_140 = arith.constant 5.000000e-01 : f32
    %361 = vector.broadcast %cst_140 : f32 to vector<8x128xf32>
    %362 = arith.mulf %361, %360 : vector<8x128xf32>
    %cst_141 = arith.constant 5.000000e-01 : f32
    %363 = vector.broadcast %cst_141 : f32 to vector<8x128xf32>
    %364 = arith.addf %362, %363 : vector<8x128xf32>
    %365 = arith.mulf %354, %332 : vector<8x128xf32>
    %366 = arith.mulf %346, %356 : vector<8x128xf32>
    %367 = arith.addf %365, %366 : vector<8x128xf32>
    %368 = math.tanh %367 : vector<8x128xf32>
    %369 = arith.mulf %364, %368 : vector<8x128xf32>
    %370 = arith.index_cast %334 : i32 to index
    %c0_142 = arith.constant 0 : index
    %371 = vector.load %arg12[%370, %c0_142] : memref<64x128xf32, #tpu.memory_space<vmem>>, vector<8x128xf32>
    tpu.vector_store %arg12[%370, %c0_142], %369 {strides = array<i32>} : memref<64x128xf32, #tpu.memory_space<vmem>>, vector<8x128xf32>,
    %c1_i32_143 = arith.constant 1 : i32
    %c8_i32_144 = arith.constant 8 : i32
    %372 = arith.muli %c1_i32_143, %c8_i32_144 : i32
    %373 = tpu.assume_multiple %372, 8 : i32
    %374 = arith.index_cast %373 : i32 to index
    %c0_145 = arith.constant 0 : index
    %375 = vector.load %arg11[%374, %c0_145] : memref<64x512xf32, #tpu.memory_space<vmem>>, vector<8x512xf32>
    %cst_146 = arith.constant dense<0.000000e+00> : vector<8x512xf32>
    %376 = tpu.matmul %369, %330, %cst_146 {dimension_numbers = #tpu.dot_dimension_numbers<[1], [0], [0], [1], [0, 0, 1, 1], [], []>} : vector<8x128xf32>, vector<128x512xf32>, vector<8x512xf32> -> vector<8x512xf32>
    %377 = arith.addf %375, %376 : vector<8x512xf32>
    %378 = vector.extract_strided_slice %377 {offsets = [0, 0], sizes = [8, 128], strides = [1, 1]} : vector<8x512xf32> to vector<8x128xf32>
    %cst_147 = arith.constant 5.000000e-01 : f32
    %379 = vector.broadcast %cst_147 : f32 to vector<8x128xf32>
    %380 = arith.mulf %379, %378 : vector<8x128xf32>
    %381 = math.tanh %380 : vector<8x128xf32>
    %cst_148 = arith.constant 5.000000e-01 : f32
    %382 = vector.broadcast %cst_148 : f32 to vector<8x128xf32>
    %383 = arith.mulf %382, %381 : vector<8x128xf32>
    %cst_149 = arith.constant 5.000000e-01 : f32
    %384 = vector.broadcast %cst_149 : f32 to vector<8x128xf32>
    %385 = arith.addf %383, %384 : vector<8x128xf32>
    %386 = vector.extract_strided_slice %377 {offsets = [0, 128], sizes = [8, 128], strides = [1, 1]} : vector<8x512xf32> to vector<8x128xf32>
    %cst_150 = arith.constant 5.000000e-01 : f32
    %387 = vector.broadcast %cst_150 : f32 to vector<8x128xf32>
    %388 = arith.mulf %387, %386 : vector<8x128xf32>
    %389 = math.tanh %388 : vector<8x128xf32>
    %cst_151 = arith.constant 5.000000e-01 : f32
    %390 = vector.broadcast %cst_151 : f32 to vector<8x128xf32>
    %391 = arith.mulf %390, %389 : vector<8x128xf32>
    %cst_152 = arith.constant 5.000000e-01 : f32
    %392 = vector.broadcast %cst_152 : f32 to vector<8x128xf32>
    %393 = arith.addf %391, %392 : vector<8x128xf32>
    %394 = vector.extract_strided_slice %377 {offsets = [0, 256], sizes = [8, 128], strides = [1, 1]} : vector<8x512xf32> to vector<8x128xf32>
    %395 = math.tanh %394 : vector<8x128xf32>
    %396 = vector.extract_strided_slice %377 {offsets = [0, 384], sizes = [8, 128], strides = [1, 1]} : vector<8x512xf32> to vector<8x128xf32>
    %cst_153 = arith.constant 5.000000e-01 : f32
    %397 = vector.broadcast %cst_153 : f32 to vector<8x128xf32>
    %398 = arith.mulf %397, %396 : vector<8x128xf32>
    %399 = math.tanh %398 : vector<8x128xf32>
    %cst_154 = arith.constant 5.000000e-01 : f32
    %400 = vector.broadcast %cst_154 : f32 to vector<8x128xf32>
    %401 = arith.mulf %400, %399 : vector<8x128xf32>
    %cst_155 = arith.constant 5.000000e-01 : f32
    %402 = vector.broadcast %cst_155 : f32 to vector<8x128xf32>
    %403 = arith.addf %401, %402 : vector<8x128xf32>
    %404 = arith.mulf %393, %367 : vector<8x128xf32>
    %405 = arith.mulf %385, %395 : vector<8x128xf32>
    %406 = arith.addf %404, %405 : vector<8x128xf32>
    %407 = math.tanh %406 : vector<8x128xf32>
    %408 = arith.mulf %403, %407 : vector<8x128xf32>
    %409 = arith.index_cast %373 : i32 to index
    %c0_156 = arith.constant 0 : index
    %410 = vector.load %arg12[%409, %c0_156] : memref<64x128xf32, #tpu.memory_space<vmem>>, vector<8x128xf32>
    tpu.vector_store %arg12[%409, %c0_156], %408 {strides = array<i32>} : memref<64x128xf32, #tpu.memory_space<vmem>>, vector<8x128xf32>,
    %c2_i32_157 = arith.constant 2 : i32
    %c8_i32_158 = arith.constant 8 : i32
    %411 = arith.muli %c2_i32_157, %c8_i32_158 : i32
    %412 = tpu.assume_multiple %411, 8 : i32
    %413 = arith.index_cast %412 : i32 to index
    %c0_159 = arith.constant 0 : index
    %414 = vector.load %arg11[%413, %c0_159] : memref<64x512xf32, #tpu.memory_space<vmem>>, vector<8x512xf32>
    %cst_160 = arith.constant dense<0.000000e+00> : vector<8x512xf32>
    %415 = tpu.matmul %408, %330, %cst_160 {dimension_numbers = #tpu.dot_dimension_numbers<[1], [0], [0], [1], [0, 0, 1, 1], [], []>} : vector<8x128xf32>, vector<128x512xf32>, vector<8x512xf32> -> vector<8x512xf32>
    %416 = arith.addf %414, %415 : vector<8x512xf32>
    %417 = vector.extract_strided_slice %416 {offsets = [0, 0], sizes = [8, 128], strides = [1, 1]} : vector<8x512xf32> to vector<8x128xf32>
    %cst_161 = arith.constant 5.000000e-01 : f32
    %418 = vector.broadcast %cst_161 : f32 to vector<8x128xf32>
    %419 = arith.mulf %418, %417 : vector<8x128xf32>
    %420 = math.tanh %419 : vector<8x128xf32>
    %cst_162 = arith.constant 5.000000e-01 : f32
    %421 = vector.broadcast %cst_162 : f32 to vector<8x128xf32>
    %422 = arith.mulf %421, %420 : vector<8x128xf32>
    %cst_163 = arith.constant 5.000000e-01 : f32
    %423 = vector.broadcast %cst_163 : f32 to vector<8x128xf32>
    %424 = arith.addf %422, %423 : vector<8x128xf32>
    %425 = vector.extract_strided_slice %416 {offsets = [0, 128], sizes = [8, 128], strides = [1, 1]} : vector<8x512xf32> to vector<8x128xf32>
    %cst_164 = arith.constant 5.000000e-01 : f32
    %426 = vector.broadcast %cst_164 : f32 to vector<8x128xf32>
    %427 = arith.mulf %426, %425 : vector<8x128xf32>
    %428 = math.tanh %427 : vector<8x128xf32>
    %cst_165 = arith.constant 5.000000e-01 : f32
    %429 = vector.broadcast %cst_165 : f32 to vector<8x128xf32>
    %430 = arith.mulf %429, %428 : vector<8x128xf32>
    %cst_166 = arith.constant 5.000000e-01 : f32
    %431 = vector.broadcast %cst_166 : f32 to vector<8x128xf32>
    %432 = arith.addf %430, %431 : vector<8x128xf32>
    %433 = vector.extract_strided_slice %416 {offsets = [0, 256], sizes = [8, 128], strides = [1, 1]} : vector<8x512xf32> to vector<8x128xf32>
    %434 = math.tanh %433 : vector<8x128xf32>
    %435 = vector.extract_strided_slice %416 {offsets = [0, 384], sizes = [8, 128], strides = [1, 1]} : vector<8x512xf32> to vector<8x128xf32>
    %cst_167 = arith.constant 5.000000e-01 : f32
    %436 = vector.broadcast %cst_167 : f32 to vector<8x128xf32>
    %437 = arith.mulf %436, %435 : vector<8x128xf32>
    %438 = math.tanh %437 : vector<8x128xf32>
    %cst_168 = arith.constant 5.000000e-01 : f32
    %439 = vector.broadcast %cst_168 : f32 to vector<8x128xf32>
    %440 = arith.mulf %439, %438 : vector<8x128xf32>
    %cst_169 = arith.constant 5.000000e-01 : f32
    %441 = vector.broadcast %cst_169 : f32 to vector<8x128xf32>
    %442 = arith.addf %440, %441 : vector<8x128xf32>
    %443 = arith.mulf %432, %406 : vector<8x128xf32>
    %444 = arith.mulf %424, %434 : vector<8x128xf32>
    %445 = arith.addf %443, %444 : vector<8x128xf32>
    %446 = math.tanh %445 : vector<8x128xf32>
    %447 = arith.mulf %442, %446 : vector<8x128xf32>
    %448 = arith.index_cast %412 : i32 to index
    %c0_170 = arith.constant 0 : index
    %449 = vector.load %arg12[%448, %c0_170] : memref<64x128xf32, #tpu.memory_space<vmem>>, vector<8x128xf32>
    tpu.vector_store %arg12[%448, %c0_170], %447 {strides = array<i32>} : memref<64x128xf32, #tpu.memory_space<vmem>>, vector<8x128xf32>,
    %c3_i32_171 = arith.constant 3 : i32
    %c8_i32_172 = arith.constant 8 : i32
    %450 = arith.muli %c3_i32_171, %c8_i32_172 : i32
    %451 = tpu.assume_multiple %450, 8 : i32
    %452 = arith.index_cast %451 : i32 to index
    %c0_173 = arith.constant 0 : index
    %453 = vector.load %arg11[%452, %c0_173] : memref<64x512xf32, #tpu.memory_space<vmem>>, vector<8x512xf32>
    %cst_174 = arith.constant dense<0.000000e+00> : vector<8x512xf32>
    %454 = tpu.matmul %447, %330, %cst_174 {dimension_numbers = #tpu.dot_dimension_numbers<[1], [0], [0], [1], [0, 0, 1, 1], [], []>} : vector<8x128xf32>, vector<128x512xf32>, vector<8x512xf32> -> vector<8x512xf32>
    %455 = arith.addf %453, %454 : vector<8x512xf32>
    %456 = vector.extract_strided_slice %455 {offsets = [0, 0], sizes = [8, 128], strides = [1, 1]} : vector<8x512xf32> to vector<8x128xf32>
    %cst_175 = arith.constant 5.000000e-01 : f32
    %457 = vector.broadcast %cst_175 : f32 to vector<8x128xf32>
    %458 = arith.mulf %457, %456 : vector<8x128xf32>
    %459 = math.tanh %458 : vector<8x128xf32>
    %cst_176 = arith.constant 5.000000e-01 : f32
    %460 = vector.broadcast %cst_176 : f32 to vector<8x128xf32>
    %461 = arith.mulf %460, %459 : vector<8x128xf32>
    %cst_177 = arith.constant 5.000000e-01 : f32
    %462 = vector.broadcast %cst_177 : f32 to vector<8x128xf32>
    %463 = arith.addf %461, %462 : vector<8x128xf32>
    %464 = vector.extract_strided_slice %455 {offsets = [0, 128], sizes = [8, 128], strides = [1, 1]} : vector<8x512xf32> to vector<8x128xf32>
    %cst_178 = arith.constant 5.000000e-01 : f32
    %465 = vector.broadcast %cst_178 : f32 to vector<8x128xf32>
    %466 = arith.mulf %465, %464 : vector<8x128xf32>
    %467 = math.tanh %466 : vector<8x128xf32>
    %cst_179 = arith.constant 5.000000e-01 : f32
    %468 = vector.broadcast %cst_179 : f32 to vector<8x128xf32>
    %469 = arith.mulf %468, %467 : vector<8x128xf32>
    %cst_180 = arith.constant 5.000000e-01 : f32
    %470 = vector.broadcast %cst_180 : f32 to vector<8x128xf32>
    %471 = arith.addf %469, %470 : vector<8x128xf32>
    %472 = vector.extract_strided_slice %455 {offsets = [0, 256], sizes = [8, 128], strides = [1, 1]} : vector<8x512xf32> to vector<8x128xf32>
    %473 = math.tanh %472 : vector<8x128xf32>
    %474 = vector.extract_strided_slice %455 {offsets = [0, 384], sizes = [8, 128], strides = [1, 1]} : vector<8x512xf32> to vector<8x128xf32>
    %cst_181 = arith.constant 5.000000e-01 : f32
    %475 = vector.broadcast %cst_181 : f32 to vector<8x128xf32>
    %476 = arith.mulf %475, %474 : vector<8x128xf32>
    %477 = math.tanh %476 : vector<8x128xf32>
    %cst_182 = arith.constant 5.000000e-01 : f32
    %478 = vector.broadcast %cst_182 : f32 to vector<8x128xf32>
    %479 = arith.mulf %478, %477 : vector<8x128xf32>
    %cst_183 = arith.constant 5.000000e-01 : f32
    %480 = vector.broadcast %cst_183 : f32 to vector<8x128xf32>
    %481 = arith.addf %479, %480 : vector<8x128xf32>
    %482 = arith.mulf %471, %445 : vector<8x128xf32>
    %483 = arith.mulf %463, %473 : vector<8x128xf32>
    %484 = arith.addf %482, %483 : vector<8x128xf32>
    %485 = math.tanh %484 : vector<8x128xf32>
    %486 = arith.mulf %481, %485 : vector<8x128xf32>
    %487 = arith.index_cast %451 : i32 to index
    %c0_184 = arith.constant 0 : index
    %488 = vector.load %arg12[%487, %c0_184] : memref<64x128xf32, #tpu.memory_space<vmem>>, vector<8x128xf32>
    tpu.vector_store %arg12[%487, %c0_184], %486 {strides = array<i32>} : memref<64x128xf32, #tpu.memory_space<vmem>>, vector<8x128xf32>,
    %c4_i32_185 = arith.constant 4 : i32
    %c8_i32_186 = arith.constant 8 : i32
    %489 = arith.muli %c4_i32_185, %c8_i32_186 : i32
    %490 = tpu.assume_multiple %489, 8 : i32
    %491 = arith.index_cast %490 : i32 to index
    %c0_187 = arith.constant 0 : index
    %492 = vector.load %arg11[%491, %c0_187] : memref<64x512xf32, #tpu.memory_space<vmem>>, vector<8x512xf32>
    %cst_188 = arith.constant dense<0.000000e+00> : vector<8x512xf32>
    %493 = tpu.matmul %486, %330, %cst_188 {dimension_numbers = #tpu.dot_dimension_numbers<[1], [0], [0], [1], [0, 0, 1, 1], [], []>} : vector<8x128xf32>, vector<128x512xf32>, vector<8x512xf32> -> vector<8x512xf32>
    %494 = arith.addf %492, %493 : vector<8x512xf32>
    %495 = vector.extract_strided_slice %494 {offsets = [0, 0], sizes = [8, 128], strides = [1, 1]} : vector<8x512xf32> to vector<8x128xf32>
    %cst_189 = arith.constant 5.000000e-01 : f32
    %496 = vector.broadcast %cst_189 : f32 to vector<8x128xf32>
    %497 = arith.mulf %496, %495 : vector<8x128xf32>
    %498 = math.tanh %497 : vector<8x128xf32>
    %cst_190 = arith.constant 5.000000e-01 : f32
    %499 = vector.broadcast %cst_190 : f32 to vector<8x128xf32>
    %500 = arith.mulf %499, %498 : vector<8x128xf32>
    %cst_191 = arith.constant 5.000000e-01 : f32
    %501 = vector.broadcast %cst_191 : f32 to vector<8x128xf32>
    %502 = arith.addf %500, %501 : vector<8x128xf32>
    %503 = vector.extract_strided_slice %494 {offsets = [0, 128], sizes = [8, 128], strides = [1, 1]} : vector<8x512xf32> to vector<8x128xf32>
    %cst_192 = arith.constant 5.000000e-01 : f32
    %504 = vector.broadcast %cst_192 : f32 to vector<8x128xf32>
    %505 = arith.mulf %504, %503 : vector<8x128xf32>
    %506 = math.tanh %505 : vector<8x128xf32>
    %cst_193 = arith.constant 5.000000e-01 : f32
    %507 = vector.broadcast %cst_193 : f32 to vector<8x128xf32>
    %508 = arith.mulf %507, %506 : vector<8x128xf32>
    %cst_194 = arith.constant 5.000000e-01 : f32
    %509 = vector.broadcast %cst_194 : f32 to vector<8x128xf32>
    %510 = arith.addf %508, %509 : vector<8x128xf32>
    %511 = vector.extract_strided_slice %494 {offsets = [0, 256], sizes = [8, 128], strides = [1, 1]} : vector<8x512xf32> to vector<8x128xf32>
    %512 = math.tanh %511 : vector<8x128xf32>
    %513 = vector.extract_strided_slice %494 {offsets = [0, 384], sizes = [8, 128], strides = [1, 1]} : vector<8x512xf32> to vector<8x128xf32>
    %cst_195 = arith.constant 5.000000e-01 : f32
    %514 = vector.broadcast %cst_195 : f32 to vector<8x128xf32>
    %515 = arith.mulf %514, %513 : vector<8x128xf32>
    %516 = math.tanh %515 : vector<8x128xf32>
    %cst_196 = arith.constant 5.000000e-01 : f32
    %517 = vector.broadcast %cst_196 : f32 to vector<8x128xf32>
    %518 = arith.mulf %517, %516 : vector<8x128xf32>
    %cst_197 = arith.constant 5.000000e-01 : f32
    %519 = vector.broadcast %cst_197 : f32 to vector<8x128xf32>
    %520 = arith.addf %518, %519 : vector<8x128xf32>
    %521 = arith.mulf %510, %484 : vector<8x128xf32>
    %522 = arith.mulf %502, %512 : vector<8x128xf32>
    %523 = arith.addf %521, %522 : vector<8x128xf32>
    %524 = math.tanh %523 : vector<8x128xf32>
    %525 = arith.mulf %520, %524 : vector<8x128xf32>
    %526 = arith.index_cast %490 : i32 to index
    %c0_198 = arith.constant 0 : index
    %527 = vector.load %arg12[%526, %c0_198] : memref<64x128xf32, #tpu.memory_space<vmem>>, vector<8x128xf32>
    tpu.vector_store %arg12[%526, %c0_198], %525 {strides = array<i32>} : memref<64x128xf32, #tpu.memory_space<vmem>>, vector<8x128xf32>,
    %c5_i32_199 = arith.constant 5 : i32
    %c8_i32_200 = arith.constant 8 : i32
    %528 = arith.muli %c5_i32_199, %c8_i32_200 : i32
    %529 = tpu.assume_multiple %528, 8 : i32
    %530 = arith.index_cast %529 : i32 to index
    %c0_201 = arith.constant 0 : index
    %531 = vector.load %arg11[%530, %c0_201] : memref<64x512xf32, #tpu.memory_space<vmem>>, vector<8x512xf32>
    %cst_202 = arith.constant dense<0.000000e+00> : vector<8x512xf32>
    %532 = tpu.matmul %525, %330, %cst_202 {dimension_numbers = #tpu.dot_dimension_numbers<[1], [0], [0], [1], [0, 0, 1, 1], [], []>} : vector<8x128xf32>, vector<128x512xf32>, vector<8x512xf32> -> vector<8x512xf32>
    %533 = arith.addf %531, %532 : vector<8x512xf32>
    %534 = vector.extract_strided_slice %533 {offsets = [0, 0], sizes = [8, 128], strides = [1, 1]} : vector<8x512xf32> to vector<8x128xf32>
    %cst_203 = arith.constant 5.000000e-01 : f32
    %535 = vector.broadcast %cst_203 : f32 to vector<8x128xf32>
    %536 = arith.mulf %535, %534 : vector<8x128xf32>
    %537 = math.tanh %536 : vector<8x128xf32>
    %cst_204 = arith.constant 5.000000e-01 : f32
    %538 = vector.broadcast %cst_204 : f32 to vector<8x128xf32>
    %539 = arith.mulf %538, %537 : vector<8x128xf32>
    %cst_205 = arith.constant 5.000000e-01 : f32
    %540 = vector.broadcast %cst_205 : f32 to vector<8x128xf32>
    %541 = arith.addf %539, %540 : vector<8x128xf32>
    %542 = vector.extract_strided_slice %533 {offsets = [0, 128], sizes = [8, 128], strides = [1, 1]} : vector<8x512xf32> to vector<8x128xf32>
    %cst_206 = arith.constant 5.000000e-01 : f32
    %543 = vector.broadcast %cst_206 : f32 to vector<8x128xf32>
    %544 = arith.mulf %543, %542 : vector<8x128xf32>
    %545 = math.tanh %544 : vector<8x128xf32>
    %cst_207 = arith.constant 5.000000e-01 : f32
    %546 = vector.broadcast %cst_207 : f32 to vector<8x128xf32>
    %547 = arith.mulf %546, %545 : vector<8x128xf32>
    %cst_208 = arith.constant 5.000000e-01 : f32
    %548 = vector.broadcast %cst_208 : f32 to vector<8x128xf32>
    %549 = arith.addf %547, %548 : vector<8x128xf32>
    %550 = vector.extract_strided_slice %533 {offsets = [0, 256], sizes = [8, 128], strides = [1, 1]} : vector<8x512xf32> to vector<8x128xf32>
    %551 = math.tanh %550 : vector<8x128xf32>
    %552 = vector.extract_strided_slice %533 {offsets = [0, 384], sizes = [8, 128], strides = [1, 1]} : vector<8x512xf32> to vector<8x128xf32>
    %cst_209 = arith.constant 5.000000e-01 : f32
    %553 = vector.broadcast %cst_209 : f32 to vector<8x128xf32>
    %554 = arith.mulf %553, %552 : vector<8x128xf32>
    %555 = math.tanh %554 : vector<8x128xf32>
    %cst_210 = arith.constant 5.000000e-01 : f32
    %556 = vector.broadcast %cst_210 : f32 to vector<8x128xf32>
    %557 = arith.mulf %556, %555 : vector<8x128xf32>
    %cst_211 = arith.constant 5.000000e-01 : f32
    %558 = vector.broadcast %cst_211 : f32 to vector<8x128xf32>
    %559 = arith.addf %557, %558 : vector<8x128xf32>
    %560 = arith.mulf %549, %523 : vector<8x128xf32>
    %561 = arith.mulf %541, %551 : vector<8x128xf32>
    %562 = arith.addf %560, %561 : vector<8x128xf32>
    %563 = math.tanh %562 : vector<8x128xf32>
    %564 = arith.mulf %559, %563 : vector<8x128xf32>
    %565 = arith.index_cast %529 : i32 to index
    %c0_212 = arith.constant 0 : index
    %566 = vector.load %arg12[%565, %c0_212] : memref<64x128xf32, #tpu.memory_space<vmem>>, vector<8x128xf32>
    tpu.vector_store %arg12[%565, %c0_212], %564 {strides = array<i32>} : memref<64x128xf32, #tpu.memory_space<vmem>>, vector<8x128xf32>,
    %c6_i32_213 = arith.constant 6 : i32
    %c8_i32_214 = arith.constant 8 : i32
    %567 = arith.muli %c6_i32_213, %c8_i32_214 : i32
    %568 = tpu.assume_multiple %567, 8 : i32
    %569 = arith.index_cast %568 : i32 to index
    %c0_215 = arith.constant 0 : index
    %570 = vector.load %arg11[%569, %c0_215] : memref<64x512xf32, #tpu.memory_space<vmem>>, vector<8x512xf32>
    %cst_216 = arith.constant dense<0.000000e+00> : vector<8x512xf32>
    %571 = tpu.matmul %564, %330, %cst_216 {dimension_numbers = #tpu.dot_dimension_numbers<[1], [0], [0], [1], [0, 0, 1, 1], [], []>} : vector<8x128xf32>, vector<128x512xf32>, vector<8x512xf32> -> vector<8x512xf32>
    %572 = arith.addf %570, %571 : vector<8x512xf32>
    %573 = vector.extract_strided_slice %572 {offsets = [0, 0], sizes = [8, 128], strides = [1, 1]} : vector<8x512xf32> to vector<8x128xf32>
    %cst_217 = arith.constant 5.000000e-01 : f32
    %574 = vector.broadcast %cst_217 : f32 to vector<8x128xf32>
    %575 = arith.mulf %574, %573 : vector<8x128xf32>
    %576 = math.tanh %575 : vector<8x128xf32>
    %cst_218 = arith.constant 5.000000e-01 : f32
    %577 = vector.broadcast %cst_218 : f32 to vector<8x128xf32>
    %578 = arith.mulf %577, %576 : vector<8x128xf32>
    %cst_219 = arith.constant 5.000000e-01 : f32
    %579 = vector.broadcast %cst_219 : f32 to vector<8x128xf32>
    %580 = arith.addf %578, %579 : vector<8x128xf32>
    %581 = vector.extract_strided_slice %572 {offsets = [0, 128], sizes = [8, 128], strides = [1, 1]} : vector<8x512xf32> to vector<8x128xf32>
    %cst_220 = arith.constant 5.000000e-01 : f32
    %582 = vector.broadcast %cst_220 : f32 to vector<8x128xf32>
    %583 = arith.mulf %582, %581 : vector<8x128xf32>
    %584 = math.tanh %583 : vector<8x128xf32>
    %cst_221 = arith.constant 5.000000e-01 : f32
    %585 = vector.broadcast %cst_221 : f32 to vector<8x128xf32>
    %586 = arith.mulf %585, %584 : vector<8x128xf32>
    %cst_222 = arith.constant 5.000000e-01 : f32
    %587 = vector.broadcast %cst_222 : f32 to vector<8x128xf32>
    %588 = arith.addf %586, %587 : vector<8x128xf32>
    %589 = vector.extract_strided_slice %572 {offsets = [0, 256], sizes = [8, 128], strides = [1, 1]} : vector<8x512xf32> to vector<8x128xf32>
    %590 = math.tanh %589 : vector<8x128xf32>
    %591 = vector.extract_strided_slice %572 {offsets = [0, 384], sizes = [8, 128], strides = [1, 1]} : vector<8x512xf32> to vector<8x128xf32>
    %cst_223 = arith.constant 5.000000e-01 : f32
    %592 = vector.broadcast %cst_223 : f32 to vector<8x128xf32>
    %593 = arith.mulf %592, %591 : vector<8x128xf32>
    %594 = math.tanh %593 : vector<8x128xf32>
    %cst_224 = arith.constant 5.000000e-01 : f32
    %595 = vector.broadcast %cst_224 : f32 to vector<8x128xf32>
    %596 = arith.mulf %595, %594 : vector<8x128xf32>
    %cst_225 = arith.constant 5.000000e-01 : f32
    %597 = vector.broadcast %cst_225 : f32 to vector<8x128xf32>
    %598 = arith.addf %596, %597 : vector<8x128xf32>
    %599 = arith.mulf %588, %562 : vector<8x128xf32>
    %600 = arith.mulf %580, %590 : vector<8x128xf32>
    %601 = arith.addf %599, %600 : vector<8x128xf32>
    %602 = math.tanh %601 : vector<8x128xf32>
    %603 = arith.mulf %598, %602 : vector<8x128xf32>
    %604 = arith.index_cast %568 : i32 to index
    %c0_226 = arith.constant 0 : index
    %605 = vector.load %arg12[%604, %c0_226] : memref<64x128xf32, #tpu.memory_space<vmem>>, vector<8x128xf32>
    tpu.vector_store %arg12[%604, %c0_226], %603 {strides = array<i32>} : memref<64x128xf32, #tpu.memory_space<vmem>>, vector<8x128xf32>,
    %c7_i32_227 = arith.constant 7 : i32
    %c8_i32_228 = arith.constant 8 : i32
    %606 = arith.muli %c7_i32_227, %c8_i32_228 : i32
    %607 = tpu.assume_multiple %606, 8 : i32
    %608 = arith.index_cast %607 : i32 to index
    %c0_229 = arith.constant 0 : index
    %609 = vector.load %arg11[%608, %c0_229] : memref<64x512xf32, #tpu.memory_space<vmem>>, vector<8x512xf32>
    %cst_230 = arith.constant dense<0.000000e+00> : vector<8x512xf32>
    %610 = tpu.matmul %603, %330, %cst_230 {dimension_numbers = #tpu.dot_dimension_numbers<[1], [0], [0], [1], [0, 0, 1, 1], [], []>} : vector<8x128xf32>, vector<128x512xf32>, vector<8x512xf32> -> vector<8x512xf32>
    %611 = arith.addf %609, %610 : vector<8x512xf32>
    %612 = vector.extract_strided_slice %611 {offsets = [0, 0], sizes = [8, 128], strides = [1, 1]} : vector<8x512xf32> to vector<8x128xf32>
    %cst_231 = arith.constant 5.000000e-01 : f32
    %613 = vector.broadcast %cst_231 : f32 to vector<8x128xf32>
    %614 = arith.mulf %613, %612 : vector<8x128xf32>
    %615 = math.tanh %614 : vector<8x128xf32>
    %cst_232 = arith.constant 5.000000e-01 : f32
    %616 = vector.broadcast %cst_232 : f32 to vector<8x128xf32>
    %617 = arith.mulf %616, %615 : vector<8x128xf32>
    %cst_233 = arith.constant 5.000000e-01 : f32
    %618 = vector.broadcast %cst_233 : f32 to vector<8x128xf32>
    %619 = arith.addf %617, %618 : vector<8x128xf32>
    %620 = vector.extract_strided_slice %611 {offsets = [0, 128], sizes = [8, 128], strides = [1, 1]} : vector<8x512xf32> to vector<8x128xf32>
    %cst_234 = arith.constant 5.000000e-01 : f32
    %621 = vector.broadcast %cst_234 : f32 to vector<8x128xf32>
    %622 = arith.mulf %621, %620 : vector<8x128xf32>
    %623 = math.tanh %622 : vector<8x128xf32>
    %cst_235 = arith.constant 5.000000e-01 : f32
    %624 = vector.broadcast %cst_235 : f32 to vector<8x128xf32>
    %625 = arith.mulf %624, %623 : vector<8x128xf32>
    %cst_236 = arith.constant 5.000000e-01 : f32
    %626 = vector.broadcast %cst_236 : f32 to vector<8x128xf32>
    %627 = arith.addf %625, %626 : vector<8x128xf32>
    %628 = vector.extract_strided_slice %611 {offsets = [0, 256], sizes = [8, 128], strides = [1, 1]} : vector<8x512xf32> to vector<8x128xf32>
    %629 = math.tanh %628 : vector<8x128xf32>
    %630 = vector.extract_strided_slice %611 {offsets = [0, 384], sizes = [8, 128], strides = [1, 1]} : vector<8x512xf32> to vector<8x128xf32>
    %cst_237 = arith.constant 5.000000e-01 : f32
    %631 = vector.broadcast %cst_237 : f32 to vector<8x128xf32>
    %632 = arith.mulf %631, %630 : vector<8x128xf32>
    %633 = math.tanh %632 : vector<8x128xf32>
    %cst_238 = arith.constant 5.000000e-01 : f32
    %634 = vector.broadcast %cst_238 : f32 to vector<8x128xf32>
    %635 = arith.mulf %634, %633 : vector<8x128xf32>
    %cst_239 = arith.constant 5.000000e-01 : f32
    %636 = vector.broadcast %cst_239 : f32 to vector<8x128xf32>
    %637 = arith.addf %635, %636 : vector<8x128xf32>
    %638 = arith.mulf %627, %601 : vector<8x128xf32>
    %639 = arith.mulf %619, %629 : vector<8x128xf32>
    %640 = arith.addf %638, %639 : vector<8x128xf32>
    %641 = math.tanh %640 : vector<8x128xf32>
    %642 = arith.mulf %637, %641 : vector<8x128xf32>
    %643 = arith.index_cast %607 : i32 to index
    %c0_240 = arith.constant 0 : index
    %644 = vector.load %arg12[%643, %c0_240] : memref<64x128xf32, #tpu.memory_space<vmem>>, vector<8x128xf32>
    tpu.vector_store %arg12[%643, %c0_240], %642 {strides = array<i32>} : memref<64x128xf32, #tpu.memory_space<vmem>>, vector<8x128xf32>,
    %c8_i32_241 = arith.constant 8 : i32
    %c0_242 = arith.constant 0 : index
    %c0_243 = arith.constant 0 : index
    %645 = vector.load %arg12[%c0_242, %c0_243] : memref<64x128xf32, #tpu.memory_space<vmem>>, vector<64x128xf32>
    %c0_244 = arith.constant 0 : index
    %c0_245 = arith.constant 0 : index
    %646 = vector.load %arg8[%c0_244, %c0_245] : memref<128x128xf32, #tpu.memory_space<vmem>>, vector<128x128xf32>
    %cst_246 = arith.constant dense<0.000000e+00> : vector<64x128xf32>
    %647 = tpu.matmul %645, %646, %cst_246 {dimension_numbers = #tpu.dot_dimension_numbers<[1], [0], [0], [1], [0, 0, 1, 1], [], []>} : vector<64x128xf32>, vector<128x128xf32>, vector<64x128xf32> -> vector<64x128xf32>
    %c0_247 = arith.constant 0 : index
    %c0_248 = arith.constant 0 : index
    %648 = vector.load %arg9[%c0_247, %c0_248] : memref<1x128xf32, #tpu.memory_space<vmem>>, vector<1x128xf32>
    %649 = vector.broadcast %648 : vector<1x128xf32> to vector<64x128xf32>
    %650 = arith.addf %647, %649 : vector<64x128xf32>
    %c0_249 = arith.constant 0 : index
    %c0_250 = arith.constant 0 : index
    %c0_251 = arith.constant 0 : index
    %651 = vector.load %arg10[%c0_249, %c0_250, %c0_251] : memref<1x64x128xf32, #tpu.memory_space<vmem>>, vector<1x64x128xf32>
    %652 = vector.shape_cast %651 : vector<1x64x128xf32> to vector<64x128xf32>
    %653 = vector.shape_cast %650 : vector<64x128xf32> to vector<1x64x128xf32>
    tpu.vector_store %arg10[%c0_249, %c0_250, %c0_251], %653 {strides = array<i32>} : memref<1x64x128xf32, #tpu.memory_space<vmem>>, vector<1x64x128xf32>,
    return
  }
  func.func @transform_0(%arg0: i32) -> (i32, i32, i32) {
    %c0_i32 = arith.constant 0 : i32
    %c0_i32_0 = arith.constant 0 : i32
    %c0_i32_1 = arith.constant 0 : i32
    return %arg0, %c0_i32, %c0_i32_0 : i32, i32, i32
  }
  func.func @transform_1(%arg0: i32) -> (i32, i32) {
    %c0_i32 = arith.constant 0 : i32
    %c0_i32_0 = arith.constant 0 : i32
    %c0_i32_1 = arith.constant 0 : i32
    return %c0_i32, %c0_i32_0 : i32, i32
  }
  func.func @transform_2(%arg0: i32) -> (i32, i32) {
    %c0_i32 = arith.constant 0 : i32
    %c0_i32_0 = arith.constant 0 : i32
    %c0_i32_1 = arith.constant 0 : i32
    return %c0_i32, %c0_i32_0 : i32, i32
  }
  func.func @transform_3(%arg0: i32) -> (i32, i32) {
    %c0_i32 = arith.constant 0 : i32
    %c0_i32_0 = arith.constant 0 : i32
    %c0_i32_1 = arith.constant 0 : i32
    return %c0_i32, %c0_i32_0 : i32, i32
  }
  func.func @transform_4(%arg0: i32) -> (i32, i32) {
    %c0_i32 = arith.constant 0 : i32
    %c0_i32_0 = arith.constant 0 : i32
    %c0_i32_1 = arith.constant 0 : i32
    return %c0_i32, %c0_i32_0 : i32, i32
  }
  func.func @transform_5(%arg0: i32) -> (i32, i32) {
    %c0_i32 = arith.constant 0 : i32
    %c0_i32_0 = arith.constant 0 : i32
    %c0_i32_1 = arith.constant 0 : i32
    return %c0_i32, %c0_i32_0 : i32, i32
  }
  func.func @transform_6(%arg0: i32) -> (i32, i32) {
    %c0_i32 = arith.constant 0 : i32
    %c0_i32_0 = arith.constant 0 : i32
    %c0_i32_1 = arith.constant 0 : i32
    return %c0_i32, %c0_i32_0 : i32, i32
  }
  func.func @transform_7(%arg0: i32) -> (i32, i32) {
    %c0_i32 = arith.constant 0 : i32
    %c0_i32_0 = arith.constant 0 : i32
    %c0_i32_1 = arith.constant 0 : i32
    return %c0_i32, %c0_i32_0 : i32, i32
  }
  func.func @transform_8(%arg0: i32) -> (i32, i32) {
    %c0_i32 = arith.constant 0 : i32
    %c0_i32_0 = arith.constant 0 : i32
    %c0_i32_1 = arith.constant 0 : i32
    return %c0_i32, %c0_i32_0 : i32, i32
  }
  func.func @transform_9(%arg0: i32) -> (i32, i32, i32) {
    %c0_i32 = arith.constant 0 : i32
    %c0_i32_0 = arith.constant 0 : i32
    %c0_i32_1 = arith.constant 0 : i32
    return %arg0, %c0_i32, %c0_i32_0 : i32, i32, i32
  }
}

</mosaic_0001>

<llo_original>
// kernel: lstm_model_forward.1
$region0: #{lstm_model_forward.1}
  #allocation0 [shape = 'u32[]', space=smem, size = 0x4, offset = 0x4, fixed_abs, tag = 'smem constant byte address 0x4 - core index']
  #allocation1 [shape = 'u32[144,128]{1,0:T(1,128)}', space=vmem, size = 0x12000, scoped, tag = 'internal scratch']
  #allocation2 [shape = 'f32[64,512]{1,0:T(8,128)}', space=vmem, size = 0x20000, scoped, tag = 'scratch operand']
  #allocation3 [shape = 'f32[64,128]{1,0:T(8,128)}', space=vmem, size = 0x8000, scoped, tag = 'scratch operand']
  %s0 = inlined_call_operand.vmem [shape: f32[2,64,8], index: 0, kind: input, shape index: {}]
  %s1 = inlined_call_operand.vmem [shape: f32[8,512], index: 1, kind: input, shape index: {}]
  %s2 = inlined_call_operand.vmem [shape: f32[128,512], index: 2, kind: input, shape index: {}]
  %s3 = inlined_call_operand.vmem [shape: f32[1,512], index: 3, kind: input, shape index: {}]
  %s4 = inlined_call_operand.vmem [shape: f32[128,512], index: 4, kind: input, shape index: {}]
  %s5 = inlined_call_operand.vmem [shape: f32[128,512], index: 5, kind: input, shape index: {}]
  %s6 = inlined_call_operand.vmem [shape: f32[1,512], index: 6, kind: input, shape index: {}]
  %s7 = inlined_call_operand.vmem [shape: f32[128,128], index: 7, kind: input, shape index: {}]
  %s8 = inlined_call_operand.vmem [shape: f32[1,128], index: 8, kind: input, shape index: {}]
  %s9 = inlined_call_operand.vmem [shape: f32[2,64,128], index: 9, kind: output, shape index: {}]
  %s10 = sld [smem:[#allocation0]]
  $region69: #{lstm_model_forward.1} parent=0
    _
  %s12 = ssub.s32 1, %s10
  %s13 = scalar_select 0, %s12, %s10
  loop: start=0, step=1, limit=4
  $region2: #{lstm_model_forward.1} parent=0 // loop_pre_header
    _
  $region3: #{lstm_model_forward.1} parent=0 // loop_header
    %s15 = sphi 0, %s19
    %p16 = scmp.ge.s32.totalorder %s15, 4
    %s25 = sphi 0, %s27
    %s28 = sphi 0, %s25
    %s29 = sphi 0, %s28
    %s45 = sphi 0, %s29
    %s49 = sphi 0, %s49
    %s51 = sphi 0, %s49
    %s52 = sphi 0, %s51
    %s66 = sphi 0, %s52
    %s70 = sphi 0, %s70
    %s72 = sphi 0, %s70
    %s73 = sphi 0, %s72
    %s87 = sphi 0, %s73
    %s91 = sphi 0, %s91
    %s93 = sphi 0, %s91
    %s94 = sphi 0, %s93
    %s108 = sphi 0, %s94
    %s112 = sphi 0, %s112
    %s114 = sphi 0, %s112
    %s115 = sphi 0, %s114
    %s129 = sphi 0, %s115
    %s133 = sphi 0, %s133
    %s135 = sphi 0, %s133
    %s136 = sphi 0, %s135
    %s150 = sphi 0, %s136
    %s154 = sphi 0, %s154
    %s156 = sphi 0, %s154
    %s157 = sphi 0, %s156
    %s171 = sphi 0, %s157
    %s175 = sphi 0, %s175
    %s177 = sphi 0, %s175
    %s178 = sphi 0, %s177
    %s192 = sphi 0, %s178
    %s196 = sphi 0, %s196
    %s198 = sphi 0, %s196
    %s199 = sphi 0, %s198
    %s213 = sphi 0, %s199
    %s219 = sphi 0, %s221
    %s222 = sphi 0, %s219
    %s223 = sphi 0, %s222
    %s239 = sphi 0, %s223
  $region4: #{lstm_model_forward.1} parent=0 // loop_header_branch
    %18 = sbr.rel (%p16) target = $region8
  $region5: #{lstm_model_forward.1} parent=0 // loop_body
    %s20 = ssub.s32 %s15, 1
    %s21 = ssub.s32 %s15, 2
    %s22 = sadd.s32 %s15, 1
    %s23 = ssub.s32 %s15, %s22
    %p24 = scmp.eq.s32.totalorder %s23, 0
    %s26 = sadd.s32 %s25, 1
    %s27 = scalar_select %p24, %s25, %s26
    %p30 = pneg %p24
    %p31 = scmp.eq.s32.totalorder %s15, 1
    %p32 = por %p30, %p31
    %p33 = scmp.ne.s32.totalorder %s25, %s28
    %p34 = scmp.eq.s32.totalorder %s15, 0
    %p35 = por %p33, %p34
    %p36 = scmp.ne.s32.totalorder %s25, %s28
    %p37 = scmp.eq.s32.totalorder %s20, 1
    %p38 = por %p36, %p37
    %p39 = scmp.ne.s32.totalorder %s28, %s29
    %p40 = scmp.eq.s32.totalorder %s20, 0
    %p41 = por %p39, %p40
    %p42 = scmp.ne.s32.totalorder %s28, %s29
    %p43 = scmp.eq.s32.totalorder %s21, 1
    %p44 = por %p42, %p43
    %p46 = scmp.ne.s32.totalorder %s29, %s45
    %p47 = scmp.eq.s32.totalorder %s21, 0
    %p48 = por %p46, %p47
    %s50 = sadd.s32 %s49, 1
    %p53 = scmp.eq.s32.totalorder %s15, 1
    %p54 = scmp.ne.s32.totalorder %s49, %s51
    %p55 = scmp.eq.s32.totalorder %s15, 0
    %p56 = por %p54, %p55
    %p57 = scmp.ne.s32.totalorder %s49, %s51
    %p58 = scmp.eq.s32.totalorder %s20, 1
    %p59 = por %p57, %p58
    %p60 = scmp.ne.s32.totalorder %s51, %s52
    %p61 = scmp.eq.s32.totalorder %s20, 0
    %p62 = por %p60, %p61
    %p63 = scmp.ne.s32.totalorder %s51, %s52
    %p64 = scmp.eq.s32.totalorder %s21, 1
    %p65 = por %p63, %p64
    %p67 = scmp.ne.s32.totalorder %s52, %s66
    %p68 = scmp.eq.s32.totalorder %s21, 0
    %p69 = por %p67, %p68
    %s71 = sadd.s32 %s70, 1
    %p74 = scmp.eq.s32.totalorder %s15, 1
    %p75 = scmp.ne.s32.totalorder %s70, %s72
    %p76 = scmp.eq.s32.totalorder %s15, 0
    %p77 = por %p75, %p76
    %p78 = scmp.ne.s32.totalorder %s70, %s72
    %p79 = scmp.eq.s32.totalorder %s20, 1
    %p80 = por %p78, %p79
    %p81 = scmp.ne.s32.totalorder %s72, %s73
    %p82 = scmp.eq.s32.totalorder %s20, 0
    %p83 = por %p81, %p82
    %p84 = scmp.ne.s32.totalorder %s72, %s73
    %p85 = scmp.eq.s32.totalorder %s21, 1
    %p86 = por %p84, %p85
    %p88 = scmp.ne.s32.totalorder %s73, %s87
    %p89 = scmp.eq.s32.totalorder %s21, 0
    %p90 = por %p88, %p89
    %s92 = sadd.s32 %s91, 1
    %p95 = scmp.eq.s32.totalorder %s15, 1
    %p96 = scmp.ne.s32.totalorder %s91, %s93
    %p97 = scmp.eq.s32.totalorder %s15, 0
    %p98 = por %p96, %p97
    %p99 = scmp.ne.s32.totalorder %s91, %s93
    %p100 = scmp.eq.s32.totalorder %s20, 1
    %p101 = por %p99, %p100
    %p102 = scmp.ne.s32.totalorder %s93, %s94
    %p103 = scmp.eq.s32.totalorder %s20, 0
    %p104 = por %p102, %p103
    %p105 = scmp.ne.s32.totalorder %s93, %s94
    %p106 = scmp.eq.s32.totalorder %s21, 1
    %p107 = por %p105, %p106
    %p109 = scmp.ne.s32.totalorder %s94, %s108
    %p110 = scmp.eq.s32.totalorder %s21, 0
    %p111 = por %p109, %p110
    %s113 = sadd.s32 %s112, 1
    %p116 = scmp.eq.s32.totalorder %s15, 1
    %p117 = scmp.ne.s32.totalorder %s112, %s114
    %p118 = scmp.eq.s32.totalorder %s15, 0
    %p119 = por %p117, %p118
    %p120 = scmp.ne.s32.totalorder %s112, %s114
    %p121 = scmp.eq.s32.totalorder %s20, 1
    %p122 = por %p120, %p121
    %p123 = scmp.ne.s32.totalorder %s114, %s115
    %p124 = scmp.eq.s32.totalorder %s20, 0
    %p125 = por %p123, %p124
    %p126 = scmp.ne.s32.totalorder %s114, %s115
    %p127 = scmp.eq.s32.totalorder %s21, 1
    %p128 = por %p126, %p127
    %p130 = scmp.ne.s32.totalorder %s115, %s129
    %p131 = scmp.eq.s32.totalorder %s21, 0
    %p132 = por %p130, %p131
    %s134 = sadd.s32 %s133, 1
    %p137 = scmp.eq.s32.totalorder %s15, 1
    %p138 = scmp.ne.s32.totalorder %s133, %s135
    %p139 = scmp.eq.s32.totalorder %s15, 0
    %p140 = por %p138, %p139
    %p141 = scmp.ne.s32.totalorder %s133, %s135
    %p142 = scmp.eq.s32.totalorder %s20, 1
    %p143 = por %p141, %p142
    %p144 = scmp.ne.s32.totalorder %s135, %s136
    %p145 = scmp.eq.s32.totalorder %s20, 0
    %p146 = por %p144, %p145
    %p147 = scmp.ne.s32.totalorder %s135, %s136
    %p148 = scmp.eq.s32.totalorder %s21, 1
    %p149 = por %p147, %p148
    %p151 = scmp.ne.s32.totalorder %s136, %s150
    %p152 = scmp.eq.s32.totalorder %s21, 0
    %p153 = por %p151, %p152
    %s155 = sadd.s32 %s154, 1
    %p158 = scmp.eq.s32.totalorder %s15, 1
    %p159 = scmp.ne.s32.totalorder %s154, %s156
    %p160 = scmp.eq.s32.totalorder %s15, 0
    %p161 = por %p159, %p160
    %p162 = scmp.ne.s32.totalorder %s154, %s156
    %p163 = scmp.eq.s32.totalorder %s20, 1
    %p164 = por %p162, %p163
    %p165 = scmp.ne.s32.totalorder %s156, %s157
    %p166 = scmp.eq.s32.totalorder %s20, 0
    %p167 = por %p165, %p166
    %p168 = scmp.ne.s32.totalorder %s156, %s157
    %p169 = scmp.eq.s32.totalorder %s21, 1
    %p170 = por %p168, %p169
    %p172 = scmp.ne.s32.totalorder %s157, %s171
    %p173 = scmp.eq.s32.totalorder %s21, 0
    %p174 = por %p172, %p173
    %s176 = sadd.s32 %s175, 1
    %p179 = scmp.eq.s32.totalorder %s15, 1
    %p180 = scmp.ne.s32.totalorder %s175, %s177
    %p181 = scmp.eq.s32.totalorder %s15, 0
    %p182 = por %p180, %p181
    %p183 = scmp.ne.s32.totalorder %s175, %s177
    %p184 = scmp.eq.s32.totalorder %s20, 1
    %p185 = por %p183, %p184
    %p186 = scmp.ne.s32.totalorder %s177, %s178
    %p187 = scmp.eq.s32.totalorder %s20, 0
    %p188 = por %p186, %p187
    %p189 = scmp.ne.s32.totalorder %s177, %s178
    %p190 = scmp.eq.s32.totalorder %s21, 1
    %p191 = por %p189, %p190
    %p193 = scmp.ne.s32.totalorder %s178, %s192
    %p194 = scmp.eq.s32.totalorder %s21, 0
    %p195 = por %p193, %p194
    %s197 = sadd.s32 %s196, 1
    %p200 = scmp.eq.s32.totalorder %s15, 1
    %p201 = scmp.ne.s32.totalorder %s196, %s198
    %p202 = scmp.eq.s32.totalorder %s15, 0
    %p203 = por %p201, %p202
    %p204 = scmp.ne.s32.totalorder %s196, %s198
    %p205 = scmp.eq.s32.totalorder %s20, 1
    %p206 = por %p204, %p205
    %p207 = scmp.ne.s32.totalorder %s198, %s199
    %p208 = scmp.eq.s32.totalorder %s20, 0
    %p209 = por %p207, %p208
    %p210 = scmp.ne.s32.totalorder %s198, %s199
    %p211 = scmp.eq.s32.totalorder %s21, 1
    %p212 = por %p210, %p211
    %p214 = scmp.ne.s32.totalorder %s199, %s213
    %p215 = scmp.eq.s32.totalorder %s21, 0
    %p216 = por %p214, %p215
    %s217 = ssub.s32 %s15, %s22
    %p218 = scmp.eq.s32.totalorder %s217, 0
    %s220 = sadd.s32 %s219, 1
    %s221 = scalar_select %p218, %s219, %s220
    %p224 = pneg %p218
    %p225 = scmp.eq.s32.totalorder %s15, 1
    %p226 = por %p224, %p225
    %p227 = scmp.ne.s32.totalorder %s219, %s222
    %p228 = scmp.eq.s32.totalorder %s15, 0
    %p229 = por %p227, %p228
    %p230 = scmp.ne.s32.totalorder %s219, %s222
    %p231 = scmp.eq.s32.totalorder %s20, 1
    %p232 = por %p230, %p231
    %p233 = scmp.ne.s32.totalorder %s222, %s223
    %p234 = scmp.eq.s32.totalorder %s20, 0
    %p235 = por %p233, %p234
    %p236 = scmp.ne.s32.totalorder %s222, %s223
    %p237 = scmp.eq.s32.totalorder %s21, 1
    %p238 = por %p236, %p237
    %p240 = scmp.ne.s32.totalorder %s223, %s239
    %p241 = scmp.eq.s32.totalorder %s21, 0
    %p242 = por %p240, %p241
    %p243 = scmp.le.s32.totalorder 1, %s15
    %p244 = scmp.lt.s32.totalorder %s15, 3
    %p245 = pnand %p243, %p244
    %p246 = pneg %p245
    // Predicated region
    $region9: #{lstm_model_forward.1} parent=5 // pred_check
      _
    $region10: #{lstm_model_forward.1} parent=5 // pred_check_branch
      %248 = sbr.rel (%p245) target = $region12
    $region11: #{lstm_model_forward.1} parent=5 // pred_region
      %s249 = ssub.s32 %s15, 1
      // Predicated region
      $region13: #{lstm_model_forward.1} parent=11 // pred_check
        %p250 = pneg %p62
      $region14: #{lstm_model_forward.1} parent=11 // pred_check_branch
        %252 = sbr.rel (%p250) target = $region16
      $region15: #{lstm_model_forward.1} parent=11 // pred_region
        _
      $region16: #{lstm_model_forward.1} parent=11 // pred_fallthru
        _
      // Predicated region
      $region17: #{lstm_model_forward.1} parent=11 // pred_check
        %p253 = pneg %p83
      $region18: #{lstm_model_forward.1} parent=11 // pred_check_branch
        %255 = sbr.rel (%p253) target = $region20
      $region19: #{lstm_model_forward.1} parent=11 // pred_region
        _
      $region20: #{lstm_model_forward.1} parent=11 // pred_fallthru
        _
      // Predicated region
      $region21: #{lstm_model_forward.1} parent=11 // pred_check
        %p256 = pneg %p104
      $region22: #{lstm_model_forward.1} parent=11 // pred_check_branch
        %258 = sbr.rel (%p256) target = $region24
      $region23: #{lstm_model_forward.1} parent=11 // pred_region
        _
      $region24: #{lstm_model_forward.1} parent=11 // pred_fallthru
        _
      // Predicated region
      $region25: #{lstm_model_forward.1} parent=11 // pred_check
        %p259 = pneg %p125
      $region26: #{lstm_model_forward.1} parent=11 // pred_check_branch
        %261 = sbr.rel (%p259) target = $region28
      $region27: #{lstm_model_forward.1} parent=11 // pred_region
        _
      $region28: #{lstm_model_forward.1} parent=11 // pred_fallthru
        _
      // Predicated region
      $region29: #{lstm_model_forward.1} parent=11 // pred_check
        %p262 = pneg %p146
      $region30: #{lstm_model_forward.1} parent=11 // pred_check_branch
        %264 = sbr.rel (%p262) target = $region32
      $region31: #{lstm_model_forward.1} parent=11 // pred_region
        _
      $region32: #{lstm_model_forward.1} parent=11 // pred_fallthru
        _
      // Predicated region
      $region33: #{lstm_model_forward.1} parent=11 // pred_check
        %p265 = pneg %p167
      $region34: #{lstm_model_forward.1} parent=11 // pred_check_branch
        %267 = sbr.rel (%p265) target = $region36
      $region35: #{lstm_model_forward.1} parent=11 // pred_region
        _
      $region36: #{lstm_model_forward.1} parent=11 // pred_fallthru
        _
      // Predicated region
      $region37: #{lstm_model_forward.1} parent=11 // pred_check
        %p268 = pneg %p188
      $region38: #{lstm_model_forward.1} parent=11 // pred_check_branch
        %270 = sbr.rel (%p268) target = $region40
      $region39: #{lstm_model_forward.1} parent=11 // pred_region
        _
      $region40: #{lstm_model_forward.1} parent=11 // pred_fallthru
        _
      // Predicated region
      $region41: #{lstm_model_forward.1} parent=11 // pred_check
        %p271 = pneg %p209
      $region42: #{lstm_model_forward.1} parent=11 // pred_check_branch
        %273 = sbr.rel (%p271) target = $region44
      $region43: #{lstm_model_forward.1} parent=11 // pred_region
        _
      $region44: #{lstm_model_forward.1} parent=11 // pred_fallthru
        _
    $region12: #{lstm_model_forward.1} parent=5 // pred_fallthru
      _
    %p274 = scmp.lt.s32.totalorder %s15, 2
    // Predicated region
    $region45: #{lstm_model_forward.1} parent=5 // pred_check
      %p275 = pneg %p274
    $region46: #{lstm_model_forward.1} parent=5 // pred_check_branch
      %277 = sbr.rel (%p275) target = $region48
    $region47: #{lstm_model_forward.1} parent=5 // pred_region
      // Predicated region
      $region49: #{lstm_model_forward.1} parent=47 // pred_check
        %p278 = pneg %p35
      $region50: #{lstm_model_forward.1} parent=47 // pred_check_branch
        %280 = sbr.rel (%p278) target = $region52
      $region51: #{lstm_model_forward.1} parent=47 // pred_region
        %p281 = scmp.lt.s32.totalorder %s15, 1
        %s282 = scalar_select %p281, %s15, 1
        %s283 = smul.addr %s282, 8
        %s284 = smul.addr %s283, 8
        %s285 = scalar_lea.vmem %s0, %s284
      $region52: #{lstm_model_forward.1} parent=47 // pred_fallthru
        _
    $region48: #{lstm_model_forward.1} parent=5 // pred_fallthru
      _
    %p286 = scmp.le.s32.totalorder 1, %s15
    %p287 = scmp.lt.s32.totalorder %s15, 3
    %p288 = pnand %p286, %p287
    %p289 = pneg %p288
    // Predicated region
    $region53: #{lstm_model_forward.1} parent=5 // pred_check
      _
    $region54: #{lstm_model_forward.1} parent=5 // pred_check_branch
      %291 = sbr.rel (%p288) target = $region56
    $region55: #{lstm_model_forward.1} parent=5 // pred_region
      %s292 = ssub.s32 %s15, 1
      %p293 = scmp.lt.s32.totalorder %s20, 1
      %s294 = scalar_select %p293, %s20, 1
      %s295 = smul.addr %s294, 8
      %s296 = smul.addr %s295, 8
      %s297 = scalar_lea.vmem %s0, %s296
      %p298 = pneg %p41
      %p299 = pneg %p38
      %p300 = pneg %p62
      %p301 = pneg %p59
      %p302 = pneg %p83
      %p303 = pneg %p80
      %p304 = pneg %p104
      %p305 = pneg %p101
      %p306 = pneg %p125
      %p307 = pneg %p122
      %p308 = pneg %p146
      %p309 = pneg %p143
      %p310 = pneg %p167
      %p311 = pneg %p164
      %p312 = pneg %p188
      %p313 = pneg %p185
      %p314 = pneg %p209
      %p315 = pneg %p206
      %p316 = pneg %p235
      %p317 = pneg %p232
      %p318 = scmp.lt.s32.totalorder %s20, 1
      %s319 = scalar_select %p318, %s20, 1
      %s320 = smul.addr %s319, 8
      %s321 = smul.addr %s320, 8
      %s322 = scalar_lea.vmem %s9, %s321
      %p323 = scmp.lt.s32.totalorder %s20, 1
      %s324 = scalar_select %p323, %s20, 1
      %s325 = smul.addr %s324, 8
      %s326 = smul.addr %s325, 8
      %s327 = scalar_lea.vmem %s0, %s326
      %p328 = scmp.lt.s32.totalorder %s20, 1
      %s329 = scalar_select %p328, %s20, 1
      %s330 = smul.addr %s329, 8
      %s331 = smul.addr %s330, 8
      %s332 = scalar_lea.vmem %s9, %s331
      %v333 = vld [vmem:[%s327] sm:$0xff]
      %v334 = vld [vmem:[%s327 + $0x8] sm:$0xff]
      %v335 = vld [vmem:[%s327 + $0x10] sm:$0xff]
      %v336 = vld [vmem:[%s327 + $0x18] sm:$0xff]
      %v337 = vld [vmem:[%s327 + $0x20] sm:$0xff]
      %v338 = vld [vmem:[%s327 + $0x28] sm:$0xff]
      %v339 = vld [vmem:[%s327 + $0x30] sm:$0xff]
      %v340 = vld [vmem:[%s327 + $0x38] sm:$0xff]
      %v341 = vld [vmem:[%s1] sm:$0xff]
      %v342 = vld [vmem:[%s1 + $0x8] sm:$0xff]
      %v343 = vld [vmem:[%s1 + $0x10] sm:$0xff]
      %v344 = vld [vmem:[%s1 + $0x18] sm:$0xff]
      %v345 = vld [vmem:[%s3] sm:$0xf]
      %v347 = vlaneseq
      %v348 = vshrl.u32 %v347, 7
      %v349 = vsub.s32 0, %v348
      %v350 = vrot.slane %v345, %v349
      %v351 = vlaneseq
      %v352 = vshrl.u32 %v351, 7
      %v353 = vsub.s32 1, %v352
      %v354 = vrot.slane %v345, %v353
      %v355 = vlaneseq
      %v356 = vshrl.u32 %v355, 7
      %v357 = vsub.s32 2, %v356
      %v358 = vrot.slane %v345, %v357
      %v359 = vlaneseq
      %v360 = vshrl.u32 %v359, 7
      %v361 = vsub.s32 3, %v360
      %v362 = vrot.slane %v345, %v361
      %vm367 = vcmask 64512
      %v369 = vsel %vm367, %v333, 0
      %v372 = vsel %vm367, %v334, 0
      %v375 = vsel %vm367, %v335, 0
      %v378 = vsel %vm367, %v336, 0
      %v381 = vsel %vm367, %v337, 0
      %v384 = vsel %vm367, %v338, 0
      %v387 = vsel %vm367, %v339, 0
      %v390 = vsel %vm367, %v340, 0
      %392 = vmatprep.subr.mxu0 %v342
      %393 = vmatpush1.msra.mxu0 %v341
      %394 = vmatprep.subr.mxu0 0.0
      %395 = vmatpush1.msra.mxu0 0.0
      %396 = vmatprep.subr.mxu0 0.0
      %397 = vmatpush1.msra.mxu0 0.0
      %398 = vmatprep.subr.mxu0 0.0
      %399 = vmatpush1.msra.mxu0 0.0
      %400 = vmatprep.subr.mxu0 0.0
      %401 = vmatpush1.msra.mxu0 0.0
      %402 = vmatprep.subr.mxu0 0.0
      %403 = vmatpush1.msra.mxu0 0.0
      %404 = vmatprep.subr.mxu0 0.0
      %405 = vmatpush1.msra.mxu0 0.0
      %406 = vmatprep.subr.mxu0 0.0
      %407 = vmatpush1.msra.mxu0 0.0
      %408 = vmatprep.subr.mxu0 0.0
      %409 = vmatpush1.msra.mxu0 0.0
      %410 = vmatprep.subr.mxu0 0.0
      %411 = vmatpush1.msra.mxu0 0.0
      %412 = vmatprep.subr.mxu0 0.0
      %413 = vmatpush1.msra.mxu0 0.0
      %414 = vmatprep.subr.mxu0 0.0
      %415 = vmatpush1.msra.mxu0 0.0
      %416 = vmatprep.subr.mxu0 0.0
      %417 = vmatpush1.msra.mxu0 0.0
      %418 = vmatprep.subr.mxu0 0.0
      %419 = vmatpush1.msra.mxu0 0.0
      %420 = vmatprep.subr.mxu0 0.0
      %421 = vmatpush1.msra.mxu0 0.0
      %422 = vmatprep.subr.mxu0 0.0
      %423 = vmatpush1.msra.mxu0 0.0
      %424 = vmatprep.subr.mxu0 0.0
      %425 = vmatpush1.msra.mxu0 0.0
      %426 = vmatprep.subr.mxu0 0.0
      %427 = vmatpush1.msra.mxu0 0.0
      %428 = vmatprep.subr.mxu0 0.0
      %429 = vmatpush1.msra.mxu0 0.0
      %430 = vmatprep.subr.mxu0 0.0
      %431 = vmatpush1.msra.mxu0 0.0
      %432 = vmatprep.subr.mxu0 0.0
      %433 = vmatpush1.msra.mxu0 0.0
      %434 = vmatprep.subr.mxu0 0.0
      %435 = vmatpush1.msra.mxu0 0.0
      %436 = vmatprep.subr.mxu0 0.0
      %437 = vmatpush1.msra.mxu0 0.0
      %438 = vmatprep.subr.mxu0 0.0
      %439 = vmatpush1.msra.mxu0 0.0
      %440 = vmatprep.subr.mxu0 0.0
      %441 = vmatpush1.msra.mxu0 0.0
      %442 = vmatprep.subr.mxu0 0.0
      %443 = vmatpush1.msra.mxu0 0.0
      %444 = vmatprep.subr.mxu0 0.0
      %445 = vmatpush1.msra.mxu0 0.0
      %446 = vmatprep.subr.mxu0 0.0
      %447 = vmatpush1.msra.mxu0 0.0
      %448 = vmatprep.subr.mxu0 0.0
      %449 = vmatpush1.msra.mxu0 0.0
      %450 = vmatprep.subr.mxu0 0.0
      %451 = vmatpush1.msra.mxu0 0.0
      %452 = vmatprep.subr.mxu0 0.0
      %453 = vmatpush1.msra.mxu0 0.0
      %454 = vmatprep.subr.mxu0 0.0
      %455 = vmatpush1.msra.mxu0 0.0
      %456 = vmatprep.mubr.f32.mxu0 0.0
      %457 = vmatmul.mubr.f32.gmra.mrb[0].mxu0 %v369
      %v458 = vpop.f32.mrb[0].mxu0
      %v459 = vadd.f32 %v350, %v458
      %v460 = vpop.f32.mrb[0].mxu0
      %v461 = vadd.f32 %v354, %v460
      %462 = vmatprep.mubr.f32.mxu0 0.0
      %463 = vmatmul.mubr.f32.gmra.mrb[0].mxu0 %v372
      %v464 = vpop.f32.mrb[0].mxu0
      %v465 = vadd.f32 %v350, %v464
      %v466 = vpop.f32.mrb[0].mxu0
      %v467 = vadd.f32 %v354, %v466
      %468 = vmatprep.mubr.f32.mxu0 0.0
      %469 = vmatmul.mubr.f32.gmra.mrb[0].mxu0 %v375
      %v470 = vpop.f32.mrb[0].mxu0
      %v471 = vadd.f32 %v350, %v470
      %v472 = vpop.f32.mrb[0].mxu0
      %v473 = vadd.f32 %v354, %v472
      %474 = vmatprep.mubr.f32.mxu0 0.0
      %475 = vmatmul.mubr.f32.gmra.mrb[0].mxu0 %v378
      %v476 = vpop.f32.mrb[0].mxu0
      %v477 = vadd.f32 %v350, %v476
      %v478 = vpop.f32.mrb[0].mxu0
      %v479 = vadd.f32 %v354, %v478
      %480 = vmatprep.mubr.f32.mxu0 0.0
      %481 = vmatmul.mubr.f32.gmra.mrb[0].mxu0 %v381
      %v482 = vpop.f32.mrb[0].mxu0
      %v483 = vadd.f32 %v350, %v482
      %v484 = vpop.f32.mrb[0].mxu0
      %v485 = vadd.f32 %v354, %v484
      %486 = vmatprep.mubr.f32.mxu0 0.0
      %487 = vmatmul.mubr.f32.gmra.mrb[0].mxu0 %v384
      %v488 = vpop.f32.mrb[0].mxu0
      %v489 = vadd.f32 %v350, %v488
      %v490 = vpop.f32.mrb[0].mxu0
      %v491 = vadd.f32 %v354, %v490
      %492 = vmatprep.mubr.f32.mxu0 0.0
      %493 = vmatmul.mubr.f32.gmra.mrb[0].mxu0 %v387
      %v494 = vpop.f32.mrb[0].mxu0
      %v495 = vadd.f32 %v350, %v494
      %v496 = vpop.f32.mrb[0].mxu0
      %v497 = vadd.f32 %v354, %v496
      %498 = vmatprep.mubr.f32.mxu0 0.0
      %499 = vmatmul.mubr.f32.gmra.mrb[0].mxu0 %v390
      %v500 = vpop.f32.mrb[0].mxu0
      %v501 = vadd.f32 %v350, %v500
      %v502 = vpop.f32.mrb[0].mxu0
      %v503 = vadd.f32 %v354, %v502
      %504 = vdwg.mxu0
      %505 = vmatprep.subr.mxu0 %v344
      %506 = vmatpush1.msra.mxu0 %v343
      %507 = vmatprep.subr.mxu0 0.0
      %508 = vmatpush1.msra.mxu0 0.0
      %509 = vmatprep.subr.mxu0 0.0
      %510 = vmatpush1.msra.mxu0 0.0
      %511 = vmatprep.subr.mxu0 0.0
      %512 = vmatpush1.msra.mxu0 0.0
      %513 = vmatprep.subr.mxu0 0.0
      %514 = vmatpush1.msra.mxu0 0.0
      %515 = vmatprep.subr.mxu0 0.0
      %516 = vmatpush1.msra.mxu0 0.0
      %517 = vmatprep.subr.mxu0 0.0
      %518 = vmatpush1.msra.mxu0 0.0
      %519 = vmatprep.subr.mxu0 0.0
      %520 = vmatpush1.msra.mxu0 0.0
      %521 = vmatprep.subr.mxu0 0.0
      %522 = vmatpush1.msra.mxu0 0.0
      %523 = vmatprep.subr.mxu0 0.0
      %524 = vmatpush1.msra.mxu0 0.0
      %525 = vmatprep.subr.mxu0 0.0
      %526 = vmatpush1.msra.mxu0 0.0
      %527 = vmatprep.subr.mxu0 0.0
      %528 = vmatpush1.msra.mxu0 0.0
      %529 = vmatprep.subr.mxu0 0.0
      %530 = vmatpush1.msra.mxu0 0.0
      %531 = vmatprep.subr.mxu0 0.0
      %532 = vmatpush1.msra.mxu0 0.0
      %533 = vmatprep.subr.mxu0 0.0
      %534 = vmatpush1.msra.mxu0 0.0
      %535 = vmatprep.subr.mxu0 0.0
      %536 = vmatpush1.msra.mxu0 0.0
      %537 = vmatprep.subr.mxu0 0.0
      %538 = vmatpush1.msra.mxu0 0.0
      %539 = vmatprep.subr.mxu0 0.0
      %540 = vmatpush1.msra.mxu0 0.0
      %541 = vmatprep.subr.mxu0 0.0
      %542 = vmatpush1.msra.mxu0 0.0
      %543 = vmatprep.subr.mxu0 0.0
      %544 = vmatpush1.msra.mxu0 0.0
      %545 = vmatprep.subr.mxu0 0.0
      %546 = vmatpush1.msra.mxu0 0.0
      %547 = vmatprep.subr.mxu0 0.0
      %548 = vmatpush1.msra.mxu0 0.0
      %549 = vmatprep.subr.mxu0 0.0
      %550 = vmatpush1.msra.mxu0 0.0
      %551 = vmatprep.subr.mxu0 0.0
      %552 = vmatpush1.msra.mxu0 0.0
      %553 = vmatprep.subr.mxu0 0.0
      %554 = vmatpush1.msra.mxu0 0.0
      %555 = vmatprep.subr.mxu0 0.0
      %556 = vmatpush1.msra.mxu0 0.0
      %557 = vmatprep.subr.mxu0 0.0
      %558 = vmatpush1.msra.mxu0 0.0
      %559 = vmatprep.subr.mxu0 0.0
      %560 = vmatpush1.msra.mxu0 0.0
      %561 = vmatprep.subr.mxu0 0.0
      %562 = vmatpush1.msra.mxu0 0.0
      %563 = vmatprep.subr.mxu0 0.0
      %564 = vmatpush1.msra.mxu0 0.0
      %565 = vmatprep.subr.mxu0 0.0
      %566 = vmatpush1.msra.mxu0 0.0
      %567 = vmatprep.subr.mxu0 0.0
      %568 = vmatpush1.msra.mxu0 0.0
      %569 = vmatprep.mubr.f32.mxu0 0.0
      %570 = vmatmul.mubr.f32.gmra.mrb[0].mxu0 %v369
      %v571 = vpop.f32.mrb[0].mxu0
      %v572 = vadd.f32 %v358, %v571
      %v573 = vpop.f32.mrb[0].mxu0
      %v574 = vadd.f32 %v362, %v573
      %575 = vmatprep.mubr.f32.mxu0 0.0
      %576 = vmatmul.mubr.f32.gmra.mrb[0].mxu0 %v372
      %v577 = vpop.f32.mrb[0].mxu0
      %v578 = vadd.f32 %v358, %v577
      %v579 = vpop.f32.mrb[0].mxu0
      %v580 = vadd.f32 %v362, %v579
      %581 = vmatprep.mubr.f32.mxu0 0.0
      %582 = vmatmul.mubr.f32.gmra.mrb[0].mxu0 %v375
      %v583 = vpop.f32.mrb[0].mxu0
      %v584 = vadd.f32 %v358, %v583
      %v585 = vpop.f32.mrb[0].mxu0
      %v586 = vadd.f32 %v362, %v585
      %587 = vmatprep.mubr.f32.mxu0 0.0
      %588 = vmatmul.mubr.f32.gmra.mrb[0].mxu0 %v378
      %v589 = vpop.f32.mrb[0].mxu0
      %v590 = vadd.f32 %v358, %v589
      %v591 = vpop.f32.mrb[0].mxu0
      %v592 = vadd.f32 %v362, %v591
      %593 = vmatprep.mubr.f32.mxu0 0.0
      %594 = vmatmul.mubr.f32.gmra.mrb[0].mxu0 %v381
      %v595 = vpop.f32.mrb[0].mxu0
      %v596 = vadd.f32 %v358, %v595
      %v597 = vpop.f32.mrb[0].mxu0
      %v598 = vadd.f32 %v362, %v597
      %599 = vmatprep.mubr.f32.mxu0 0.0
      %600 = vmatmul.mubr.f32.gmra.mrb[0].mxu0 %v384
      %v601 = vpop.f32.mrb[0].mxu0
      %v602 = vadd.f32 %v358, %v601
      %v603 = vpop.f32.mrb[0].mxu0
      %v604 = vadd.f32 %v362, %v603
      %605 = vmatprep.mubr.f32.mxu0 0.0
      %606 = vmatmul.mubr.f32.gmra.mrb[0].mxu0 %v387
      %v607 = vpop.f32.mrb[0].mxu0
      %v608 = vadd.f32 %v358, %v607
      %v609 = vpop.f32.mrb[0].mxu0
      %v610 = vadd.f32 %v362, %v609
      %611 = vmatprep.mubr.f32.mxu0 0.0
      %612 = vmatmul.mubr.f32.gmra.mrb[0].mxu0 %v390
      %v613 = vpop.f32.mrb[0].mxu0
      %v614 = vadd.f32 %v358, %v613
      %v615 = vpop.f32.mrb[0].mxu0
      %v616 = vadd.f32 %v362, %v615
      %617 = vdwg.mxu0
      %618 = vst [vmem:[#allocation2] sm:$0xff] %v459
      %619 = vst [vmem:[#allocation2 + $0x8] sm:$0xff] %v461
      %620 = vst [vmem:[#allocation2 + $0x10] sm:$0xff] %v572
      %621 = vst [vmem:[#allocation2 + $0x18] sm:$0xff] %v574
      %622 = vst [vmem:[#allocation2 + $0x20] sm:$0xff] %v465
      %623 = vst [vmem:[#allocation2 + $0x28] sm:$0xff] %v467
      %624 = vst [vmem:[#allocation2 + $0x30] sm:$0xff] %v578
      %625 = vst [vmem:[#allocation2 + $0x38] sm:$0xff] %v580
      %626 = vst [vmem:[#allocation2 + $0x40] sm:$0xff] %v471
      %627 = vst [vmem:[#allocation2 + $0x48] sm:$0xff] %v473
      %628 = vst [vmem:[#allocation2 + $0x50] sm:$0xff] %v584
      %629 = vst [vmem:[#allocation2 + $0x58] sm:$0xff] %v586
      %630 = vst [vmem:[#allocation2 + $0x60] sm:$0xff] %v477
      %631 = vst [vmem:[#allocation2 + $0x68] sm:$0xff] %v479
      %632 = vst [vmem:[#allocation2 + $0x70] sm:$0xff] %v590
      %633 = vst [vmem:[#allocation2 + $0x78] sm:$0xff] %v592
      %634 = vst [vmem:[#allocation2 + $0x80] sm:$0xff] %v483
      %635 = vst [vmem:[#allocation2 + $0x88] sm:$0xff] %v485
      %636 = vst [vmem:[#allocation2 + $0x90] sm:$0xff] %v596
      %637 = vst [vmem:[#allocation2 + $0x98] sm:$0xff] %v598
      %638 = vst [vmem:[#allocation2 + $0xa0] sm:$0xff] %v489
      %639 = vst [vmem:[#allocation2 + $0xa8] sm:$0xff] %v491
      %640 = vst [vmem:[#allocation2 + $0xb0] sm:$0xff] %v602
      %641 = vst [vmem:[#allocation2 + $0xb8] sm:$0xff] %v604
      %642 = vst [vmem:[#allocation2 + $0xc0] sm:$0xff] %v495
      %643 = vst [vmem:[#allocation2 + $0xc8] sm:$0xff] %v497
      %644 = vst [vmem:[#allocation2 + $0xd0] sm:$0xff] %v608
      %645 = vst [vmem:[#allocation2 + $0xd8] sm:$0xff] %v610
      %646 = vst [vmem:[#allocation2 + $0xe0] sm:$0xff] %v501
      %647 = vst [vmem:[#allocation2 + $0xe8] sm:$0xff] %v503
      %648 = vst [vmem:[#allocation2 + $0xf0] sm:$0xff] %v614
      %649 = vst [vmem:[#allocation2 + $0xf8] sm:$0xff] %v616
      %v650 = vld [vmem:[%s2] sm:$0xff]
      %v651 = vld [vmem:[%s2 + $0x8] sm:$0xff]
      %v652 = vld [vmem:[%s2 + $0x10] sm:$0xff]
      %v653 = vld [vmem:[%s2 + $0x18] sm:$0xff]
      %v654 = vld [vmem:[%s2 + $0x20] sm:$0xff]
      %v655 = vld [vmem:[%s2 + $0x28] sm:$0xff]
      %v656 = vld [vmem:[%s2 + $0x30] sm:$0xff]
      %v657 = vld [vmem:[%s2 + $0x38] sm:$0xff]
      %v658 = vld [vmem:[%s2 + $0x40] sm:$0xff]
      %v659 = vld [vmem:[%s2 + $0x48] sm:$0xff]
      %v660 = vld [vmem:[%s2 + $0x50] sm:$0xff]
      %v661 = vld [vmem:[%s2 + $0x58] sm:$0xff]
      %v662 = vld [vmem:[%s2 + $0x60] sm:$0xff]
      %v663 = vld [vmem:[%s2 + $0x68] sm:$0xff]
      %v664 = vld [vmem:[%s2 + $0x70] sm:$0xff]
      %v665 = vld [vmem:[%s2 + $0x78] sm:$0xff]
      %v666 = vld [vmem:[%s2 + $0x80] sm:$0xff]
      %v667 = vld [vmem:[%s2 + $0x88] sm:$0xff]
      %v668 = vld [vmem:[%s2 + $0x90] sm:$0xff]
      %v669 = vld [vmem:[%s2 + $0x98] sm:$0xff]
      %v670 = vld [vmem:[%s2 + $0xa0] sm:$0xff]
      %v671 = vld [vmem:[%s2 + $0xa8] sm:$0xff]
      %v672 = vld [vmem:[%s2 + $0xb0] sm:$0xff]
      %v673 = vld [vmem:[%s2 + $0xb8] sm:$0xff]
      %v674 = vld [vmem:[%s2 + $0xc0] sm:$0xff]
      %v675 = vld [vmem:[%s2 + $0xc8] sm:$0xff]
      %v676 = vld [vmem:[%s2 + $0xd0] sm:$0xff]
      %v677 = vld [vmem:[%s2 + $0xd8] sm:$0xff]
      %v678 = vld [vmem:[%s2 + $0xe0] sm:$0xff]
      %v679 = vld [vmem:[%s2 + $0xe8] sm:$0xff]
      %v680 = vld [vmem:[%s2 + $0xf0] sm:$0xff]
      %v681 = vld [vmem:[%s2 + $0xf8] sm:$0xff]
      %v682 = vld [vmem:[%s2 + $0x100] sm:$0xff]
      %v683 = vld [vmem:[%s2 + $0x108] sm:$0xff]
      %v684 = vld [vmem:[%s2 + $0x110] sm:$0xff]
      %v685 = vld [vmem:[%s2 + $0x118] sm:$0xff]
      %v686 = vld [vmem:[%s2 + $0x120] sm:$0xff]
      %v687 = vld [vmem:[%s2 + $0x128] sm:$0xff]
      %v688 = vld [vmem:[%s2 + $0x130] sm:$0xff]
      %v689 = vld [vmem:[%s2 + $0x138] sm:$0xff]
      %v690 = vld [vmem:[%s2 + $0x140] sm:$0xff]
      %v691 = vld [vmem:[%s2 + $0x148] sm:$0xff]
      %v692 = vld [vmem:[%s2 + $0x150] sm:$0xff]
      %v693 = vld [vmem:[%s2 + $0x158] sm:$0xff]
      %v694 = vld [vmem:[%s2 + $0x160] sm:$0xff]
      %v695 = vld [vmem:[%s2 + $0x168] sm:$0xff]
      %v696 = vld [vmem:[%s2 + $0x170] sm:$0xff]
      %v697 = vld [vmem:[%s2 + $0x178] sm:$0xff]
      %v698 = vld [vmem:[%s2 + $0x180] sm:$0xff]
      %v699 = vld [vmem:[%s2 + $0x188] sm:$0xff]
      %v700 = vld [vmem:[%s2 + $0x190] sm:$0xff]
      %v701 = vld [vmem:[%s2 + $0x198] sm:$0xff]
      %v702 = vld [vmem:[%s2 + $0x1a0] sm:$0xff]
      %v703 = vld [vmem:[%s2 + $0x1a8] sm:$0xff]
      %v704 = vld [vmem:[%s2 + $0x1b0] sm:$0xff]
      %v705 = vld [vmem:[%s2 + $0x1b8] sm:$0xff]
      %v706 = vld [vmem:[%s2 + $0x1c0] sm:$0xff]
      %v707 = vld [vmem:[%s2 + $0x1c8] sm:$0xff]
      %v708 = vld [vmem:[%s2 + $0x1d0] sm:$0xff]
      %v709 = vld [vmem:[%s2 + $0x1d8] sm:$0xff]
      %v710 = vld [vmem:[%s2 + $0x1e0] sm:$0xff]
      %v711 = vld [vmem:[%s2 + $0x1e8] sm:$0xff]
      %v712 = vld [vmem:[%s2 + $0x1f0] sm:$0xff]
      %v713 = vld [vmem:[%s2 + $0x1f8] sm:$0xff]
      %s714 = smul.u32 0, 4
      %s715 = smul.addr %s714, 8
      %s716 = scalar_lea.vmem [#allocation2], %s715
      %v717 = vld [vmem:[%s716] sm:$0xff]
      %v718 = vld [vmem:[%s716 + $0x8] sm:$0xff]
      %v719 = vld [vmem:[%s716 + $0x10] sm:$0xff]
      %v720 = vld [vmem:[%s716 + $0x18] sm:$0xff]
      %721 = vmatprep.subr.mxu0 %v651
      %722 = vmatpush1.msra.mxu0 %v650
      %723 = vmatprep.subr.mxu0 %v655
      %724 = vmatpush1.msra.mxu0 %v654
      %725 = vmatprep.subr.mxu0 %v659
      %726 = vmatpush1.msra.mxu0 %v658
      %727 = vmatprep.subr.mxu0 %v663
      %728 = vmatpush1.msra.mxu0 %v662
      %729 = vmatprep.subr.mxu0 %v667
      %730 = vmatpush1.msra.mxu0 %v666
      %731 = vmatprep.subr.mxu0 %v671
      %732 = vmatpush1.msra.mxu0 %v670
      %733 = vmatprep.subr.mxu0 %v675
      %734 = vmatpush1.msra.mxu0 %v674
      %735 = vmatprep.subr.mxu0 %v679
      %736 = vmatpush1.msra.mxu0 %v678
      %737 = vmatprep.subr.mxu0 %v683
      %738 = vmatpush1.msra.mxu0 %v682
      %739 = vmatprep.subr.mxu0 %v687
      %740 = vmatpush1.msra.mxu0 %v686
      %741 = vmatprep.subr.mxu0 %v691
      %742 = vmatpush1.msra.mxu0 %v690
      %743 = vmatprep.subr.mxu0 %v695
      %744 = vmatpush1.msra.mxu0 %v694
      %745 = vmatprep.subr.mxu0 %v699
      %746 = vmatpush1.msra.mxu0 %v698
      %747 = vmatprep.subr.mxu0 %v703
      %748 = vmatpush1.msra.mxu0 %v702
      %749 = vmatprep.subr.mxu0 %v707
      %750 = vmatpush1.msra.mxu0 %v706
      %751 = vmatprep.subr.mxu0 %v711
      %752 = vmatpush1.msra.mxu0 %v710
      %753 = vmatprep.subr.mxu0 0.0
      %754 = vmatpush1.msra.mxu0 0.0
      %755 = vmatprep.subr.mxu0 0.0
      %756 = vmatpush1.msra.mxu0 0.0
      %757 = vmatprep.subr.mxu0 0.0
      %758 = vmatpush1.msra.mxu0 0.0
      %759 = vmatprep.subr.mxu0 0.0
      %760 = vmatpush1.msra.mxu0 0.0
      %761 = vmatprep.subr.mxu0 0.0
      %762 = vmatpush1.msra.mxu0 0.0
      %763 = vmatprep.subr.mxu0 0.0
      %764 = vmatpush1.msra.mxu0 0.0
      %765 = vmatprep.subr.mxu0 0.0
      %766 = vmatpush1.msra.mxu0 0.0
      %767 = vmatprep.subr.mxu0 0.0
      %768 = vmatpush1.msra.mxu0 0.0
      %769 = vmatprep.subr.mxu0 0.0
      %770 = vmatpush1.msra.mxu0 0.0
      %771 = vmatprep.subr.mxu0 0.0
      %772 = vmatpush1.msra.mxu0 0.0
      %773 = vmatprep.subr.mxu0 0.0
      %774 = vmatpush1.msra.mxu0 0.0
      %775 = vmatprep.subr.mxu0 0.0
      %776 = vmatpush1.msra.mxu0 0.0
      %777 = vmatprep.subr.mxu0 0.0
      %778 = vmatpush1.msra.mxu0 0.0
      %779 = vmatprep.subr.mxu0 0.0
      %780 = vmatpush1.msra.mxu0 0.0
      %781 = vmatprep.subr.mxu0 0.0
      %782 = vmatpush1.msra.mxu0 0.0
      %783 = vmatprep.subr.mxu0 0.0
      %784 = vmatpush1.msra.mxu0 0.0
      %785 = vmatprep.mubr.f32.mxu0 0.0
      %786 = vmatmul.mubr.f32.gmra.mrb[0].mxu0 0.0
      %v787 = vpop.f32.mrb[0].mxu0
      %v788 = vadd.f32 0.0, %v787
      %v789 = vpop.f32.mrb[0].mxu0
      %v790 = vadd.f32 0.0, %v789
      %791 = vdwg.mxu0
      %792 = vmatprep.subr.mxu0 %v653
      %793 = vmatpush1.msra.mxu0 %v652
      %794 = vmatprep.subr.mxu0 %v657
      %795 = vmatpush1.msra.mxu0 %v656
      %796 = vmatprep.subr.mxu0 %v661
      %797 = vmatpush1.msra.mxu0 %v660
      %798 = vmatprep.subr.mxu0 %v665
      %799 = vmatpush1.msra.mxu0 %v664
      %800 = vmatprep.subr.mxu0 %v669
      %801 = vmatpush1.msra.mxu0 %v668
      %802 = vmatprep.subr.mxu0 %v673
      %803 = vmatpush1.msra.mxu0 %v672
      %804 = vmatprep.subr.mxu0 %v677
      %805 = vmatpush1.msra.mxu0 %v676
      %806 = vmatprep.subr.mxu0 %v681
      %807 = vmatpush1.msra.mxu0 %v680
      %808 = vmatprep.subr.mxu0 %v685
      %809 = vmatpush1.msra.mxu0 %v684
      %810 = vmatprep.subr.mxu0 %v689
      %811 = vmatpush1.msra.mxu0 %v688
      %812 = vmatprep.subr.mxu0 %v693
      %813 = vmatpush1.msra.mxu0 %v692
      %814 = vmatprep.subr.mxu0 %v697
      %815 = vmatpush1.msra.mxu0 %v696
      %816 = vmatprep.subr.mxu0 %v701
      %817 = vmatpush1.msra.mxu0 %v700
      %818 = vmatprep.subr.mxu0 %v705
      %819 = vmatpush1.msra.mxu0 %v704
      %820 = vmatprep.subr.mxu0 %v709
      %821 = vmatpush1.msra.mxu0 %v708
      %822 = vmatprep.subr.mxu0 %v713
      %823 = vmatpush1.msra.mxu0 %v712
      %824 = vmatprep.subr.mxu0 0.0
      %825 = vmatpush1.msra.mxu0 0.0
      %826 = vmatprep.subr.mxu0 0.0
      %827 = vmatpush1.msra.mxu0 0.0
      %828 = vmatprep.subr.mxu0 0.0
      %829 = vmatpush1.msra.mxu0 0.0
      %830 = vmatprep.subr.mxu0 0.0
      %831 = vmatpush1.msra.mxu0 0.0
      %832 = vmatprep.subr.mxu0 0.0
      %833 = vmatpush1.msra.mxu0 0.0
      %834 = vmatprep.subr.mxu0 0.0
      %835 = vmatpush1.msra.mxu0 0.0
      %836 = vmatprep.subr.mxu0 0.0
      %837 = vmatpush1.msra.mxu0 0.0
      %838 = vmatprep.subr.mxu0 0.0
      %839 = vmatpush1.msra.mxu0 0.0
      %840 = vmatprep.subr.mxu0 0.0
      %841 = vmatpush1.msra.mxu0 0.0
      %842 = vmatprep.subr.mxu0 0.0
      %843 = vmatpush1.msra.mxu0 0.0
      %844 = vmatprep.subr.mxu0 0.0
      %845 = vmatpush1.msra.mxu0 0.0
      %846 = vmatprep.subr.mxu0 0.0
      %847 = vmatpush1.msra.mxu0 0.0
      %848 = vmatprep.subr.mxu0 0.0
      %849 = vmatpush1.msra.mxu0 0.0
      %850 = vmatprep.subr.mxu0 0.0
      %851 = vmatpush1.msra.mxu0 0.0
      %852 = vmatprep.subr.mxu0 0.0
      %853 = vmatpush1.msra.mxu0 0.0
      %854 = vmatprep.subr.mxu0 0.0
      %855 = vmatpush1.msra.mxu0 0.0
      %856 = vmatprep.mubr.f32.mxu0 0.0
      %857 = vmatmul.mubr.f32.gmra.mrb[0].mxu0 0.0
      %v858 = vpop.f32.mrb[0].mxu0
      %v859 = vadd.f32 0.0, %v858
      %v860 = vpop.f32.mrb[0].mxu0
      %v861 = vadd.f32 0.0, %v860
      %862 = vdwg.mxu0
      %v863 = vadd.f32 %v717, %v788
      %v864 = vadd.f32 %v718, %v790
      %v865 = vadd.f32 %v719, %v859
      %v866 = vadd.f32 %v720, %v861
      %v867 = vmul.f32 %v863, 0.5
      %v868 = vtanh.pop %v867
      %v869 = vmul.f32 %v868, 0.5
      %v870 = vadd.f32 %v869, 0.5
      %v871 = vmul.f32 %v864, 0.5
      %v872 = vtanh.pop %v871
      %v873 = vmul.f32 %v872, 0.5
      %v874 = vadd.f32 %v873, 0.5
      %v875 = vtanh.pop %v865
      %v876 = vmul.f32 %v866, 0.5
      %v877 = vtanh.pop %v876
      %v878 = vmul.f32 %v877, 0.5
      %v879 = vadd.f32 %v878, 0.5
      %v880 = vmul.f32 %v874, 0.0
      %v881 = vmul.f32 %v870, %v875
      %v882 = vadd.f32 %v880, %v881
      %v883 = vtanh.pop %v882
      %v884 = vmul.f32 %v879, %v883
      %885 = vst [vmem:[#allocation3] sm:$0xff] %v884
      %s886 = smul.u32 1, 4
      %s887 = smul.addr %s886, 8
      %s888 = scalar_lea.vmem [#allocation2], %s887
      %v889 = vld [vmem:[%s888] sm:$0xff]
      %v890 = vld [vmem:[%s888 + $0x8] sm:$0xff]
      %v891 = vld [vmem:[%s888 + $0x10] sm:$0xff]
      %v892 = vld [vmem:[%s888 + $0x18] sm:$0xff]
      %893 = vmatprep.subr.mxu0 %v651
      %894 = vmatpush1.msra.mxu0 %v650
      %895 = vmatprep.subr.mxu0 %v655
      %896 = vmatpush1.msra.mxu0 %v654
      %897 = vmatprep.subr.mxu0 %v659
      %898 = vmatpush1.msra.mxu0 %v658
      %899 = vmatprep.subr.mxu0 %v663
      %900 = vmatpush1.msra.mxu0 %v662
      %901 = vmatprep.subr.mxu0 %v667
      %902 = vmatpush1.msra.mxu0 %v666
      %903 = vmatprep.subr.mxu0 %v671
      %904 = vmatpush1.msra.mxu0 %v670
      %905 = vmatprep.subr.mxu0 %v675
      %906 = vmatpush1.msra.mxu0 %v674
      %907 = vmatprep.subr.mxu0 %v679
      %908 = vmatpush1.msra.mxu0 %v678
      %909 = vmatprep.subr.mxu0 %v683
      %910 = vmatpush1.msra.mxu0 %v682
      %911 = vmatprep.subr.mxu0 %v687
      %912 = vmatpush1.msra.mxu0 %v686
      %913 = vmatprep.subr.mxu0 %v691
      %914 = vmatpush1.msra.mxu0 %v690
      %915 = vmatprep.subr.mxu0 %v695
      %916 = vmatpush1.msra.mxu0 %v694
      %917 = vmatprep.subr.mxu0 %v699
      %918 = vmatpush1.msra.mxu0 %v698
      %919 = vmatprep.subr.mxu0 %v703
      %920 = vmatpush1.msra.mxu0 %v702
      %921 = vmatprep.subr.mxu0 %v707
      %922 = vmatpush1.msra.mxu0 %v706
      %923 = vmatprep.subr.mxu0 %v711
      %924 = vmatpush1.msra.mxu0 %v710
      %925 = vmatprep.subr.mxu0 0.0
      %926 = vmatpush1.msra.mxu0 0.0
      %927 = vmatprep.subr.mxu0 0.0
      %928 = vmatpush1.msra.mxu0 0.0
      %929 = vmatprep.subr.mxu0 0.0
      %930 = vmatpush1.msra.mxu0 0.0
      %931 = vmatprep.subr.mxu0 0.0
      %932 = vmatpush1.msra.mxu0 0.0
      %933 = vmatprep.subr.mxu0 0.0
      %934 = vmatpush1.msra.mxu0 0.0
      %935 = vmatprep.subr.mxu0 0.0
      %936 = vmatpush1.msra.mxu0 0.0
      %937 = vmatprep.subr.mxu0 0.0
      %938 = vmatpush1.msra.mxu0 0.0
      %939 = vmatprep.subr.mxu0 0.0
      %940 = vmatpush1.msra.mxu0 0.0
      %941 = vmatprep.subr.mxu0 0.0
      %942 = vmatpush1.msra.mxu0 0.0
      %943 = vmatprep.subr.mxu0 0.0
      %944 = vmatpush1.msra.mxu0 0.0
      %945 = vmatprep.subr.mxu0 0.0
      %946 = vmatpush1.msra.mxu0 0.0
      %947 = vmatprep.subr.mxu0 0.0
      %948 = vmatpush1.msra.mxu0 0.0
      %949 = vmatprep.subr.mxu0 0.0
      %950 = vmatpush1.msra.mxu0 0.0
      %951 = vmatprep.subr.mxu0 0.0
      %952 = vmatpush1.msra.mxu0 0.0
      %953 = vmatprep.subr.mxu0 0.0
      %954 = vmatpush1.msra.mxu0 0.0
      %955 = vmatprep.subr.mxu0 0.0
      %956 = vmatpush1.msra.mxu0 0.0
      %957 = vmatprep.mubr.f32.mxu0 0.0
      %958 = vmatmul.mubr.f32.gmra.mrb[0].mxu0 %v884
      %v959 = vpop.f32.mrb[0].mxu0
      %v960 = vadd.f32 0.0, %v959
      %v961 = vpop.f32.mrb[0].mxu0
      %v962 = vadd.f32 0.0, %v961
      %963 = vdwg.mxu0
      %964 = vmatprep.subr.mxu0 %v653
      %965 = vmatpush1.msra.mxu0 %v652
      %966 = vmatprep.subr.mxu0 %v657
      %967 = vmatpush1.msra.mxu0 %v656
      %968 = vmatprep.subr.mxu0 %v661
      %969 = vmatpush1.msra.mxu0 %v660
      %970 = vmatprep.subr.mxu0 %v665
      %971 = vmatpush1.msra.mxu0 %v664
      %972 = vmatprep.subr.mxu0 %v669
      %973 = vmatpush1.msra.mxu0 %v668
      %974 = vmatprep.subr.mxu0 %v673
      %975 = vmatpush1.msra.mxu0 %v672
      %976 = vmatprep.subr.mxu0 %v677
      %977 = vmatpush1.msra.mxu0 %v676
      %978 = vmatprep.subr.mxu0 %v681
      %979 = vmatpush1.msra.mxu0 %v680
      %980 = vmatprep.subr.mxu0 %v685
      %981 = vmatpush1.msra.mxu0 %v684
      %982 = vmatprep.subr.mxu0 %v689
      %983 = vmatpush1.msra.mxu0 %v688
      %984 = vmatprep.subr.mxu0 %v693
      %985 = vmatpush1.msra.mxu0 %v692
      %986 = vmatprep.subr.mxu0 %v697
      %987 = vmatpush1.msra.mxu0 %v696
      %988 = vmatprep.subr.mxu0 %v701
      %989 = vmatpush1.msra.mxu0 %v700
      %990 = vmatprep.subr.mxu0 %v705
      %991 = vmatpush1.msra.mxu0 %v704
      %992 = vmatprep.subr.mxu0 %v709
      %993 = vmatpush1.msra.mxu0 %v708
      %994 = vmatprep.subr.mxu0 %v713
      %995 = vmatpush1.msra.mxu0 %v712
      %996 = vmatprep.subr.mxu0 0.0
      %997 = vmatpush1.msra.mxu0 0.0
      %998 = vmatprep.subr.mxu0 0.0
      %999 = vmatpush1.msra.mxu0 0.0
      %1000 = vmatprep.subr.mxu0 0.0
      %1001 = vmatpush1.msra.mxu0 0.0
      %1002 = vmatprep.subr.mxu0 0.0
      %1003 = vmatpush1.msra.mxu0 0.0
      %1004 = vmatprep.subr.mxu0 0.0
      %1005 = vmatpush1.msra.mxu0 0.0
      %1006 = vmatprep.subr.mxu0 0.0
      %1007 = vmatpush1.msra.mxu0 0.0
      %1008 = vmatprep.subr.mxu0 0.0
      %1009 = vmatpush1.msra.mxu0 0.0
      %1010 = vmatprep.subr.mxu0 0.0
      %1011 = vmatpush1.msra.mxu0 0.0
      %1012 = vmatprep.subr.mxu0 0.0
      %1013 = vmatpush1.msra.mxu0 0.0
      %1014 = vmatprep.subr.mxu0 0.0
      %1015 = vmatpush1.msra.mxu0 0.0
      %1016 = vmatprep.subr.mxu0 0.0
      %1017 = vmatpush1.msra.mxu0 0.0
      %1018 = vmatprep.subr.mxu0 0.0
      %1019 = vmatpush1.msra.mxu0 0.0
      %1020 = vmatprep.subr.mxu0 0.0
      %1021 = vmatpush1.msra.mxu0 0.0
      %1022 = vmatprep.subr.mxu0 0.0
      %1023 = vmatpush1.msra.mxu0 0.0
      %1024 = vmatprep.subr.mxu0 0.0
      %1025 = vmatpush1.msra.mxu0 0.0
      %1026 = vmatprep.subr.mxu0 0.0
      %1027 = vmatpush1.msra.mxu0 0.0
      %1028 = vmatprep.mubr.f32.mxu0 0.0
      %1029 = vmatmul.mubr.f32.gmra.mrb[0].mxu0 %v884
      %v1030 = vpop.f32.mrb[0].mxu0
      %v1031 = vadd.f32 0.0, %v1030
      %v1032 = vpop.f32.mrb[0].mxu0
      %v1033 = vadd.f32 0.0, %v1032
      %1034 = vdwg.mxu0
      %v1035 = vadd.f32 %v889, %v960
      %v1036 = vadd.f32 %v890, %v962
      %v1037 = vadd.f32 %v891, %v1031
      %v1038 = vadd.f32 %v892, %v1033
      %v1039 = vmul.f32 %v1035, 0.5
      %v1040 = vtanh.pop %v1039
      %v1041 = vmul.f32 %v1040, 0.5
      %v1042 = vadd.f32 %v1041, 0.5
      %v1043 = vmul.f32 %v1036, 0.5
      %v1044 = vtanh.pop %v1043
      %v1045 = vmul.f32 %v1044, 0.5
      %v1046 = vadd.f32 %v1045, 0.5
      %v1047 = vtanh.pop %v1037
      %v1048 = vmul.f32 %v1038, 0.5
      %v1049 = vtanh.pop %v1048
      %v1050 = vmul.f32 %v1049, 0.5
      %v1051 = vadd.f32 %v1050, 0.5
      %v1052 = vmul.f32 %v1046, %v882
      %v1053 = vmul.f32 %v1042, %v1047
      %v1054 = vadd.f32 %v1052, %v1053
      %v1055 = vtanh.pop %v1054
      %v1056 = vmul.f32 %v1051, %v1055
      %s1057 = scalar_lea.vmem [#allocation3], 8
      %1058 = vst [vmem:[%s1057] sm:$0xff] %v1056
      %s1059 = smul.u32 2, 4
      %s1060 = smul.addr %s1059, 8
      %s1061 = scalar_lea.vmem [#allocation2], %s1060
      %v1062 = vld [vmem:[%s1061] sm:$0xff]
      %v1063 = vld [vmem:[%s1061 + $0x8] sm:$0xff]
      %v1064 = vld [vmem:[%s1061 + $0x10] sm:$0xff]
      %v1065 = vld [vmem:[%s1061 + $0x18] sm:$0xff]
      %1066 = vmatprep.subr.mxu0 %v651
      %1067 = vmatpush1.msra.mxu0 %v650
      %1068 = vmatprep.subr.mxu0 %v655
      %1069 = vmatpush1.msra.mxu0 %v654
      %1070 = vmatprep.subr.mxu0 %v659
      %1071 = vmatpush1.msra.mxu0 %v658
      %1072 = vmatprep.subr.mxu0 %v663
      %1073 = vmatpush1.msra.mxu0 %v662
      %1074 = vmatprep.subr.mxu0 %v667
      %1075 = vmatpush1.msra.mxu0 %v666
      %1076 = vmatprep.subr.mxu0 %v671
      %1077 = vmatpush1.msra.mxu0 %v670
      %1078 = vmatprep.subr.mxu0 %v675
      %1079 = vmatpush1.msra.mxu0 %v674
      %1080 = vmatprep.subr.mxu0 %v679
      %1081 = vmatpush1.msra.mxu0 %v678
      %1082 = vmatprep.subr.mxu0 %v683
      %1083 = vmatpush1.msra.mxu0 %v682
      %1084 = vmatprep.subr.mxu0 %v687
      %1085 = vmatpush1.msra.mxu0 %v686
      %1086 = vmatprep.subr.mxu0 %v691
      %1087 = vmatpush1.msra.mxu0 %v690
      %1088 = vmatprep.subr.mxu0 %v695
      %1089 = vmatpush1.msra.mxu0 %v694
      %1090 = vmatprep.subr.mxu0 %v699
      %1091 = vmatpush1.msra.mxu0 %v698
      %1092 = vmatprep.subr.mxu0 %v703
      %1093 = vmatpush1.msra.mxu0 %v702
      %1094 = vmatprep.subr.mxu0 %v707
      %1095 = vmatpush1.msra.mxu0 %v706
      %1096 = vmatprep.subr.mxu0 %v711
      %1097 = vmatpush1.msra.mxu0 %v710
      %1098 = vmatprep.subr.mxu0 0.0
      %1099 = vmatpush1.msra.mxu0 0.0
      %1100 = vmatprep.subr.mxu0 0.0
      %1101 = vmatpush1.msra.mxu0 0.0
      %1102 = vmatprep.subr.mxu0 0.0
      %1103 = vmatpush1.msra.mxu0 0.0
      %1104 = vmatprep.subr.mxu0 0.0
      %1105 = vmatpush1.msra.mxu0 0.0
      %1106 = vmatprep.subr.mxu0 0.0
      %1107 = vmatpush1.msra.mxu0 0.0
      %1108 = vmatprep.subr.mxu0 0.0
      %1109 = vmatpush1.msra.mxu0 0.0
      %1110 = vmatprep.subr.mxu0 0.0
      %1111 = vmatpush1.msra.mxu0 0.0
      %1112 = vmatprep.subr.mxu0 0.0
      %1113 = vmatpush1.msra.mxu0 0.0
      %1114 = vmatprep.subr.mxu0 0.0
      %1115 = vmatpush1.msra.mxu0 0.0
      %1116 = vmatprep.subr.mxu0 0.0
      %1117 = vmatpush1.msra.mxu0 0.0
      %1118 = vmatprep.subr.mxu0 0.0
      %1119 = vmatpush1.msra.mxu0 0.0
      %1120 = vmatprep.subr.mxu0 0.0
      %1121 = vmatpush1.msra.mxu0 0.0
      %1122 = vmatprep.subr.mxu0 0.0
      %1123 = vmatpush1.msra.mxu0 0.0
      %1124 = vmatprep.subr.mxu0 0.0
      %1125 = vmatpush1.msra.mxu0 0.0
      %1126 = vmatprep.subr.mxu0 0.0
      %1127 = vmatpush1.msra.mxu0 0.0
      %1128 = vmatprep.subr.mxu0 0.0
      %1129 = vmatpush1.msra.mxu0 0.0
      %1130 = vmatprep.mubr.f32.mxu0 0.0
      %1131 = vmatmul.mubr.f32.gmra.mrb[0].mxu0 %v1056
      %v1132 = vpop.f32.mrb[0].mxu0
      %v1133 = vadd.f32 0.0, %v1132
      %v1134 = vpop.f32.mrb[0].mxu0
      %v1135 = vadd.f32 0.0, %v1134
      %1136 = vdwg.mxu0
      %1137 = vmatprep.subr.mxu0 %v653
      %1138 = vmatpush1.msra.mxu0 %v652
      %1139 = vmatprep.subr.mxu0 %v657
      %1140 = vmatpush1.msra.mxu0 %v656
      %1141 = vmatprep.subr.mxu0 %v661
      %1142 = vmatpush1.msra.mxu0 %v660
      %1143 = vmatprep.subr.mxu0 %v665
      %1144 = vmatpush1.msra.mxu0 %v664
      %1145 = vmatprep.subr.mxu0 %v669
      %1146 = vmatpush1.msra.mxu0 %v668
      %1147 = vmatprep.subr.mxu0 %v673
      %1148 = vmatpush1.msra.mxu0 %v672
      %1149 = vmatprep.subr.mxu0 %v677
      %1150 = vmatpush1.msra.mxu0 %v676
      %1151 = vmatprep.subr.mxu0 %v681
      %1152 = vmatpush1.msra.mxu0 %v680
      %1153 = vmatprep.subr.mxu0 %v685
      %1154 = vmatpush1.msra.mxu0 %v684
      %1155 = vmatprep.subr.mxu0 %v689
      %1156 = vmatpush1.msra.mxu0 %v688
      %1157 = vmatprep.subr.mxu0 %v693
      %1158 = vmatpush1.msra.mxu0 %v692
      %1159 = vmatprep.subr.mxu0 %v697
      %1160 = vmatpush1.msra.mxu0 %v696
      %1161 = vmatprep.subr.mxu0 %v701
      %1162 = vmatpush1.msra.mxu0 %v700
      %1163 = vmatprep.subr.mxu0 %v705
      %1164 = vmatpush1.msra.mxu0 %v704
      %1165 = vmatprep.subr.mxu0 %v709
      %1166 = vmatpush1.msra.mxu0 %v708
      %1167 = vmatprep.subr.mxu0 %v713
      %1168 = vmatpush1.msra.mxu0 %v712
      %1169 = vmatprep.subr.mxu0 0.0
      %1170 = vmatpush1.msra.mxu0 0.0
      %1171 = vmatprep.subr.mxu0 0.0
      %1172 = vmatpush1.msra.mxu0 0.0
      %1173 = vmatprep.subr.mxu0 0.0
      %1174 = vmatpush1.msra.mxu0 0.0
      %1175 = vmatprep.subr.mxu0 0.0
      %1176 = vmatpush1.msra.mxu0 0.0
      %1177 = vmatprep.subr.mxu0 0.0
      %1178 = vmatpush1.msra.mxu0 0.0
      %1179 = vmatprep.subr.mxu0 0.0
      %1180 = vmatpush1.msra.mxu0 0.0
      %1181 = vmatprep.subr.mxu0 0.0
      %1182 = vmatpush1.msra.mxu0 0.0
      %1183 = vmatprep.subr.mxu0 0.0
      %1184 = vmatpush1.msra.mxu0 0.0
      %1185 = vmatprep.subr.mxu0 0.0
      %1186 = vmatpush1.msra.mxu0 0.0
      %1187 = vmatprep.subr.mxu0 0.0
      %1188 = vmatpush1.msra.mxu0 0.0
      %1189 = vmatprep.subr.mxu0 0.0
      %1190 = vmatpush1.msra.mxu0 0.0
      %1191 = vmatprep.subr.mxu0 0.0
      %1192 = vmatpush1.msra.mxu0 0.0
      %1193 = vmatprep.subr.mxu0 0.0
      %1194 = vmatpush1.msra.mxu0 0.0
      %1195 = vmatprep.subr.mxu0 0.0
      %1196 = vmatpush1.msra.mxu0 0.0
      %1197 = vmatprep.subr.mxu0 0.0
      %1198 = vmatpush1.msra.mxu0 0.0
      %1199 = vmatprep.subr.mxu0 0.0
      %1200 = vmatpush1.msra.mxu0 0.0
      %1201 = vmatprep.mubr.f32.mxu0 0.0
      %1202 = vmatmul.mubr.f32.gmra.mrb[0].mxu0 %v1056
      %v1203 = vpop.f32.mrb[0].mxu0
      %v1204 = vadd.f32 0.0, %v1203
      %v1205 = vpop.f32.mrb[0].mxu0
      %v1206 = vadd.f32 0.0, %v1205
      %1207 = vdwg.mxu0
      %v1208 = vadd.f32 %v1062, %v1133
      %v1209 = vadd.f32 %v1063, %v1135
      %v1210 = vadd.f32 %v1064, %v1204
      %v1211 = vadd.f32 %v1065, %v1206
      %v1212 = vmul.f32 %v1208, 0.5
      %v1213 = vtanh.pop %v1212
      %v1214 = vmul.f32 %v1213, 0.5
      %v1215 = vadd.f32 %v1214, 0.5
      %v1216 = vmul.f32 %v1209, 0.5
      %v1217 = vtanh.pop %v1216
      %v1218 = vmul.f32 %v1217, 0.5
      %v1219 = vadd.f32 %v1218, 0.5
      %v1220 = vtanh.pop %v1210
      %v1221 = vmul.f32 %v1211, 0.5
      %v1222 = vtanh.pop %v1221
      %v1223 = vmul.f32 %v1222, 0.5
      %v1224 = vadd.f32 %v1223, 0.5
      %v1225 = vmul.f32 %v1219, %v1054
      %v1226 = vmul.f32 %v1215, %v1220
      %v1227 = vadd.f32 %v1225, %v1226
      %v1228 = vtanh.pop %v1227
      %v1229 = vmul.f32 %v1224, %v1228
      %s1230 = scalar_lea.vmem [#allocation3], 16
      %1231 = vst [vmem:[%s1230] sm:$0xff] %v1229
      %s1232 = smul.u32 3, 4
      %s1233 = smul.addr %s1232, 8
      %s1234 = scalar_lea.vmem [#allocation2], %s1233
      %v1235 = vld [vmem:[%s1234] sm:$0xff]
      %v1236 = vld [vmem:[%s1234 + $0x8] sm:$0xff]
      %v1237 = vld [vmem:[%s1234 + $0x10] sm:$0xff]
      %v1238 = vld [vmem:[%s1234 + $0x18] sm:$0xff]
      %1239 = vmatprep.subr.mxu0 %v651
      %1240 = vmatpush1.msra.mxu0 %v650
      %1241 = vmatprep.subr.mxu0 %v655
      %1242 = vmatpush1.msra.mxu0 %v654
      %1243 = vmatprep.subr.mxu0 %v659
      %1244 = vmatpush1.msra.mxu0 %v658
      %1245 = vmatprep.subr.mxu0 %v663
      %1246 = vmatpush1.msra.mxu0 %v662
      %1247 = vmatprep.subr.mxu0 %v667
      %1248 = vmatpush1.msra.mxu0 %v666
      %1249 = vmatprep.subr.mxu0 %v671
      %1250 = vmatpush1.msra.mxu0 %v670
      %1251 = vmatprep.subr.mxu0 %v675
      %1252 = vmatpush1.msra.mxu0 %v674
      %1253 = vmatprep.subr.mxu0 %v679
      %1254 = vmatpush1.msra.mxu0 %v678
      %1255 = vmatprep.subr.mxu0 %v683
      %1256 = vmatpush1.msra.mxu0 %v682
      %1257 = vmatprep.subr.mxu0 %v687
      %1258 = vmatpush1.msra.mxu0 %v686
      %1259 = vmatprep.subr.mxu0 %v691
      %1260 = vmatpush1.msra.mxu0 %v690
      %1261 = vmatprep.subr.mxu0 %v695
      %1262 = vmatpush1.msra.mxu0 %v694
      %1263 = vmatprep.subr.mxu0 %v699
      %1264 = vmatpush1.msra.mxu0 %v698
      %1265 = vmatprep.subr.mxu0 %v703
      %1266 = vmatpush1.msra.mxu0 %v702
      %1267 = vmatprep.subr.mxu0 %v707
      %1268 = vmatpush1.msra.mxu0 %v706
      %1269 = vmatprep.subr.mxu0 %v711
      %1270 = vmatpush1.msra.mxu0 %v710
      %1271 = vmatprep.subr.mxu0 0.0
      %1272 = vmatpush1.msra.mxu0 0.0
      %1273 = vmatprep.subr.mxu0 0.0
      %1274 = vmatpush1.msra.mxu0 0.0
      %1275 = vmatprep.subr.mxu0 0.0
      %1276 = vmatpush1.msra.mxu0 0.0
      %1277 = vmatprep.subr.mxu0 0.0
      %1278 = vmatpush1.msra.mxu0 0.0
      %1279 = vmatprep.subr.mxu0 0.0
      %1280 = vmatpush1.msra.mxu0 0.0
      %1281 = vmatprep.subr.mxu0 0.0
      %1282 = vmatpush1.msra.mxu0 0.0
      %1283 = vmatprep.subr.mxu0 0.0
      %1284 = vmatpush1.msra.mxu0 0.0
      %1285 = vmatprep.subr.mxu0 0.0
      %1286 = vmatpush1.msra.mxu0 0.0
      %1287 = vmatprep.subr.mxu0 0.0
      %1288 = vmatpush1.msra.mxu0 0.0
      %1289 = vmatprep.subr.mxu0 0.0
      %1290 = vmatpush1.msra.mxu0 0.0
      %1291 = vmatprep.subr.mxu0 0.0
      %1292 = vmatpush1.msra.mxu0 0.0
      %1293 = vmatprep.subr.mxu0 0.0
      %1294 = vmatpush1.msra.mxu0 0.0
      %1295 = vmatprep.subr.mxu0 0.0
      %1296 = vmatpush1.msra.mxu0 0.0
      %1297 = vmatprep.subr.mxu0 0.0
      %1298 = vmatpush1.msra.mxu0 0.0
      %1299 = vmatprep.subr.mxu0 0.0
      %1300 = vmatpush1.msra.mxu0 0.0
      %1301 = vmatprep.subr.mxu0 0.0
      %1302 = vmatpush1.msra.mxu0 0.0
      %1303 = vmatprep.mubr.f32.mxu0 0.0
      %1304 = vmatmul.mubr.f32.gmra.mrb[0].mxu0 %v1229
      %v1305 = vpop.f32.mrb[0].mxu0
      %v1306 = vadd.f32 0.0, %v1305
      %v1307 = vpop.f32.mrb[0].mxu0
      %v1308 = vadd.f32 0.0, %v1307
      %1309 = vdwg.mxu0
      %1310 = vmatprep.subr.mxu0 %v653
      %1311 = vmatpush1.msra.mxu0 %v652
      %1312 = vmatprep.subr.mxu0 %v657
      %1313 = vmatpush1.msra.mxu0 %v656
      %1314 = vmatprep.subr.mxu0 %v661
      %1315 = vmatpush1.msra.mxu0 %v660
      %1316 = vmatprep.subr.mxu0 %v665
      %1317 = vmatpush1.msra.mxu0 %v664
      %1318 = vmatprep.subr.mxu0 %v669
      %1319 = vmatpush1.msra.mxu0 %v668
      %1320 = vmatprep.subr.mxu0 %v673
      %1321 = vmatpush1.msra.mxu0 %v672
      %1322 = vmatprep.subr.mxu0 %v677
      %1323 = vmatpush1.msra.mxu0 %v676
      %1324 = vmatprep.subr.mxu0 %v681
      %1325 = vmatpush1.msra.mxu0 %v680
      %1326 = vmatprep.subr.mxu0 %v685
      %1327 = vmatpush1.msra.mxu0 %v684
      %1328 = vmatprep.subr.mxu0 %v689
      %1329 = vmatpush1.msra.mxu0 %v688
      %1330 = vmatprep.subr.mxu0 %v693
      %1331 = vmatpush1.msra.mxu0 %v692
      %1332 = vmatprep.subr.mxu0 %v697
      %1333 = vmatpush1.msra.mxu0 %v696
      %1334 = vmatprep.subr.mxu0 %v701
      %1335 = vmatpush1.msra.mxu0 %v700
      %1336 = vmatprep.subr.mxu0 %v705
      %1337 = vmatpush1.msra.mxu0 %v704
      %1338 = vmatprep.subr.mxu0 %v709
      %1339 = vmatpush1.msra.mxu0 %v708
      %1340 = vmatprep.subr.mxu0 %v713
      %1341 = vmatpush1.msra.mxu0 %v712
      %1342 = vmatprep.subr.mxu0 0.0
      %1343 = vmatpush1.msra.mxu0 0.0
      %1344 = vmatprep.subr.mxu0 0.0
      %1345 = vmatpush1.msra.mxu0 0.0
      %1346 = vmatprep.subr.mxu0 0.0
      %1347 = vmatpush1.msra.mxu0 0.0
      %1348 = vmatprep.subr.mxu0 0.0
      %1349 = vmatpush1.msra.mxu0 0.0
      %1350 = vmatprep.subr.mxu0 0.0
      %1351 = vmatpush1.msra.mxu0 0.0
      %1352 = vmatprep.subr.mxu0 0.0
      %1353 = vmatpush1.msra.mxu0 0.0
      %1354 = vmatprep.subr.mxu0 0.0
      %1355 = vmatpush1.msra.mxu0 0.0
      %1356 = vmatprep.subr.mxu0 0.0
      %1357 = vmatpush1.msra.mxu0 0.0
      %1358 = vmatprep.subr.mxu0 0.0
      %1359 = vmatpush1.msra.mxu0 0.0
      %1360 = vmatprep.subr.mxu0 0.0
      %1361 = vmatpush1.msra.mxu0 0.0
      %1362 = vmatprep.subr.mxu0 0.0
      %1363 = vmatpush1.msra.mxu0 0.0
      %1364 = vmatprep.subr.mxu0 0.0
      %1365 = vmatpush1.msra.mxu0 0.0
      %1366 = vmatprep.subr.mxu0 0.0
      %1367 = vmatpush1.msra.mxu0 0.0
      %1368 = vmatprep.subr.mxu0 0.0
      %1369 = vmatpush1.msra.mxu0 0.0
      %1370 = vmatprep.subr.mxu0 0.0
      %1371 = vmatpush1.msra.mxu0 0.0
      %1372 = vmatprep.subr.mxu0 0.0
      %1373 = vmatpush1.msra.mxu0 0.0
      %1374 = vmatprep.mubr.f32.mxu0 0.0
      %1375 = vmatmul.mubr.f32.gmra.mrb[0].mxu0 %v1229
      %v1376 = vpop.f32.mrb[0].mxu0
      %v1377 = vadd.f32 0.0, %v1376
      %v1378 = vpop.f32.mrb[0].mxu0
      %v1379 = vadd.f32 0.0, %v1378
      %1380 = vdwg.mxu0
      %v1381 = vadd.f32 %v1235, %v1306
      %v1382 = vadd.f32 %v1236, %v1308
      %v1383 = vadd.f32 %v1237, %v1377
      %v1384 = vadd.f32 %v1238, %v1379
      %v1385 = vmul.f32 %v1381, 0.5
      %v1386 = vtanh.pop %v1385
      %v1387 = vmul.f32 %v1386, 0.5
      %v1388 = vadd.f32 %v1387, 0.5
      %v1389 = vmul.f32 %v1382, 0.5
      %v1390 = vtanh.pop %v1389
      %v1391 = vmul.f32 %v1390, 0.5
      %v1392 = vadd.f32 %v1391, 0.5
      %v1393 = vtanh.pop %v1383
      %v1394 = vmul.f32 %v1384, 0.5
      %v1395 = vtanh.pop %v1394
      %v1396 = vmul.f32 %v1395, 0.5
      %v1397 = vadd.f32 %v1396, 0.5
      %v1398 = vmul.f32 %v1392, %v1227
      %v1399 = vmul.f32 %v1388, %v1393
      %v1400 = vadd.f32 %v1398, %v1399
      %v1401 = vtanh.pop %v1400
      %v1402 = vmul.f32 %v1397, %v1401
      %s1403 = scalar_lea.vmem [#allocation3], 24
      %1404 = vst [vmem:[%s1403] sm:$0xff] %v1402
      %s1405 = smul.u32 4, 4
      %s1406 = smul.addr %s1405, 8
      %s1407 = scalar_lea.vmem [#allocation2], %s1406
      %v1408 = vld [vmem:[%s1407] sm:$0xff]
      %v1409 = vld [vmem:[%s1407 + $0x8] sm:$0xff]
      %v1410 = vld [vmem:[%s1407 + $0x10] sm:$0xff]
      %v1411 = vld [vmem:[%s1407 + $0x18] sm:$0xff]
      %1412 = vmatprep.subr.mxu0 %v651
      %1413 = vmatpush1.msra.mxu0 %v650
      %1414 = vmatprep.subr.mxu0 %v655
      %1415 = vmatpush1.msra.mxu0 %v654
      %1416 = vmatprep.subr.mxu0 %v659
      %1417 = vmatpush1.msra.mxu0 %v658
      %1418 = vmatprep.subr.mxu0 %v663
      %1419 = vmatpush1.msra.mxu0 %v662
      %1420 = vmatprep.subr.mxu0 %v667
      %1421 = vmatpush1.msra.mxu0 %v666
      %1422 = vmatprep.subr.mxu0 %v671
      %1423 = vmatpush1.msra.mxu0 %v670
      %1424 = vmatprep.subr.mxu0 %v675
      %1425 = vmatpush1.msra.mxu0 %v674
      %1426 = vmatprep.subr.mxu0 %v679
      %1427 = vmatpush1.msra.mxu0 %v678
      %1428 = vmatprep.subr.mxu0 %v683
      %1429 = vmatpush1.msra.mxu0 %v682
      %1430 = vmatprep.subr.mxu0 %v687
      %1431 = vmatpush1.msra.mxu0 %v686
      %1432 = vmatprep.subr.mxu0 %v691
      %1433 = vmatpush1.msra.mxu0 %v690
      %1434 = vmatprep.subr.mxu0 %v695
      %1435 = vmatpush1.msra.mxu0 %v694
      %1436 = vmatprep.subr.mxu0 %v699
      %1437 = vmatpush1.msra.mxu0 %v698
      %1438 = vmatprep.subr.mxu0 %v703
      %1439 = vmatpush1.msra.mxu0 %v702
      %1440 = vmatprep.subr.mxu0 %v707
      %1441 = vmatpush1.msra.mxu0 %v706
      %1442 = vmatprep.subr.mxu0 %v711
      %1443 = vmatpush1.msra.mxu0 %v710
      %1444 = vmatprep.subr.mxu0 0.0
      %1445 = vmatpush1.msra.mxu0 0.0
      %1446 = vmatprep.subr.mxu0 0.0
      %1447 = vmatpush1.msra.mxu0 0.0
      %1448 = vmatprep.subr.mxu0 0.0
      %1449 = vmatpush1.msra.mxu0 0.0
      %1450 = vmatprep.subr.mxu0 0.0
      %1451 = vmatpush1.msra.mxu0 0.0
      %1452 = vmatprep.subr.mxu0 0.0
      %1453 = vmatpush1.msra.mxu0 0.0
      %1454 = vmatprep.subr.mxu0 0.0
      %1455 = vmatpush1.msra.mxu0 0.0
      %1456 = vmatprep.subr.mxu0 0.0
      %1457 = vmatpush1.msra.mxu0 0.0
      %1458 = vmatprep.subr.mxu0 0.0
      %1459 = vmatpush1.msra.mxu0 0.0
      %1460 = vmatprep.subr.mxu0 0.0
      %1461 = vmatpush1.msra.mxu0 0.0
      %1462 = vmatprep.subr.mxu0 0.0
      %1463 = vmatpush1.msra.mxu0 0.0
      %1464 = vmatprep.subr.mxu0 0.0
      %1465 = vmatpush1.msra.mxu0 0.0
      %1466 = vmatprep.subr.mxu0 0.0
      %1467 = vmatpush1.msra.mxu0 0.0
      %1468 = vmatprep.subr.mxu0 0.0
      %1469 = vmatpush1.msra.mxu0 0.0
      %1470 = vmatprep.subr.mxu0 0.0
      %1471 = vmatpush1.msra.mxu0 0.0
      %1472 = vmatprep.subr.mxu0 0.0
      %1473 = vmatpush1.msra.mxu0 0.0
      %1474 = vmatprep.subr.mxu0 0.0
      %1475 = vmatpush1.msra.mxu0 0.0
      %1476 = vmatprep.mubr.f32.mxu0 0.0
      %1477 = vmatmul.mubr.f32.gmra.mrb[0].mxu0 %v1402
      %v1478 = vpop.f32.mrb[0].mxu0
      %v1479 = vadd.f32 0.0, %v1478
      %v1480 = vpop.f32.mrb[0].mxu0
      %v1481 = vadd.f32 0.0, %v1480
      %1482 = vdwg.mxu0
      %1483 = vmatprep.subr.mxu0 %v653
      %1484 = vmatpush1.msra.mxu0 %v652
      %1485 = vmatprep.subr.mxu0 %v657
      %1486 = vmatpush1.msra.mxu0 %v656
      %1487 = vmatprep.subr.mxu0 %v661
      %1488 = vmatpush1.msra.mxu0 %v660
      %1489 = vmatprep.subr.mxu0 %v665
      %1490 = vmatpush1.msra.mxu0 %v664
      %1491 = vmatprep.subr.mxu0 %v669
      %1492 = vmatpush1.msra.mxu0 %v668
      %1493 = vmatprep.subr.mxu0 %v673
      %1494 = vmatpush1.msra.mxu0 %v672
      %1495 = vmatprep.subr.mxu0 %v677
      %1496 = vmatpush1.msra.mxu0 %v676
      %1497 = vmatprep.subr.mxu0 %v681
      %1498 = vmatpush1.msra.mxu0 %v680
      %1499 = vmatprep.subr.mxu0 %v685
      %1500 = vmatpush1.msra.mxu0 %v684
      %1501 = vmatprep.subr.mxu0 %v689
      %1502 = vmatpush1.msra.mxu0 %v688
      %1503 = vmatprep.subr.mxu0 %v693
      %1504 = vmatpush1.msra.mxu0 %v692
      %1505 = vmatprep.subr.mxu0 %v697
      %1506 = vmatpush1.msra.mxu0 %v696
      %1507 = vmatprep.subr.mxu0 %v701
      %1508 = vmatpush1.msra.mxu0 %v700
      %1509 = vmatprep.subr.mxu0 %v705
      %1510 = vmatpush1.msra.mxu0 %v704
      %1511 = vmatprep.subr.mxu0 %v709
      %1512 = vmatpush1.msra.mxu0 %v708
      %1513 = vmatprep.subr.mxu0 %v713
      %1514 = vmatpush1.msra.mxu0 %v712
      %1515 = vmatprep.subr.mxu0 0.0
      %1516 = vmatpush1.msra.mxu0 0.0
      %1517 = vmatprep.subr.mxu0 0.0
      %1518 = vmatpush1.msra.mxu0 0.0
      %1519 = vmatprep.subr.mxu0 0.0
      %1520 = vmatpush1.msra.mxu0 0.0
      %1521 = vmatprep.subr.mxu0 0.0
      %1522 = vmatpush1.msra.mxu0 0.0
      %1523 = vmatprep.subr.mxu0 0.0
      %1524 = vmatpush1.msra.mxu0 0.0
      %1525 = vmatprep.subr.mxu0 0.0
      %1526 = vmatpush1.msra.mxu0 0.0
      %1527 = vmatprep.subr.mxu0 0.0
      %1528 = vmatpush1.msra.mxu0 0.0
      %1529 = vmatprep.subr.mxu0 0.0
      %1530 = vmatpush1.msra.mxu0 0.0
      %1531 = vmatprep.subr.mxu0 0.0
      %1532 = vmatpush1.msra.mxu0 0.0
      %1533 = vmatprep.subr.mxu0 0.0
      %1534 = vmatpush1.msra.mxu0 0.0
      %1535 = vmatprep.subr.mxu0 0.0
      %1536 = vmatpush1.msra.mxu0 0.0
      %1537 = vmatprep.subr.mxu0 0.0
      %1538 = vmatpush1.msra.mxu0 0.0
      %1539 = vmatprep.subr.mxu0 0.0
      %1540 = vmatpush1.msra.mxu0 0.0
      %1541 = vmatprep.subr.mxu0 0.0
      %1542 = vmatpush1.msra.mxu0 0.0
      %1543 = vmatprep.subr.mxu0 0.0
      %1544 = vmatpush1.msra.mxu0 0.0
      %1545 = vmatprep.subr.mxu0 0.0
      %1546 = vmatpush1.msra.mxu0 0.0
      %1547 = vmatprep.mubr.f32.mxu0 0.0
      %1548 = vmatmul.mubr.f32.gmra.mrb[0].mxu0 %v1402
      %v1549 = vpop.f32.mrb[0].mxu0
      %v1550 = vadd.f32 0.0, %v1549
      %v1551 = vpop.f32.mrb[0].mxu0
      %v1552 = vadd.f32 0.0, %v1551
      %1553 = vdwg.mxu0
      %v1554 = vadd.f32 %v1408, %v1479
      %v1555 = vadd.f32 %v1409, %v1481
      %v1556 = vadd.f32 %v1410, %v1550
      %v1557 = vadd.f32 %v1411, %v1552
      %v1558 = vmul.f32 %v1554, 0.5
      %v1559 = vtanh.pop %v1558
      %v1560 = vmul.f32 %v1559, 0.5
      %v1561 = vadd.f32 %v1560, 0.5
      %v1562 = vmul.f32 %v1555, 0.5
      %v1563 = vtanh.pop %v1562
      %v1564 = vmul.f32 %v1563, 0.5
      %v1565 = vadd.f32 %v1564, 0.5
      %v1566 = vtanh.pop %v1556
      %v1567 = vmul.f32 %v1557, 0.5
      %v1568 = vtanh.pop %v1567
      %v1569 = vmul.f32 %v1568, 0.5
      %v1570 = vadd.f32 %v1569, 0.5
      %v1571 = vmul.f32 %v1565, %v1400
      %v1572 = vmul.f32 %v1561, %v1566
      %v1573 = vadd.f32 %v1571, %v1572
      %v1574 = vtanh.pop %v1573
      %v1575 = vmul.f32 %v1570, %v1574
      %s1576 = scalar_lea.vmem [#allocation3], 32
      %1577 = vst [vmem:[%s1576] sm:$0xff] %v1575
      %s1578 = smul.u32 5, 4
      %s1579 = smul.addr %s1578, 8
      %s1580 = scalar_lea.vmem [#allocation2], %s1579
      %v1581 = vld [vmem:[%s1580] sm:$0xff]
      %v1582 = vld [vmem:[%s1580 + $0x8] sm:$0xff]
      %v1583 = vld [vmem:[%s1580 + $0x10] sm:$0xff]
      %v1584 = vld [vmem:[%s1580 + $0x18] sm:$0xff]
      %1585 = vmatprep.subr.mxu0 %v651
      %1586 = vmatpush1.msra.mxu0 %v650
      %1587 = vmatprep.subr.mxu0 %v655
      %1588 = vmatpush1.msra.mxu0 %v654
      %1589 = vmatprep.subr.mxu0 %v659
      %1590 = vmatpush1.msra.mxu0 %v658
      %1591 = vmatprep.subr.mxu0 %v663
      %1592 = vmatpush1.msra.mxu0 %v662
      %1593 = vmatprep.subr.mxu0 %v667
      %1594 = vmatpush1.msra.mxu0 %v666
      %1595 = vmatprep.subr.mxu0 %v671
      %1596 = vmatpush1.msra.mxu0 %v670
      %1597 = vmatprep.subr.mxu0 %v675
      %1598 = vmatpush1.msra.mxu0 %v674
      %1599 = vmatprep.subr.mxu0 %v679
      %1600 = vmatpush1.msra.mxu0 %v678
      %1601 = vmatprep.subr.mxu0 %v683
      %1602 = vmatpush1.msra.mxu0 %v682
      %1603 = vmatprep.subr.mxu0 %v687
      %1604 = vmatpush1.msra.mxu0 %v686
      %1605 = vmatprep.subr.mxu0 %v691
      %1606 = vmatpush1.msra.mxu0 %v690
      %1607 = vmatprep.subr.mxu0 %v695
      %1608 = vmatpush1.msra.mxu0 %v694
      %1609 = vmatprep.subr.mxu0 %v699
      %1610 = vmatpush1.msra.mxu0 %v698
      %1611 = vmatprep.subr.mxu0 %v703
      %1612 = vmatpush1.msra.mxu0 %v702
      %1613 = vmatprep.subr.mxu0 %v707
      %1614 = vmatpush1.msra.mxu0 %v706
      %1615 = vmatprep.subr.mxu0 %v711
      %1616 = vmatpush1.msra.mxu0 %v710
      %1617 = vmatprep.subr.mxu0 0.0
      %1618 = vmatpush1.msra.mxu0 0.0
      %1619 = vmatprep.subr.mxu0 0.0
      %1620 = vmatpush1.msra.mxu0 0.0
      %1621 = vmatprep.subr.mxu0 0.0
      %1622 = vmatpush1.msra.mxu0 0.0
      %1623 = vmatprep.subr.mxu0 0.0
      %1624 = vmatpush1.msra.mxu0 0.0
      %1625 = vmatprep.subr.mxu0 0.0
      %1626 = vmatpush1.msra.mxu0 0.0
      %1627 = vmatprep.subr.mxu0 0.0
      %1628 = vmatpush1.msra.mxu0 0.0
      %1629 = vmatprep.subr.mxu0 0.0
      %1630 = vmatpush1.msra.mxu0 0.0
      %1631 = vmatprep.subr.mxu0 0.0
      %1632 = vmatpush1.msra.mxu0 0.0
      %1633 = vmatprep.subr.mxu0 0.0
      %1634 = vmatpush1.msra.mxu0 0.0
      %1635 = vmatprep.subr.mxu0 0.0
      %1636 = vmatpush1.msra.mxu0 0.0
      %1637 = vmatprep.subr.mxu0 0.0
      %1638 = vmatpush1.msra.mxu0 0.0
      %1639 = vmatprep.subr.mxu0 0.0
      %1640 = vmatpush1.msra.mxu0 0.0
      %1641 = vmatprep.subr.mxu0 0.0
      %1642 = vmatpush1.msra.mxu0 0.0
      %1643 = vmatprep.subr.mxu0 0.0
      %1644 = vmatpush1.msra.mxu0 0.0
      %1645 = vmatprep.subr.mxu0 0.0
      %1646 = vmatpush1.msra.mxu0 0.0
      %1647 = vmatprep.subr.mxu0 0.0
      %1648 = vmatpush1.msra.mxu0 0.0
      %1649 = vmatprep.mubr.f32.mxu0 0.0
      %1650 = vmatmul.mubr.f32.gmra.mrb[0].mxu0 %v1575
      %v1651 = vpop.f32.mrb[0].mxu0
      %v1652 = vadd.f32 0.0, %v1651
      %v1653 = vpop.f32.mrb[0].mxu0
      %v1654 = vadd.f32 0.0, %v1653
      %1655 = vdwg.mxu0
      %1656 = vmatprep.subr.mxu0 %v653
      %1657 = vmatpush1.msra.mxu0 %v652
      %1658 = vmatprep.subr.mxu0 %v657
      %1659 = vmatpush1.msra.mxu0 %v656
      %1660 = vmatprep.subr.mxu0 %v661
      %1661 = vmatpush1.msra.mxu0 %v660
      %1662 = vmatprep.subr.mxu0 %v665
      %1663 = vmatpush1.msra.mxu0 %v664
      %1664 = vmatprep.subr.mxu0 %v669
      %1665 = vmatpush1.msra.mxu0 %v668
      %1666 = vmatprep.subr.mxu0 %v673
      %1667 = vmatpush1.msra.mxu0 %v672
      %1668 = vmatprep.subr.mxu0 %v677
      %1669 = vmatpush1.msra.mxu0 %v676
      %1670 = vmatprep.subr.mxu0 %v681
      %1671 = vmatpush1.msra.mxu0 %v680
      %1672 = vmatprep.subr.mxu0 %v685
      %1673 = vmatpush1.msra.mxu0 %v684
      %1674 = vmatprep.subr.mxu0 %v689
      %1675 = vmatpush1.msra.mxu0 %v688
      %1676 = vmatprep.subr.mxu0 %v693
      %1677 = vmatpush1.msra.mxu0 %v692
      %1678 = vmatprep.subr.mxu0 %v697
      %1679 = vmatpush1.msra.mxu0 %v696
      %1680 = vmatprep.subr.mxu0 %v701
      %1681 = vmatpush1.msra.mxu0 %v700
      %1682 = vmatprep.subr.mxu0 %v705
      %1683 = vmatpush1.msra.mxu0 %v704
      %1684 = vmatprep.subr.mxu0 %v709
      %1685 = vmatpush1.msra.mxu0 %v708
      %1686 = vmatprep.subr.mxu0 %v713
      %1687 = vmatpush1.msra.mxu0 %v712
      %1688 = vmatprep.subr.mxu0 0.0
      %1689 = vmatpush1.msra.mxu0 0.0
      %1690 = vmatprep.subr.mxu0 0.0
      %1691 = vmatpush1.msra.mxu0 0.0
      %1692 = vmatprep.subr.mxu0 0.0
      %1693 = vmatpush1.msra.mxu0 0.0
      %1694 = vmatprep.subr.mxu0 0.0
      %1695 = vmatpush1.msra.mxu0 0.0
      %1696 = vmatprep.subr.mxu0 0.0
      %1697 = vmatpush1.msra.mxu0 0.0
      %1698 = vmatprep.subr.mxu0 0.0
      %1699 = vmatpush1.msra.mxu0 0.0
      %1700 = vmatprep.subr.mxu0 0.0
      %1701 = vmatpush1.msra.mxu0 0.0
      %1702 = vmatprep.subr.mxu0 0.0
      %1703 = vmatpush1.msra.mxu0 0.0
      %1704 = vmatprep.subr.mxu0 0.0
      %1705 = vmatpush1.msra.mxu0 0.0
      %1706 = vmatprep.subr.mxu0 0.0
      %1707 = vmatpush1.msra.mxu0 0.0
      %1708 = vmatprep.subr.mxu0 0.0
      %1709 = vmatpush1.msra.mxu0 0.0
      %1710 = vmatprep.subr.mxu0 0.0
      %1711 = vmatpush1.msra.mxu0 0.0
      %1712 = vmatprep.subr.mxu0 0.0
      %1713 = vmatpush1.msra.mxu0 0.0
      %1714 = vmatprep.subr.mxu0 0.0
      %1715 = vmatpush1.msra.mxu0 0.0
      %1716 = vmatprep.subr.mxu0 0.0
      %1717 = vmatpush1.msra.mxu0 0.0
      %1718 = vmatprep.subr.mxu0 0.0
      %1719 = vmatpush1.msra.mxu0 0.0
      %1720 = vmatprep.mubr.f32.mxu0 0.0
      %1721 = vmatmul.mubr.f32.gmra.mrb[0].mxu0 %v1575
      %v1722 = vpop.f32.mrb[0].mxu0
      %v1723 = vadd.f32 0.0, %v1722
      %v1724 = vpop.f32.mrb[0].mxu0
      %v1725 = vadd.f32 0.0, %v1724
      %1726 = vdwg.mxu0
      %v1727 = vadd.f32 %v1581, %v1652
      %v1728 = vadd.f32 %v1582, %v1654
      %v1729 = vadd.f32 %v1583, %v1723
      %v1730 = vadd.f32 %v1584, %v1725
      %v1731 = vmul.f32 %v1727, 0.5
      %v1732 = vtanh.pop %v1731
      %v1733 = vmul.f32 %v1732, 0.5
      %v1734 = vadd.f32 %v1733, 0.5
      %v1735 = vmul.f32 %v1728, 0.5
      %v1736 = vtanh.pop %v1735
      %v1737 = vmul.f32 %v1736, 0.5
      %v1738 = vadd.f32 %v1737, 0.5
      %v1739 = vtanh.pop %v1729
      %v1740 = vmul.f32 %v1730, 0.5
      %v1741 = vtanh.pop %v1740
      %v1742 = vmul.f32 %v1741, 0.5
      %v1743 = vadd.f32 %v1742, 0.5
      %v1744 = vmul.f32 %v1738, %v1573
      %v1745 = vmul.f32 %v1734, %v1739
      %v1746 = vadd.f32 %v1744, %v1745
      %v1747 = vtanh.pop %v1746
      %v1748 = vmul.f32 %v1743, %v1747
      %s1749 = scalar_lea.vmem [#allocation3], 40
      %1750 = vst [vmem:[%s1749] sm:$0xff] %v1748
      %s1751 = smul.u32 6, 4
      %s1752 = smul.addr %s1751, 8
      %s1753 = scalar_lea.vmem [#allocation2], %s1752
      %v1754 = vld [vmem:[%s1753] sm:$0xff]
      %v1755 = vld [vmem:[%s1753 + $0x8] sm:$0xff]
      %v1756 = vld [vmem:[%s1753 + $0x10] sm:$0xff]
      %v1757 = vld [vmem:[%s1753 + $0x18] sm:$0xff]
      %1758 = vmatprep.subr.mxu0 %v651
      %1759 = vmatpush1.msra.mxu0 %v650
      %1760 = vmatprep.subr.mxu0 %v655
      %1761 = vmatpush1.msra.mxu0 %v654
      %1762 = vmatprep.subr.mxu0 %v659
      %1763 = vmatpush1.msra.mxu0 %v658
      %1764 = vmatprep.subr.mxu0 %v663
      %1765 = vmatpush1.msra.mxu0 %v662
      %1766 = vmatprep.subr.mxu0 %v667
      %1767 = vmatpush1.msra.mxu0 %v666
      %1768 = vmatprep.subr.mxu0 %v671
      %1769 = vmatpush1.msra.mxu0 %v670
      %1770 = vmatprep.subr.mxu0 %v675
      %1771 = vmatpush1.msra.mxu0 %v674
      %1772 = vmatprep.subr.mxu0 %v679
      %1773 = vmatpush1.msra.mxu0 %v678
      %1774 = vmatprep.subr.mxu0 %v683
      %1775 = vmatpush1.msra.mxu0 %v682
      %1776 = vmatprep.subr.mxu0 %v687
      %1777 = vmatpush1.msra.mxu0 %v686
      %1778 = vmatprep.subr.mxu0 %v691
      %1779 = vmatpush1.msra.mxu0 %v690
      %1780 = vmatprep.subr.mxu0 %v695
      %1781 = vmatpush1.msra.mxu0 %v694
      %1782 = vmatprep.subr.mxu0 %v699
      %1783 = vmatpush1.msra.mxu0 %v698
      %1784 = vmatprep.subr.mxu0 %v703
      %1785 = vmatpush1.msra.mxu0 %v702
      %1786 = vmatprep.subr.mxu0 %v707
      %1787 = vmatpush1.msra.mxu0 %v706
      %1788 = vmatprep.subr.mxu0 %v711
      %1789 = vmatpush1.msra.mxu0 %v710
      %1790 = vmatprep.subr.mxu0 0.0
      %1791 = vmatpush1.msra.mxu0 0.0
      %1792 = vmatprep.subr.mxu0 0.0
      %1793 = vmatpush1.msra.mxu0 0.0
      %1794 = vmatprep.subr.mxu0 0.0
      %1795 = vmatpush1.msra.mxu0 0.0
      %1796 = vmatprep.subr.mxu0 0.0
      %1797 = vmatpush1.msra.mxu0 0.0
      %1798 = vmatprep.subr.mxu0 0.0
      %1799 = vmatpush1.msra.mxu0 0.0
      %1800 = vmatprep.subr.mxu0 0.0
      %1801 = vmatpush1.msra.mxu0 0.0
      %1802 = vmatprep.subr.mxu0 0.0
      %1803 = vmatpush1.msra.mxu0 0.0
      %1804 = vmatprep.subr.mxu0 0.0
      %1805 = vmatpush1.msra.mxu0 0.0
      %1806 = vmatprep.subr.mxu0 0.0
      %1807 = vmatpush1.msra.mxu0 0.0
      %1808 = vmatprep.subr.mxu0 0.0
      %1809 = vmatpush1.msra.mxu0 0.0
      %1810 = vmatprep.subr.mxu0 0.0
      %1811 = vmatpush1.msra.mxu0 0.0
      %1812 = vmatprep.subr.mxu0 0.0
      %1813 = vmatpush1.msra.mxu0 0.0
      %1814 = vmatprep.subr.mxu0 0.0
      %1815 = vmatpush1.msra.mxu0 0.0
      %1816 = vmatprep.subr.mxu0 0.0
      %1817 = vmatpush1.msra.mxu0 0.0
      %1818 = vmatprep.subr.mxu0 0.0
      %1819 = vmatpush1.msra.mxu0 0.0
      %1820 = vmatprep.subr.mxu0 0.0
      %1821 = vmatpush1.msra.mxu0 0.0
      %1822 = vmatprep.mubr.f32.mxu0 0.0
      %1823 = vmatmul.mubr.f32.gmra.mrb[0].mxu0 %v1748
      %v1824 = vpop.f32.mrb[0].mxu0
      %v1825 = vadd.f32 0.0, %v1824
      %v1826 = vpop.f32.mrb[0].mxu0
      %v1827 = vadd.f32 0.0, %v1826
      %1828 = vdwg.mxu0
      %1829 = vmatprep.subr.mxu0 %v653
      %1830 = vmatpush1.msra.mxu0 %v652
      %1831 = vmatprep.subr.mxu0 %v657
      %1832 = vmatpush1.msra.mxu0 %v656
      %1833 = vmatprep.subr.mxu0 %v661
      %1834 = vmatpush1.msra.mxu0 %v660
      %1835 = vmatprep.subr.mxu0 %v665
      %1836 = vmatpush1.msra.mxu0 %v664
      %1837 = vmatprep.subr.mxu0 %v669
      %1838 = vmatpush1.msra.mxu0 %v668
      %1839 = vmatprep.subr.mxu0 %v673
      %1840 = vmatpush1.msra.mxu0 %v672
      %1841 = vmatprep.subr.mxu0 %v677
      %1842 = vmatpush1.msra.mxu0 %v676
      %1843 = vmatprep.subr.mxu0 %v681
      %1844 = vmatpush1.msra.mxu0 %v680
      %1845 = vmatprep.subr.mxu0 %v685
      %1846 = vmatpush1.msra.mxu0 %v684
      %1847 = vmatprep.subr.mxu0 %v689
      %1848 = vmatpush1.msra.mxu0 %v688
      %1849 = vmatprep.subr.mxu0 %v693
      %1850 = vmatpush1.msra.mxu0 %v692
      %1851 = vmatprep.subr.mxu0 %v697
      %1852 = vmatpush1.msra.mxu0 %v696
      %1853 = vmatprep.subr.mxu0 %v701
      %1854 = vmatpush1.msra.mxu0 %v700
      %1855 = vmatprep.subr.mxu0 %v705
      %1856 = vmatpush1.msra.mxu0 %v704
      %1857 = vmatprep.subr.mxu0 %v709
      %1858 = vmatpush1.msra.mxu0 %v708
      %1859 = vmatprep.subr.mxu0 %v713
      %1860 = vmatpush1.msra.mxu0 %v712
      %1861 = vmatprep.subr.mxu0 0.0
      %1862 = vmatpush1.msra.mxu0 0.0
      %1863 = vmatprep.subr.mxu0 0.0
      %1864 = vmatpush1.msra.mxu0 0.0
      %1865 = vmatprep.subr.mxu0 0.0
      %1866 = vmatpush1.msra.mxu0 0.0
      %1867 = vmatprep.subr.mxu0 0.0
      %1868 = vmatpush1.msra.mxu0 0.0
      %1869 = vmatprep.subr.mxu0 0.0
      %1870 = vmatpush1.msra.mxu0 0.0
      %1871 = vmatprep.subr.mxu0 0.0
      %1872 = vmatpush1.msra.mxu0 0.0
      %1873 = vmatprep.subr.mxu0 0.0
      %1874 = vmatpush1.msra.mxu0 0.0
      %1875 = vmatprep.subr.mxu0 0.0
      %1876 = vmatpush1.msra.mxu0 0.0
      %1877 = vmatprep.subr.mxu0 0.0
      %1878 = vmatpush1.msra.mxu0 0.0
      %1879 = vmatprep.subr.mxu0 0.0
      %1880 = vmatpush1.msra.mxu0 0.0
      %1881 = vmatprep.subr.mxu0 0.0
      %1882 = vmatpush1.msra.mxu0 0.0
      %1883 = vmatprep.subr.mxu0 0.0
      %1884 = vmatpush1.msra.mxu0 0.0
      %1885 = vmatprep.subr.mxu0 0.0
      %1886 = vmatpush1.msra.mxu0 0.0
      %1887 = vmatprep.subr.mxu0 0.0
      %1888 = vmatpush1.msra.mxu0 0.0
      %1889 = vmatprep.subr.mxu0 0.0
      %1890 = vmatpush1.msra.mxu0 0.0
      %1891 = vmatprep.subr.mxu0 0.0
      %1892 = vmatpush1.msra.mxu0 0.0
      %1893 = vmatprep.mubr.f32.mxu0 0.0
      %1894 = vmatmul.mubr.f32.gmra.mrb[0].mxu0 %v1748
      %v1895 = vpop.f32.mrb[0].mxu0
      %v1896 = vadd.f32 0.0, %v1895
      %v1897 = vpop.f32.mrb[0].mxu0
      %v1898 = vadd.f32 0.0, %v1897
      %1899 = vdwg.mxu0
      %v1900 = vadd.f32 %v1754, %v1825
      %v1901 = vadd.f32 %v1755, %v1827
      %v1902 = vadd.f32 %v1756, %v1896
      %v1903 = vadd.f32 %v1757, %v1898
      %v1904 = vmul.f32 %v1900, 0.5
      %v1905 = vtanh.pop %v1904
      %v1906 = vmul.f32 %v1905, 0.5
      %v1907 = vadd.f32 %v1906, 0.5
      %v1908 = vmul.f32 %v1901, 0.5
      %v1909 = vtanh.pop %v1908
      %v1910 = vmul.f32 %v1909, 0.5
      %v1911 = vadd.f32 %v1910, 0.5
      %v1912 = vtanh.pop %v1902
      %v1913 = vmul.f32 %v1903, 0.5
      %v1914 = vtanh.pop %v1913
      %v1915 = vmul.f32 %v1914, 0.5
      %v1916 = vadd.f32 %v1915, 0.5
      %v1917 = vmul.f32 %v1911, %v1746
      %v1918 = vmul.f32 %v1907, %v1912
      %v1919 = vadd.f32 %v1917, %v1918
      %v1920 = vtanh.pop %v1919
      %v1921 = vmul.f32 %v1916, %v1920
      %s1922 = scalar_lea.vmem [#allocation3], 48
      %1923 = vst [vmem:[%s1922] sm:$0xff] %v1921
      %s1924 = smul.u32 7, 4
      %s1925 = smul.addr %s1924, 8
      %s1926 = scalar_lea.vmem [#allocation2], %s1925
      %v1927 = vld [vmem:[%s1926] sm:$0xff]
      %v1928 = vld [vmem:[%s1926 + $0x8] sm:$0xff]
      %v1929 = vld [vmem:[%s1926 + $0x10] sm:$0xff]
      %v1930 = vld [vmem:[%s1926 + $0x18] sm:$0xff]
      %1931 = vmatprep.subr.mxu0 %v651
      %1932 = vmatpush1.msra.mxu0 %v650
      %1933 = vmatprep.subr.mxu0 %v655
      %1934 = vmatpush1.msra.mxu0 %v654
      %1935 = vmatprep.subr.mxu0 %v659
      %1936 = vmatpush1.msra.mxu0 %v658
      %1937 = vmatprep.subr.mxu0 %v663
      %1938 = vmatpush1.msra.mxu0 %v662
      %1939 = vmatprep.subr.mxu0 %v667
      %1940 = vmatpush1.msra.mxu0 %v666
      %1941 = vmatprep.subr.mxu0 %v671
      %1942 = vmatpush1.msra.mxu0 %v670
      %1943 = vmatprep.subr.mxu0 %v675
      %1944 = vmatpush1.msra.mxu0 %v674
      %1945 = vmatprep.subr.mxu0 %v679
      %1946 = vmatpush1.msra.mxu0 %v678
      %1947 = vmatprep.subr.mxu0 %v683
      %1948 = vmatpush1.msra.mxu0 %v682
      %1949 = vmatprep.subr.mxu0 %v687
      %1950 = vmatpush1.msra.mxu0 %v686
      %1951 = vmatprep.subr.mxu0 %v691
      %1952 = vmatpush1.msra.mxu0 %v690
      %1953 = vmatprep.subr.mxu0 %v695
      %1954 = vmatpush1.msra.mxu0 %v694
      %1955 = vmatprep.subr.mxu0 %v699
      %1956 = vmatpush1.msra.mxu0 %v698
      %1957 = vmatprep.subr.mxu0 %v703
      %1958 = vmatpush1.msra.mxu0 %v702
      %1959 = vmatprep.subr.mxu0 %v707
      %1960 = vmatpush1.msra.mxu0 %v706
      %1961 = vmatprep.subr.mxu0 %v711
      %1962 = vmatpush1.msra.mxu0 %v710
      %1963 = vmatprep.subr.mxu0 0.0
      %1964 = vmatpush1.msra.mxu0 0.0
      %1965 = vmatprep.subr.mxu0 0.0
      %1966 = vmatpush1.msra.mxu0 0.0
      %1967 = vmatprep.subr.mxu0 0.0
      %1968 = vmatpush1.msra.mxu0 0.0
      %1969 = vmatprep.subr.mxu0 0.0
      %1970 = vmatpush1.msra.mxu0 0.0
      %1971 = vmatprep.subr.mxu0 0.0
      %1972 = vmatpush1.msra.mxu0 0.0
      %1973 = vmatprep.subr.mxu0 0.0
      %1974 = vmatpush1.msra.mxu0 0.0
      %1975 = vmatprep.subr.mxu0 0.0
      %1976 = vmatpush1.msra.mxu0 0.0
      %1977 = vmatprep.subr.mxu0 0.0
      %1978 = vmatpush1.msra.mxu0 0.0
      %1979 = vmatprep.subr.mxu0 0.0
      %1980 = vmatpush1.msra.mxu0 0.0
      %1981 = vmatprep.subr.mxu0 0.0
      %1982 = vmatpush1.msra.mxu0 0.0
      %1983 = vmatprep.subr.mxu0 0.0
      %1984 = vmatpush1.msra.mxu0 0.0
      %1985 = vmatprep.subr.mxu0 0.0
      %1986 = vmatpush1.msra.mxu0 0.0
      %1987 = vmatprep.subr.mxu0 0.0
      %1988 = vmatpush1.msra.mxu0 0.0
      %1989 = vmatprep.subr.mxu0 0.0
      %1990 = vmatpush1.msra.mxu0 0.0
      %1991 = vmatprep.subr.mxu0 0.0
      %1992 = vmatpush1.msra.mxu0 0.0
      %1993 = vmatprep.subr.mxu0 0.0
      %1994 = vmatpush1.msra.mxu0 0.0
      %1995 = vmatprep.mubr.f32.mxu0 0.0
      %1996 = vmatmul.mubr.f32.gmra.mrb[0].mxu0 %v1921
      %v1997 = vpop.f32.mrb[0].mxu0
      %v1998 = vadd.f32 0.0, %v1997
      %v1999 = vpop.f32.mrb[0].mxu0
      %v2000 = vadd.f32 0.0, %v1999
      %2001 = vdwg.mxu0
      %2002 = vmatprep.subr.mxu0 %v653
      %2003 = vmatpush1.msra.mxu0 %v652
      %2004 = vmatprep.subr.mxu0 %v657
      %2005 = vmatpush1.msra.mxu0 %v656
      %2006 = vmatprep.subr.mxu0 %v661
      %2007 = vmatpush1.msra.mxu0 %v660
      %2008 = vmatprep.subr.mxu0 %v665
      %2009 = vmatpush1.msra.mxu0 %v664
      %2010 = vmatprep.subr.mxu0 %v669
      %2011 = vmatpush1.msra.mxu0 %v668
      %2012 = vmatprep.subr.mxu0 %v673
      %2013 = vmatpush1.msra.mxu0 %v672
      %2014 = vmatprep.subr.mxu0 %v677
      %2015 = vmatpush1.msra.mxu0 %v676
      %2016 = vmatprep.subr.mxu0 %v681
      %2017 = vmatpush1.msra.mxu0 %v680
      %2018 = vmatprep.subr.mxu0 %v685
      %2019 = vmatpush1.msra.mxu0 %v684
      %2020 = vmatprep.subr.mxu0 %v689
      %2021 = vmatpush1.msra.mxu0 %v688
      %2022 = vmatprep.subr.mxu0 %v693
      %2023 = vmatpush1.msra.mxu0 %v692
      %2024 = vmatprep.subr.mxu0 %v697
      %2025 = vmatpush1.msra.mxu0 %v696
      %2026 = vmatprep.subr.mxu0 %v701
      %2027 = vmatpush1.msra.mxu0 %v700
      %2028 = vmatprep.subr.mxu0 %v705
      %2029 = vmatpush1.msra.mxu0 %v704
      %2030 = vmatprep.subr.mxu0 %v709
      %2031 = vmatpush1.msra.mxu0 %v708
      %2032 = vmatprep.subr.mxu0 %v713
      %2033 = vmatpush1.msra.mxu0 %v712
      %2034 = vmatprep.subr.mxu0 0.0
      %2035 = vmatpush1.msra.mxu0 0.0
      %2036 = vmatprep.subr.mxu0 0.0
      %2037 = vmatpush1.msra.mxu0 0.0
      %2038 = vmatprep.subr.mxu0 0.0
      %2039 = vmatpush1.msra.mxu0 0.0
      %2040 = vmatprep.subr.mxu0 0.0
      %2041 = vmatpush1.msra.mxu0 0.0
      %2042 = vmatprep.subr.mxu0 0.0
      %2043 = vmatpush1.msra.mxu0 0.0
      %2044 = vmatprep.subr.mxu0 0.0
      %2045 = vmatpush1.msra.mxu0 0.0
      %2046 = vmatprep.subr.mxu0 0.0
      %2047 = vmatpush1.msra.mxu0 0.0
      %2048 = vmatprep.subr.mxu0 0.0
      %2049 = vmatpush1.msra.mxu0 0.0
      %2050 = vmatprep.subr.mxu0 0.0
      %2051 = vmatpush1.msra.mxu0 0.0
      %2052 = vmatprep.subr.mxu0 0.0
      %2053 = vmatpush1.msra.mxu0 0.0
      %2054 = vmatprep.subr.mxu0 0.0
      %2055 = vmatpush1.msra.mxu0 0.0
      %2056 = vmatprep.subr.mxu0 0.0
      %2057 = vmatpush1.msra.mxu0 0.0
      %2058 = vmatprep.subr.mxu0 0.0
      %2059 = vmatpush1.msra.mxu0 0.0
      %2060 = vmatprep.subr.mxu0 0.0
      %2061 = vmatpush1.msra.mxu0 0.0
      %2062 = vmatprep.subr.mxu0 0.0
      %2063 = vmatpush1.msra.mxu0 0.0
      %2064 = vmatprep.subr.mxu0 0.0
      %2065 = vmatpush1.msra.mxu0 0.0
      %2066 = vmatprep.mubr.f32.mxu0 0.0
      %2067 = vmatmul.mubr.f32.gmra.mrb[0].mxu0 %v1921
      %v2068 = vpop.f32.mrb[0].mxu0
      %v2069 = vadd.f32 0.0, %v2068
      %v2070 = vpop.f32.mrb[0].mxu0
      %v2071 = vadd.f32 0.0, %v2070
      %2072 = vdwg.mxu0
      %v2073 = vadd.f32 %v1927, %v1998
      %v2074 = vadd.f32 %v1928, %v2000
      %v2075 = vadd.f32 %v1929, %v2069
      %v2076 = vadd.f32 %v1930, %v2071
      %v2077 = vmul.f32 %v2073, 0.5
      %v2078 = vtanh.pop %v2077
      %v2079 = vmul.f32 %v2078, 0.5
      %v2080 = vadd.f32 %v2079, 0.5
      %v2081 = vmul.f32 %v2074, 0.5
      %v2082 = vtanh.pop %v2081
      %v2083 = vmul.f32 %v2082, 0.5
      %v2084 = vadd.f32 %v2083, 0.5
      %v2085 = vtanh.pop %v2075
      %v2086 = vmul.f32 %v2076, 0.5
      %v2087 = vtanh.pop %v2086
      %v2088 = vmul.f32 %v2087, 0.5
      %v2089 = vadd.f32 %v2088, 0.5
      %v2090 = vmul.f32 %v2084, %v1919
      %v2091 = vmul.f32 %v2080, %v2085
      %v2092 = vadd.f32 %v2090, %v2091
      %v2093 = vtanh.pop %v2092
      %v2094 = vmul.f32 %v2089, %v2093
      %s2095 = scalar_lea.vmem [#allocation3], 56
      %2096 = vst [vmem:[%s2095] sm:$0xff] %v2094
      %v2097 = vld [vmem:[#allocation3] sm:$0xff]
      %v2098 = vld [vmem:[#allocation3 + $0x8] sm:$0xff]
      %v2099 = vld [vmem:[#allocation3 + $0x10] sm:$0xff]
      %v2100 = vld [vmem:[#allocation3 + $0x18] sm:$0xff]
      %v2101 = vld [vmem:[#allocation3 + $0x20] sm:$0xff]
      %v2102 = vld [vmem:[#allocation3 + $0x28] sm:$0xff]
      %v2103 = vld [vmem:[#allocation3 + $0x30] sm:$0xff]
      %v2104 = vld [vmem:[#allocation3 + $0x38] sm:$0xff]
      %v2105 = vld [vmem:[%s4] sm:$0xff]
      %v2106 = vld [vmem:[%s4 + $0x8] sm:$0xff]
      %v2107 = vld [vmem:[%s4 + $0x10] sm:$0xff]
      %v2108 = vld [vmem:[%s4 + $0x18] sm:$0xff]
      %v2109 = vld [vmem:[%s4 + $0x20] sm:$0xff]
      %v2110 = vld [vmem:[%s4 + $0x28] sm:$0xff]
      %v2111 = vld [vmem:[%s4 + $0x30] sm:$0xff]
      %v2112 = vld [vmem:[%s4 + $0x38] sm:$0xff]
      %v2113 = vld [vmem:[%s4 + $0x40] sm:$0xff]
      %v2114 = vld [vmem:[%s4 + $0x48] sm:$0xff]
      %v2115 = vld [vmem:[%s4 + $0x50] sm:$0xff]
      %v2116 = vld [vmem:[%s4 + $0x58] sm:$0xff]
      %v2117 = vld [vmem:[%s4 + $0x60] sm:$0xff]
      %v2118 = vld [vmem:[%s4 + $0x68] sm:$0xff]
      %v2119 = vld [vmem:[%s4 + $0x70] sm:$0xff]
      %v2120 = vld [vmem:[%s4 + $0x78] sm:$0xff]
      %v2121 = vld [vmem:[%s4 + $0x80] sm:$0xff]
      %v2122 = vld [vmem:[%s4 + $0x88] sm:$0xff]
      %v2123 = vld [vmem:[%s4 + $0x90] sm:$0xff]
      %v2124 = vld [vmem:[%s4 + $0x98] sm:$0xff]
      %v2125 = vld [vmem:[%s4 + $0xa0] sm:$0xff]
      %v2126 = vld [vmem:[%s4 + $0xa8] sm:$0xff]
      %v2127 = vld [vmem:[%s4 + $0xb0] sm:$0xff]
      %v2128 = vld [vmem:[%s4 + $0xb8] sm:$0xff]
      %v2129 = vld [vmem:[%s4 + $0xc0] sm:$0xff]
      %v2130 = vld [vmem:[%s4 + $0xc8] sm:$0xff]
      %v2131 = vld [vmem:[%s4 + $0xd0] sm:$0xff]
      %v2132 = vld [vmem:[%s4 + $0xd8] sm:$0xff]
      %v2133 = vld [vmem:[%s4 + $0xe0] sm:$0xff]
      %v2134 = vld [vmem:[%s4 + $0xe8] sm:$0xff]
      %v2135 = vld [vmem:[%s4 + $0xf0] sm:$0xff]
      %v2136 = vld [vmem:[%s4 + $0xf8] sm:$0xff]
      %v2137 = vld [vmem:[%s4 + $0x100] sm:$0xff]
      %v2138 = vld [vmem:[%s4 + $0x108] sm:$0xff]
      %v2139 = vld [vmem:[%s4 + $0x110] sm:$0xff]
      %v2140 = vld [vmem:[%s4 + $0x118] sm:$0xff]
      %v2141 = vld [vmem:[%s4 + $0x120] sm:$0xff]
      %v2142 = vld [vmem:[%s4 + $0x128] sm:$0xff]
      %v2143 = vld [vmem:[%s4 + $0x130] sm:$0xff]
      %v2144 = vld [vmem:[%s4 + $0x138] sm:$0xff]
      %v2145 = vld [vmem:[%s4 + $0x140] sm:$0xff]
      %v2146 = vld [vmem:[%s4 + $0x148] sm:$0xff]
      %v2147 = vld [vmem:[%s4 + $0x150] sm:$0xff]
      %v2148 = vld [vmem:[%s4 + $0x158] sm:$0xff]
      %v2149 = vld [vmem:[%s4 + $0x160] sm:$0xff]
      %v2150 = vld [vmem:[%s4 + $0x168] sm:$0xff]
      %v2151 = vld [vmem:[%s4 + $0x170] sm:$0xff]
      %v2152 = vld [vmem:[%s4 + $0x178] sm:$0xff]
      %v2153 = vld [vmem:[%s4 + $0x180] sm:$0xff]
      %v2154 = vld [vmem:[%s4 + $0x188] sm:$0xff]
      %v2155 = vld [vmem:[%s4 + $0x190] sm:$0xff]
      %v2156 = vld [vmem:[%s4 + $0x198] sm:$0xff]
      %v2157 = vld [vmem:[%s4 + $0x1a0] sm:$0xff]
      %v2158 = vld [vmem:[%s4 + $0x1a8] sm:$0xff]
      %v2159 = vld [vmem:[%s4 + $0x1b0] sm:$0xff]
      %v2160 = vld [vmem:[%s4 + $0x1b8] sm:$0xff]
      %v2161 = vld [vmem:[%s4 + $0x1c0] sm:$0xff]
      %v2162 = vld [vmem:[%s4 + $0x1c8] sm:$0xff]
      %v2163 = vld [vmem:[%s4 + $0x1d0] sm:$0xff]
      %v2164 = vld [vmem:[%s4 + $0x1d8] sm:$0xff]
      %v2165 = vld [vmem:[%s4 + $0x1e0] sm:$0xff]
      %v2166 = vld [vmem:[%s4 + $0x1e8] sm:$0xff]
      %v2167 = vld [vmem:[%s4 + $0x1f0] sm:$0xff]
      %v2168 = vld [vmem:[%s4 + $0x1f8] sm:$0xff]
      %v2169 = vld [vmem:[%s6] sm:$0xf]
      %v2171 = vlaneseq
      %v2172 = vshrl.u32 %v2171, 7
      %v2173 = vsub.s32 0, %v2172
      %v2174 = vrot.slane %v2169, %v2173
      %v2175 = vlaneseq
      %v2176 = vshrl.u32 %v2175, 7
      %v2177 = vsub.s32 1, %v2176
      %v2178 = vrot.slane %v2169, %v2177
      %v2179 = vlaneseq
      %v2180 = vshrl.u32 %v2179, 7
      %v2181 = vsub.s32 2, %v2180
      %v2182 = vrot.slane %v2169, %v2181
      %v2183 = vlaneseq
      %v2184 = vshrl.u32 %v2183, 7
      %v2185 = vsub.s32 3, %v2184
      %v2186 = vrot.slane %v2169, %v2185
      %2191 = vmatprep.subr.mxu0 %v2106
      %2192 = vmatpush1.msra.mxu0 %v2105
      %2193 = vmatprep.subr.mxu0 %v2110
      %2194 = vmatpush1.msra.mxu0 %v2109
      %2195 = vmatprep.subr.mxu0 %v2114
      %2196 = vmatpush1.msra.mxu0 %v2113
      %2197 = vmatprep.subr.mxu0 %v2118
      %2198 = vmatpush1.msra.mxu0 %v2117
      %2199 = vmatprep.subr.mxu0 %v2122
      %2200 = vmatpush1.msra.mxu0 %v2121
      %2201 = vmatprep.subr.mxu0 %v2126
      %2202 = vmatpush1.msra.mxu0 %v2125
      %2203 = vmatprep.subr.mxu0 %v2130
      %2204 = vmatpush1.msra.mxu0 %v2129
      %2205 = vmatprep.subr.mxu0 %v2134
      %2206 = vmatpush1.msra.mxu0 %v2133
      %2207 = vmatprep.subr.mxu0 %v2138
      %2208 = vmatpush1.msra.mxu0 %v2137
      %2209 = vmatprep.subr.mxu0 %v2142
      %2210 = vmatpush1.msra.mxu0 %v2141
      %2211 = vmatprep.subr.mxu0 %v2146
      %2212 = vmatpush1.msra.mxu0 %v2145
      %2213 = vmatprep.subr.mxu0 %v2150
      %2214 = vmatpush1.msra.mxu0 %v2149
      %2215 = vmatprep.subr.mxu0 %v2154
      %2216 = vmatpush1.msra.mxu0 %v2153
      %2217 = vmatprep.subr.mxu0 %v2158
      %2218 = vmatpush1.msra.mxu0 %v2157
      %2219 = vmatprep.subr.mxu0 %v2162
      %2220 = vmatpush1.msra.mxu0 %v2161
      %2221 = vmatprep.subr.mxu0 %v2166
      %2222 = vmatpush1.msra.mxu0 %v2165
      %2223 = vmatprep.subr.mxu0 0.0
      %2224 = vmatpush1.msra.mxu0 0.0
      %2225 = vmatprep.subr.mxu0 0.0
      %2226 = vmatpush1.msra.mxu0 0.0
      %2227 = vmatprep.subr.mxu0 0.0
      %2228 = vmatpush1.msra.mxu0 0.0
      %2229 = vmatprep.subr.mxu0 0.0
      %2230 = vmatpush1.msra.mxu0 0.0
      %2231 = vmatprep.subr.mxu0 0.0
      %2232 = vmatpush1.msra.mxu0 0.0
      %2233 = vmatprep.subr.mxu0 0.0
      %2234 = vmatpush1.msra.mxu0 0.0
      %2235 = vmatprep.subr.mxu0 0.0
      %2236 = vmatpush1.msra.mxu0 0.0
      %2237 = vmatprep.subr.mxu0 0.0
      %2238 = vmatpush1.msra.mxu0 0.0
      %2239 = vmatprep.subr.mxu0 0.0
      %2240 = vmatpush1.msra.mxu0 0.0
      %2241 = vmatprep.subr.mxu0 0.0
      %2242 = vmatpush1.msra.mxu0 0.0
      %2243 = vmatprep.subr.mxu0 0.0
      %2244 = vmatpush1.msra.mxu0 0.0
      %2245 = vmatprep.subr.mxu0 0.0
      %2246 = vmatpush1.msra.mxu0 0.0
      %2247 = vmatprep.subr.mxu0 0.0
      %2248 = vmatpush1.msra.mxu0 0.0
      %2249 = vmatprep.subr.mxu0 0.0
      %2250 = vmatpush1.msra.mxu0 0.0
      %2251 = vmatprep.subr.mxu0 0.0
      %2252 = vmatpush1.msra.mxu0 0.0
      %2253 = vmatprep.subr.mxu0 0.0
      %2254 = vmatpush1.msra.mxu0 0.0
      %2255 = vmatprep.mubr.f32.mxu0 0.0
      %2256 = vmatmul.mubr.f32.gmra.mrb[0].mxu0 %v2097
      %v2257 = vpop.f32.mrb[0].mxu0
      %v2258 = vadd.f32 %v2174, %v2257
      %v2259 = vpop.f32.mrb[0].mxu0
      %v2260 = vadd.f32 %v2178, %v2259
      %2261 = vmatprep.mubr.f32.mxu0 0.0
      %2262 = vmatmul.mubr.f32.gmra.mrb[0].mxu0 %v2098
      %v2263 = vpop.f32.mrb[0].mxu0
      %v2264 = vadd.f32 %v2174, %v2263
      %v2265 = vpop.f32.mrb[0].mxu0
      %v2266 = vadd.f32 %v2178, %v2265
      %2267 = vmatprep.mubr.f32.mxu0 0.0
      %2268 = vmatmul.mubr.f32.gmra.mrb[0].mxu0 %v2099
      %v2269 = vpop.f32.mrb[0].mxu0
      %v2270 = vadd.f32 %v2174, %v2269
      %v2271 = vpop.f32.mrb[0].mxu0
      %v2272 = vadd.f32 %v2178, %v2271
      %2273 = vmatprep.mubr.f32.mxu0 0.0
      %2274 = vmatmul.mubr.f32.gmra.mrb[0].mxu0 %v2100
      %v2275 = vpop.f32.mrb[0].mxu0
      %v2276 = vadd.f32 %v2174, %v2275
      %v2277 = vpop.f32.mrb[0].mxu0
      %v2278 = vadd.f32 %v2178, %v2277
      %2279 = vmatprep.mubr.f32.mxu0 0.0
      %2280 = vmatmul.mubr.f32.gmra.mrb[0].mxu0 %v2101
      %v2281 = vpop.f32.mrb[0].mxu0
      %v2282 = vadd.f32 %v2174, %v2281
      %v2283 = vpop.f32.mrb[0].mxu0
      %v2284 = vadd.f32 %v2178, %v2283
      %2285 = vmatprep.mubr.f32.mxu0 0.0
      %2286 = vmatmul.mubr.f32.gmra.mrb[0].mxu0 %v2102
      %v2287 = vpop.f32.mrb[0].mxu0
      %v2288 = vadd.f32 %v2174, %v2287
      %v2289 = vpop.f32.mrb[0].mxu0
      %v2290 = vadd.f32 %v2178, %v2289
      %2291 = vmatprep.mubr.f32.mxu0 0.0
      %2292 = vmatmul.mubr.f32.gmra.mrb[0].mxu0 %v2103
      %v2293 = vpop.f32.mrb[0].mxu0
      %v2294 = vadd.f32 %v2174, %v2293
      %v2295 = vpop.f32.mrb[0].mxu0
      %v2296 = vadd.f32 %v2178, %v2295
      %2297 = vmatprep.mubr.f32.mxu0 0.0
      %2298 = vmatmul.mubr.f32.gmra.mrb[0].mxu0 %v2104
      %v2299 = vpop.f32.mrb[0].mxu0
      %v2300 = vadd.f32 %v2174, %v2299
      %v2301 = vpop.f32.mrb[0].mxu0
      %v2302 = vadd.f32 %v2178, %v2301
      %2303 = vdwg.mxu0
      %2304 = vmatprep.subr.mxu0 %v2108
      %2305 = vmatpush1.msra.mxu0 %v2107
      %2306 = vmatprep.subr.mxu0 %v2112
      %2307 = vmatpush1.msra.mxu0 %v2111
      %2308 = vmatprep.subr.mxu0 %v2116
      %2309 = vmatpush1.msra.mxu0 %v2115
      %2310 = vmatprep.subr.mxu0 %v2120
      %2311 = vmatpush1.msra.mxu0 %v2119
      %2312 = vmatprep.subr.mxu0 %v2124
      %2313 = vmatpush1.msra.mxu0 %v2123
      %2314 = vmatprep.subr.mxu0 %v2128
      %2315 = vmatpush1.msra.mxu0 %v2127
      %2316 = vmatprep.subr.mxu0 %v2132
      %2317 = vmatpush1.msra.mxu0 %v2131
      %2318 = vmatprep.subr.mxu0 %v2136
      %2319 = vmatpush1.msra.mxu0 %v2135
      %2320 = vmatprep.subr.mxu0 %v2140
      %2321 = vmatpush1.msra.mxu0 %v2139
      %2322 = vmatprep.subr.mxu0 %v2144
      %2323 = vmatpush1.msra.mxu0 %v2143
      %2324 = vmatprep.subr.mxu0 %v2148
      %2325 = vmatpush1.msra.mxu0 %v2147
      %2326 = vmatprep.subr.mxu0 %v2152
      %2327 = vmatpush1.msra.mxu0 %v2151
      %2328 = vmatprep.subr.mxu0 %v2156
      %2329 = vmatpush1.msra.mxu0 %v2155
      %2330 = vmatprep.subr.mxu0 %v2160
      %2331 = vmatpush1.msra.mxu0 %v2159
      %2332 = vmatprep.subr.mxu0 %v2164
      %2333 = vmatpush1.msra.mxu0 %v2163
      %2334 = vmatprep.subr.mxu0 %v2168
      %2335 = vmatpush1.msra.mxu0 %v2167
      %2336 = vmatprep.subr.mxu0 0.0
      %2337 = vmatpush1.msra.mxu0 0.0
      %2338 = vmatprep.subr.mxu0 0.0
      %2339 = vmatpush1.msra.mxu0 0.0
      %2340 = vmatprep.subr.mxu0 0.0
      %2341 = vmatpush1.msra.mxu0 0.0
      %2342 = vmatprep.subr.mxu0 0.0
      %2343 = vmatpush1.msra.mxu0 0.0
      %2344 = vmatprep.subr.mxu0 0.0
      %2345 = vmatpush1.msra.mxu0 0.0
      %2346 = vmatprep.subr.mxu0 0.0
      %2347 = vmatpush1.msra.mxu0 0.0
      %2348 = vmatprep.subr.mxu0 0.0
      %2349 = vmatpush1.msra.mxu0 0.0
      %2350 = vmatprep.subr.mxu0 0.0
      %2351 = vmatpush1.msra.mxu0 0.0
      %2352 = vmatprep.subr.mxu0 0.0
      %2353 = vmatpush1.msra.mxu0 0.0
      %2354 = vmatprep.subr.mxu0 0.0
      %2355 = vmatpush1.msra.mxu0 0.0
      %2356 = vmatprep.subr.mxu0 0.0
      %2357 = vmatpush1.msra.mxu0 0.0
      %2358 = vmatprep.subr.mxu0 0.0
      %2359 = vmatpush1.msra.mxu0 0.0
      %2360 = vmatprep.subr.mxu0 0.0
      %2361 = vmatpush1.msra.mxu0 0.0
      %2362 = vmatprep.subr.mxu0 0.0
      %2363 = vmatpush1.msra.mxu0 0.0
      %2364 = vmatprep.subr.mxu0 0.0
      %2365 = vmatpush1.msra.mxu0 0.0
      %2366 = vmatprep.subr.mxu0 0.0
      %2367 = vmatpush1.msra.mxu0 0.0
      %2368 = vmatprep.mubr.f32.mxu0 0.0
      %2369 = vmatmul.mubr.f32.gmra.mrb[0].mxu0 %v2097
      %v2370 = vpop.f32.mrb[0].mxu0
      %v2371 = vadd.f32 %v2182, %v2370
      %v2372 = vpop.f32.mrb[0].mxu0
      %v2373 = vadd.f32 %v2186, %v2372
      %2374 = vmatprep.mubr.f32.mxu0 0.0
      %2375 = vmatmul.mubr.f32.gmra.mrb[0].mxu0 %v2098
      %v2376 = vpop.f32.mrb[0].mxu0
      %v2377 = vadd.f32 %v2182, %v2376
      %v2378 = vpop.f32.mrb[0].mxu0
      %v2379 = vadd.f32 %v2186, %v2378
      %2380 = vmatprep.mubr.f32.mxu0 0.0
      %2381 = vmatmul.mubr.f32.gmra.mrb[0].mxu0 %v2099
      %v2382 = vpop.f32.mrb[0].mxu0
      %v2383 = vadd.f32 %v2182, %v2382
      %v2384 = vpop.f32.mrb[0].mxu0
      %v2385 = vadd.f32 %v2186, %v2384
      %2386 = vmatprep.mubr.f32.mxu0 0.0
      %2387 = vmatmul.mubr.f32.gmra.mrb[0].mxu0 %v2100
      %v2388 = vpop.f32.mrb[0].mxu0
      %v2389 = vadd.f32 %v2182, %v2388
      %v2390 = vpop.f32.mrb[0].mxu0
      %v2391 = vadd.f32 %v2186, %v2390
      %2392 = vmatprep.mubr.f32.mxu0 0.0
      %2393 = vmatmul.mubr.f32.gmra.mrb[0].mxu0 %v2101
      %v2394 = vpop.f32.mrb[0].mxu0
      %v2395 = vadd.f32 %v2182, %v2394
      %v2396 = vpop.f32.mrb[0].mxu0
      %v2397 = vadd.f32 %v2186, %v2396
      %2398 = vmatprep.mubr.f32.mxu0 0.0
      %2399 = vmatmul.mubr.f32.gmra.mrb[0].mxu0 %v2102
      %v2400 = vpop.f32.mrb[0].mxu0
      %v2401 = vadd.f32 %v2182, %v2400
      %v2402 = vpop.f32.mrb[0].mxu0
      %v2403 = vadd.f32 %v2186, %v2402
      %2404 = vmatprep.mubr.f32.mxu0 0.0
      %2405 = vmatmul.mubr.f32.gmra.mrb[0].mxu0 %v2103
      %v2406 = vpop.f32.mrb[0].mxu0
      %v2407 = vadd.f32 %v2182, %v2406
      %v2408 = vpop.f32.mrb[0].mxu0
      %v2409 = vadd.f32 %v2186, %v2408
      %2410 = vmatprep.mubr.f32.mxu0 0.0
      %2411 = vmatmul.mubr.f32.gmra.mrb[0].mxu0 %v2104
      %v2412 = vpop.f32.mrb[0].mxu0
      %v2413 = vadd.f32 %v2182, %v2412
      %v2414 = vpop.f32.mrb[0].mxu0
      %v2415 = vadd.f32 %v2186, %v2414
      %2416 = vdwg.mxu0
      %2417 = vst [vmem:[#allocation2] sm:$0xff] %v2258
      %2418 = vst [vmem:[#allocation2 + $0x8] sm:$0xff] %v2260
      %2419 = vst [vmem:[#allocation2 + $0x10] sm:$0xff] %v2371
      %2420 = vst [vmem:[#allocation2 + $0x18] sm:$0xff] %v2373
      %2421 = vst [vmem:[#allocation2 + $0x20] sm:$0xff] %v2264
      %2422 = vst [vmem:[#allocation2 + $0x28] sm:$0xff] %v2266
      %2423 = vst [vmem:[#allocation2 + $0x30] sm:$0xff] %v2377
      %2424 = vst [vmem:[#allocation2 + $0x38] sm:$0xff] %v2379
      %2425 = vst [vmem:[#allocation2 + $0x40] sm:$0xff] %v2270
      %2426 = vst [vmem:[#allocation2 + $0x48] sm:$0xff] %v2272
      %2427 = vst [vmem:[#allocation2 + $0x50] sm:$0xff] %v2383
      %2428 = vst [vmem:[#allocation2 + $0x58] sm:$0xff] %v2385
      %2429 = vst [vmem:[#allocation2 + $0x60] sm:$0xff] %v2276
      %2430 = vst [vmem:[#allocation2 + $0x68] sm:$0xff] %v2278
      %2431 = vst [vmem:[#allocation2 + $0x70] sm:$0xff] %v2389
      %2432 = vst [vmem:[#allocation2 + $0x78] sm:$0xff] %v2391
      %2433 = vst [vmem:[#allocation2 + $0x80] sm:$0xff] %v2282
      %2434 = vst [vmem:[#allocation2 + $0x88] sm:$0xff] %v2284
      %2435 = vst [vmem:[#allocation2 + $0x90] sm:$0xff] %v2395
      %2436 = vst [vmem:[#allocation2 + $0x98] sm:$0xff] %v2397
      %2437 = vst [vmem:[#allocation2 + $0xa0] sm:$0xff] %v2288
      %2438 = vst [vmem:[#allocation2 + $0xa8] sm:$0xff] %v2290
      %2439 = vst [vmem:[#allocation2 + $0xb0] sm:$0xff] %v2401
      %2440 = vst [vmem:[#allocation2 + $0xb8] sm:$0xff] %v2403
      %2441 = vst [vmem:[#allocation2 + $0xc0] sm:$0xff] %v2294
      %2442 = vst [vmem:[#allocation2 + $0xc8] sm:$0xff] %v2296
      %2443 = vst [vmem:[#allocation2 + $0xd0] sm:$0xff] %v2407
      %2444 = vst [vmem:[#allocation2 + $0xd8] sm:$0xff] %v2409
      %2445 = vst [vmem:[#allocation2 + $0xe0] sm:$0xff] %v2300
      %2446 = vst [vmem:[#allocation2 + $0xe8] sm:$0xff] %v2302
      %2447 = vst [vmem:[#allocation2 + $0xf0] sm:$0xff] %v2413
      %2448 = vst [vmem:[#allocation2 + $0xf8] sm:$0xff] %v2415
      %v2449 = vld [vmem:[%s5] sm:$0xff]
      %v2450 = vld [vmem:[%s5 + $0x8] sm:$0xff]
      %v2451 = vld [vmem:[%s5 + $0x10] sm:$0xff]
      %v2452 = vld [vmem:[%s5 + $0x18] sm:$0xff]
      %v2453 = vld [vmem:[%s5 + $0x20] sm:$0xff]
      %v2454 = vld [vmem:[%s5 + $0x28] sm:$0xff]
      %v2455 = vld [vmem:[%s5 + $0x30] sm:$0xff]
      %v2456 = vld [vmem:[%s5 + $0x38] sm:$0xff]
      %v2457 = vld [vmem:[%s5 + $0x40] sm:$0xff]
      %v2458 = vld [vmem:[%s5 + $0x48] sm:$0xff]
      %v2459 = vld [vmem:[%s5 + $0x50] sm:$0xff]
      %v2460 = vld [vmem:[%s5 + $0x58] sm:$0xff]
      %v2461 = vld [vmem:[%s5 + $0x60] sm:$0xff]
      %v2462 = vld [vmem:[%s5 + $0x68] sm:$0xff]
      %v2463 = vld [vmem:[%s5 + $0x70] sm:$0xff]
      %v2464 = vld [vmem:[%s5 + $0x78] sm:$0xff]
      %v2465 = vld [vmem:[%s5 + $0x80] sm:$0xff]
      %v2466 = vld [vmem:[%s5 + $0x88] sm:$0xff]
      %v2467 = vld [vmem:[%s5 + $0x90] sm:$0xff]
      %v2468 = vld [vmem:[%s5 + $0x98] sm:$0xff]
      %v2469 = vld [vmem:[%s5 + $0xa0] sm:$0xff]
      %v2470 = vld [vmem:[%s5 + $0xa8] sm:$0xff]
      %v2471 = vld [vmem:[%s5 + $0xb0] sm:$0xff]
      %v2472 = vld [vmem:[%s5 + $0xb8] sm:$0xff]
      %v2473 = vld [vmem:[%s5 + $0xc0] sm:$0xff]
      %v2474 = vld [vmem:[%s5 + $0xc8] sm:$0xff]
      %v2475 = vld [vmem:[%s5 + $0xd0] sm:$0xff]
      %v2476 = vld [vmem:[%s5 + $0xd8] sm:$0xff]
      %v2477 = vld [vmem:[%s5 + $0xe0] sm:$0xff]
      %v2478 = vld [vmem:[%s5 + $0xe8] sm:$0xff]
      %v2479 = vld [vmem:[%s5 + $0xf0] sm:$0xff]
      %v2480 = vld [vmem:[%s5 + $0xf8] sm:$0xff]
      %v2481 = vld [vmem:[%s5 + $0x100] sm:$0xff]
      %v2482 = vld [vmem:[%s5 + $0x108] sm:$0xff]
      %v2483 = vld [vmem:[%s5 + $0x110] sm:$0xff]
      %v2484 = vld [vmem:[%s5 + $0x118] sm:$0xff]
      %v2485 = vld [vmem:[%s5 + $0x120] sm:$0xff]
      %v2486 = vld [vmem:[%s5 + $0x128] sm:$0xff]
      %v2487 = vld [vmem:[%s5 + $0x130] sm:$0xff]
      %v2488 = vld [vmem:[%s5 + $0x138] sm:$0xff]
      %v2489 = vld [vmem:[%s5 + $0x140] sm:$0xff]
      %v2490 = vld [vmem:[%s5 + $0x148] sm:$0xff]
      %v2491 = vld [vmem:[%s5 + $0x150] sm:$0xff]
      %v2492 = vld [vmem:[%s5 + $0x158] sm:$0xff]
      %v2493 = vld [vmem:[%s5 + $0x160] sm:$0xff]
      %v2494 = vld [vmem:[%s5 + $0x168] sm:$0xff]
      %v2495 = vld [vmem:[%s5 + $0x170] sm:$0xff]
      %v2496 = vld [vmem:[%s5 + $0x178] sm:$0xff]
      %v2497 = vld [vmem:[%s5 + $0x180] sm:$0xff]
      %v2498 = vld [vmem:[%s5 + $0x188] sm:$0xff]
      %v2499 = vld [vmem:[%s5 + $0x190] sm:$0xff]
      %v2500 = vld [vmem:[%s5 + $0x198] sm:$0xff]
      %v2501 = vld [vmem:[%s5 + $0x1a0] sm:$0xff]
      %v2502 = vld [vmem:[%s5 + $0x1a8] sm:$0xff]
      %v2503 = vld [vmem:[%s5 + $0x1b0] sm:$0xff]
      %v2504 = vld [vmem:[%s5 + $0x1b8] sm:$0xff]
      %v2505 = vld [vmem:[%s5 + $0x1c0] sm:$0xff]
      %v2506 = vld [vmem:[%s5 + $0x1c8] sm:$0xff]
      %v2507 = vld [vmem:[%s5 + $0x1d0] sm:$0xff]
      %v2508 = vld [vmem:[%s5 + $0x1d8] sm:$0xff]
      %v2509 = vld [vmem:[%s5 + $0x1e0] sm:$0xff]
      %v2510 = vld [vmem:[%s5 + $0x1e8] sm:$0xff]
      %v2511 = vld [vmem:[%s5 + $0x1f0] sm:$0xff]
      %v2512 = vld [vmem:[%s5 + $0x1f8] sm:$0xff]
      %v2513 = vld [vmem:[%s716] sm:$0xff]
      %v2514 = vld [vmem:[%s716 + $0x8] sm:$0xff]
      %v2515 = vld [vmem:[%s716 + $0x10] sm:$0xff]
      %v2516 = vld [vmem:[%s716 + $0x18] sm:$0xff]
      %2517 = vmatprep.subr.mxu0 %v2450
      %2518 = vmatpush1.msra.mxu0 %v2449
      %2519 = vmatprep.subr.mxu0 %v2454
      %2520 = vmatpush1.msra.mxu0 %v2453
      %2521 = vmatprep.subr.mxu0 %v2458
      %2522 = vmatpush1.msra.mxu0 %v2457
      %2523 = vmatprep.subr.mxu0 %v2462
      %2524 = vmatpush1.msra.mxu0 %v2461
      %2525 = vmatprep.subr.mxu0 %v2466
      %2526 = vmatpush1.msra.mxu0 %v2465
      %2527 = vmatprep.subr.mxu0 %v2470
      %2528 = vmatpush1.msra.mxu0 %v2469
      %2529 = vmatprep.subr.mxu0 %v2474
      %2530 = vmatpush1.msra.mxu0 %v2473
      %2531 = vmatprep.subr.mxu0 %v2478
      %2532 = vmatpush1.msra.mxu0 %v2477
      %2533 = vmatprep.subr.mxu0 %v2482
      %2534 = vmatpush1.msra.mxu0 %v2481
      %2535 = vmatprep.subr.mxu0 %v2486
      %2536 = vmatpush1.msra.mxu0 %v2485
      %2537 = vmatprep.subr.mxu0 %v2490
      %2538 = vmatpush1.msra.mxu0 %v2489
      %2539 = vmatprep.subr.mxu0 %v2494
      %2540 = vmatpush1.msra.mxu0 %v2493
      %2541 = vmatprep.subr.mxu0 %v2498
      %2542 = vmatpush1.msra.mxu0 %v2497
      %2543 = vmatprep.subr.mxu0 %v2502
      %2544 = vmatpush1.msra.mxu0 %v2501
      %2545 = vmatprep.subr.mxu0 %v2506
      %2546 = vmatpush1.msra.mxu0 %v2505
      %2547 = vmatprep.subr.mxu0 %v2510
      %2548 = vmatpush1.msra.mxu0 %v2509
      %2549 = vmatprep.subr.mxu0 0.0
      %2550 = vmatpush1.msra.mxu0 0.0
      %2551 = vmatprep.subr.mxu0 0.0
      %2552 = vmatpush1.msra.mxu0 0.0
      %2553 = vmatprep.subr.mxu0 0.0
      %2554 = vmatpush1.msra.mxu0 0.0
      %2555 = vmatprep.subr.mxu0 0.0
      %2556 = vmatpush1.msra.mxu0 0.0
      %2557 = vmatprep.subr.mxu0 0.0
      %2558 = vmatpush1.msra.mxu0 0.0
      %2559 = vmatprep.subr.mxu0 0.0
      %2560 = vmatpush1.msra.mxu0 0.0
      %2561 = vmatprep.subr.mxu0 0.0
      %2562 = vmatpush1.msra.mxu0 0.0
      %2563 = vmatprep.subr.mxu0 0.0
      %2564 = vmatpush1.msra.mxu0 0.0
      %2565 = vmatprep.subr.mxu0 0.0
      %2566 = vmatpush1.msra.mxu0 0.0
      %2567 = vmatprep.subr.mxu0 0.0
      %2568 = vmatpush1.msra.mxu0 0.0
      %2569 = vmatprep.subr.mxu0 0.0
      %2570 = vmatpush1.msra.mxu0 0.0
      %2571 = vmatprep.subr.mxu0 0.0
      %2572 = vmatpush1.msra.mxu0 0.0
      %2573 = vmatprep.subr.mxu0 0.0
      %2574 = vmatpush1.msra.mxu0 0.0
      %2575 = vmatprep.subr.mxu0 0.0
      %2576 = vmatpush1.msra.mxu0 0.0
      %2577 = vmatprep.subr.mxu0 0.0
      %2578 = vmatpush1.msra.mxu0 0.0
      %2579 = vmatprep.subr.mxu0 0.0
      %2580 = vmatpush1.msra.mxu0 0.0
      %2581 = vmatprep.mubr.f32.mxu0 0.0
      %2582 = vmatmul.mubr.f32.gmra.mrb[0].mxu0 0.0
      %v2583 = vpop.f32.mrb[0].mxu0
      %v2584 = vadd.f32 0.0, %v2583
      %v2585 = vpop.f32.mrb[0].mxu0
      %v2586 = vadd.f32 0.0, %v2585
      %2587 = vdwg.mxu0
      %2588 = vmatprep.subr.mxu0 %v2452
      %2589 = vmatpush1.msra.mxu0 %v2451
      %2590 = vmatprep.subr.mxu0 %v2456
      %2591 = vmatpush1.msra.mxu0 %v2455
      %2592 = vmatprep.subr.mxu0 %v2460
      %2593 = vmatpush1.msra.mxu0 %v2459
      %2594 = vmatprep.subr.mxu0 %v2464
      %2595 = vmatpush1.msra.mxu0 %v2463
      %2596 = vmatprep.subr.mxu0 %v2468
      %2597 = vmatpush1.msra.mxu0 %v2467
      %2598 = vmatprep.subr.mxu0 %v2472
      %2599 = vmatpush1.msra.mxu0 %v2471
      %2600 = vmatprep.subr.mxu0 %v2476
      %2601 = vmatpush1.msra.mxu0 %v2475
      %2602 = vmatprep.subr.mxu0 %v2480
      %2603 = vmatpush1.msra.mxu0 %v2479
      %2604 = vmatprep.subr.mxu0 %v2484
      %2605 = vmatpush1.msra.mxu0 %v2483
      %2606 = vmatprep.subr.mxu0 %v2488
      %2607 = vmatpush1.msra.mxu0 %v2487
      %2608 = vmatprep.subr.mxu0 %v2492
      %2609 = vmatpush1.msra.mxu0 %v2491
      %2610 = vmatprep.subr.mxu0 %v2496
      %2611 = vmatpush1.msra.mxu0 %v2495
      %2612 = vmatprep.subr.mxu0 %v2500
      %2613 = vmatpush1.msra.mxu0 %v2499
      %2614 = vmatprep.subr.mxu0 %v2504
      %2615 = vmatpush1.msra.mxu0 %v2503
      %2616 = vmatprep.subr.mxu0 %v2508
      %2617 = vmatpush1.msra.mxu0 %v2507
      %2618 = vmatprep.subr.mxu0 %v2512
      %2619 = vmatpush1.msra.mxu0 %v2511
      %2620 = vmatprep.subr.mxu0 0.0
      %2621 = vmatpush1.msra.mxu0 0.0
      %2622 = vmatprep.subr.mxu0 0.0
      %2623 = vmatpush1.msra.mxu0 0.0
      %2624 = vmatprep.subr.mxu0 0.0
      %2625 = vmatpush1.msra.mxu0 0.0
      %2626 = vmatprep.subr.mxu0 0.0
      %2627 = vmatpush1.msra.mxu0 0.0
      %2628 = vmatprep.subr.mxu0 0.0
      %2629 = vmatpush1.msra.mxu0 0.0
      %2630 = vmatprep.subr.mxu0 0.0
      %2631 = vmatpush1.msra.mxu0 0.0
      %2632 = vmatprep.subr.mxu0 0.0
      %2633 = vmatpush1.msra.mxu0 0.0
      %2634 = vmatprep.subr.mxu0 0.0
      %2635 = vmatpush1.msra.mxu0 0.0
      %2636 = vmatprep.subr.mxu0 0.0
      %2637 = vmatpush1.msra.mxu0 0.0
      %2638 = vmatprep.subr.mxu0 0.0
      %2639 = vmatpush1.msra.mxu0 0.0
      %2640 = vmatprep.subr.mxu0 0.0
      %2641 = vmatpush1.msra.mxu0 0.0
      %2642 = vmatprep.subr.mxu0 0.0
      %2643 = vmatpush1.msra.mxu0 0.0
      %2644 = vmatprep.subr.mxu0 0.0
      %2645 = vmatpush1.msra.mxu0 0.0
      %2646 = vmatprep.subr.mxu0 0.0
      %2647 = vmatpush1.msra.mxu0 0.0
      %2648 = vmatprep.subr.mxu0 0.0
      %2649 = vmatpush1.msra.mxu0 0.0
      %2650 = vmatprep.subr.mxu0 0.0
      %2651 = vmatpush1.msra.mxu0 0.0
      %2652 = vmatprep.mubr.f32.mxu0 0.0
      %2653 = vmatmul.mubr.f32.gmra.mrb[0].mxu0 0.0
      %v2654 = vpop.f32.mrb[0].mxu0
      %v2655 = vadd.f32 0.0, %v2654
      %v2656 = vpop.f32.mrb[0].mxu0
      %v2657 = vadd.f32 0.0, %v2656
      %2658 = vdwg.mxu0
      %v2659 = vadd.f32 %v2513, %v2584
      %v2660 = vadd.f32 %v2514, %v2586
      %v2661 = vadd.f32 %v2515, %v2655
      %v2662 = vadd.f32 %v2516, %v2657
      %v2663 = vmul.f32 %v2659, 0.5
      %v2664 = vtanh.pop %v2663
      %v2665 = vmul.f32 %v2664, 0.5
      %v2666 = vadd.f32 %v2665, 0.5
      %v2667 = vmul.f32 %v2660, 0.5
      %v2668 = vtanh.pop %v2667
      %v2669 = vmul.f32 %v2668, 0.5
      %v2670 = vadd.f32 %v2669, 0.5
      %v2671 = vtanh.pop %v2661
      %v2672 = vmul.f32 %v2662, 0.5
      %v2673 = vtanh.pop %v2672
      %v2674 = vmul.f32 %v2673, 0.5
      %v2675 = vadd.f32 %v2674, 0.5
      %v2676 = vmul.f32 %v2670, 0.0
      %v2677 = vmul.f32 %v2666, %v2671
      %v2678 = vadd.f32 %v2676, %v2677
      %v2679 = vtanh.pop %v2678
      %v2680 = vmul.f32 %v2675, %v2679
      %2681 = vst [vmem:[#allocation3] sm:$0xff] %v2680
      %v2682 = vld [vmem:[%s888] sm:$0xff]
      %v2683 = vld [vmem:[%s888 + $0x8] sm:$0xff]
      %v2684 = vld [vmem:[%s888 + $0x10] sm:$0xff]
      %v2685 = vld [vmem:[%s888 + $0x18] sm:$0xff]
      %2686 = vmatprep.subr.mxu0 %v2450
      %2687 = vmatpush1.msra.mxu0 %v2449
      %2688 = vmatprep.subr.mxu0 %v2454
      %2689 = vmatpush1.msra.mxu0 %v2453
      %2690 = vmatprep.subr.mxu0 %v2458
      %2691 = vmatpush1.msra.mxu0 %v2457
      %2692 = vmatprep.subr.mxu0 %v2462
      %2693 = vmatpush1.msra.mxu0 %v2461
      %2694 = vmatprep.subr.mxu0 %v2466
      %2695 = vmatpush1.msra.mxu0 %v2465
      %2696 = vmatprep.subr.mxu0 %v2470
      %2697 = vmatpush1.msra.mxu0 %v2469
      %2698 = vmatprep.subr.mxu0 %v2474
      %2699 = vmatpush1.msra.mxu0 %v2473
      %2700 = vmatprep.subr.mxu0 %v2478
      %2701 = vmatpush1.msra.mxu0 %v2477
      %2702 = vmatprep.subr.mxu0 %v2482
      %2703 = vmatpush1.msra.mxu0 %v2481
      %2704 = vmatprep.subr.mxu0 %v2486
      %2705 = vmatpush1.msra.mxu0 %v2485
      %2706 = vmatprep.subr.mxu0 %v2490
      %2707 = vmatpush1.msra.mxu0 %v2489
      %2708 = vmatprep.subr.mxu0 %v2494
      %2709 = vmatpush1.msra.mxu0 %v2493
      %2710 = vmatprep.subr.mxu0 %v2498
      %2711 = vmatpush1.msra.mxu0 %v2497
      %2712 = vmatprep.subr.mxu0 %v2502
      %2713 = vmatpush1.msra.mxu0 %v2501
      %2714 = vmatprep.subr.mxu0 %v2506
      %2715 = vmatpush1.msra.mxu0 %v2505
      %2716 = vmatprep.subr.mxu0 %v2510
      %2717 = vmatpush1.msra.mxu0 %v2509
      %2718 = vmatprep.subr.mxu0 0.0
      %2719 = vmatpush1.msra.mxu0 0.0
      %2720 = vmatprep.subr.mxu0 0.0
      %2721 = vmatpush1.msra.mxu0 0.0
      %2722 = vmatprep.subr.mxu0 0.0
      %2723 = vmatpush1.msra.mxu0 0.0
      %2724 = vmatprep.subr.mxu0 0.0
      %2725 = vmatpush1.msra.mxu0 0.0
      %2726 = vmatprep.subr.mxu0 0.0
      %2727 = vmatpush1.msra.mxu0 0.0
      %2728 = vmatprep.subr.mxu0 0.0
      %2729 = vmatpush1.msra.mxu0 0.0
      %2730 = vmatprep.subr.mxu0 0.0
      %2731 = vmatpush1.msra.mxu0 0.0
      %2732 = vmatprep.subr.mxu0 0.0
      %2733 = vmatpush1.msra.mxu0 0.0
      %2734 = vmatprep.subr.mxu0 0.0
      %2735 = vmatpush1.msra.mxu0 0.0
      %2736 = vmatprep.subr.mxu0 0.0
      %2737 = vmatpush1.msra.mxu0 0.0
      %2738 = vmatprep.subr.mxu0 0.0
      %2739 = vmatpush1.msra.mxu0 0.0
      %2740 = vmatprep.subr.mxu0 0.0
      %2741 = vmatpush1.msra.mxu0 0.0
      %2742 = vmatprep.subr.mxu0 0.0
      %2743 = vmatpush1.msra.mxu0 0.0
      %2744 = vmatprep.subr.mxu0 0.0
      %2745 = vmatpush1.msra.mxu0 0.0
      %2746 = vmatprep.subr.mxu0 0.0
      %2747 = vmatpush1.msra.mxu0 0.0
      %2748 = vmatprep.subr.mxu0 0.0
      %2749 = vmatpush1.msra.mxu0 0.0
      %2750 = vmatprep.mubr.f32.mxu0 0.0
      %2751 = vmatmul.mubr.f32.gmra.mrb[0].mxu0 %v2680
      %v2752 = vpop.f32.mrb[0].mxu0
      %v2753 = vadd.f32 0.0, %v2752
      %v2754 = vpop.f32.mrb[0].mxu0
      %v2755 = vadd.f32 0.0, %v2754
      %2756 = vdwg.mxu0
      %2757 = vmatprep.subr.mxu0 %v2452
      %2758 = vmatpush1.msra.mxu0 %v2451
      %2759 = vmatprep.subr.mxu0 %v2456
      %2760 = vmatpush1.msra.mxu0 %v2455
      %2761 = vmatprep.subr.mxu0 %v2460
      %2762 = vmatpush1.msra.mxu0 %v2459
      %2763 = vmatprep.subr.mxu0 %v2464
      %2764 = vmatpush1.msra.mxu0 %v2463
      %2765 = vmatprep.subr.mxu0 %v2468
      %2766 = vmatpush1.msra.mxu0 %v2467
      %2767 = vmatprep.subr.mxu0 %v2472
      %2768 = vmatpush1.msra.mxu0 %v2471
      %2769 = vmatprep.subr.mxu0 %v2476
      %2770 = vmatpush1.msra.mxu0 %v2475
      %2771 = vmatprep.subr.mxu0 %v2480
      %2772 = vmatpush1.msra.mxu0 %v2479
      %2773 = vmatprep.subr.mxu0 %v2484
      %2774 = vmatpush1.msra.mxu0 %v2483
      %2775 = vmatprep.subr.mxu0 %v2488
      %2776 = vmatpush1.msra.mxu0 %v2487
      %2777 = vmatprep.subr.mxu0 %v2492
      %2778 = vmatpush1.msra.mxu0 %v2491
      %2779 = vmatprep.subr.mxu0 %v2496
      %2780 = vmatpush1.msra.mxu0 %v2495
      %2781 = vmatprep.subr.mxu0 %v2500
      %2782 = vmatpush1.msra.mxu0 %v2499
      %2783 = vmatprep.subr.mxu0 %v2504
      %2784 = vmatpush1.msra.mxu0 %v2503
      %2785 = vmatprep.subr.mxu0 %v2508
      %2786 = vmatpush1.msra.mxu0 %v2507
      %2787 = vmatprep.subr.mxu0 %v2512
      %2788 = vmatpush1.msra.mxu0 %v2511
      %2789 = vmatprep.subr.mxu0 0.0
      %2790 = vmatpush1.msra.mxu0 0.0
      %2791 = vmatprep.subr.mxu0 0.0
      %2792 = vmatpush1.msra.mxu0 0.0
      %2793 = vmatprep.subr.mxu0 0.0
      %2794 = vmatpush1.msra.mxu0 0.0
      %2795 = vmatprep.subr.mxu0 0.0
      %2796 = vmatpush1.msra.mxu0 0.0
      %2797 = vmatprep.subr.mxu0 0.0
      %2798 = vmatpush1.msra.mxu0 0.0
      %2799 = vmatprep.subr.mxu0 0.0
      %2800 = vmatpush1.msra.mxu0 0.0
      %2801 = vmatprep.subr.mxu0 0.0
      %2802 = vmatpush1.msra.mxu0 0.0
      %2803 = vmatprep.subr.mxu0 0.0
      %2804 = vmatpush1.msra.mxu0 0.0
      %2805 = vmatprep.subr.mxu0 0.0
      %2806 = vmatpush1.msra.mxu0 0.0
      %2807 = vmatprep.subr.mxu0 0.0
      %2808 = vmatpush1.msra.mxu0 0.0
      %2809 = vmatprep.subr.mxu0 0.0
      %2810 = vmatpush1.msra.mxu0 0.0
      %2811 = vmatprep.subr.mxu0 0.0
      %2812 = vmatpush1.msra.mxu0 0.0
      %2813 = vmatprep.subr.mxu0 0.0
      %2814 = vmatpush1.msra.mxu0 0.0
      %2815 = vmatprep.subr.mxu0 0.0
      %2816 = vmatpush1.msra.mxu0 0.0
      %2817 = vmatprep.subr.mxu0 0.0
      %2818 = vmatpush1.msra.mxu0 0.0
      %2819 = vmatprep.subr.mxu0 0.0
      %2820 = vmatpush1.msra.mxu0 0.0
      %2821 = vmatprep.mubr.f32.mxu0 0.0
      %2822 = vmatmul.mubr.f32.gmra.mrb[0].mxu0 %v2680
      %v2823 = vpop.f32.mrb[0].mxu0
      %v2824 = vadd.f32 0.0, %v2823
      %v2825 = vpop.f32.mrb[0].mxu0
      %v2826 = vadd.f32 0.0, %v2825
      %2827 = vdwg.mxu0
      %v2828 = vadd.f32 %v2682, %v2753
      %v2829 = vadd.f32 %v2683, %v2755
      %v2830 = vadd.f32 %v2684, %v2824
      %v2831 = vadd.f32 %v2685, %v2826
      %v2832 = vmul.f32 %v2828, 0.5
      %v2833 = vtanh.pop %v2832
      %v2834 = vmul.f32 %v2833, 0.5
      %v2835 = vadd.f32 %v2834, 0.5
      %v2836 = vmul.f32 %v2829, 0.5
      %v2837 = vtanh.pop %v2836
      %v2838 = vmul.f32 %v2837, 0.5
      %v2839 = vadd.f32 %v2838, 0.5
      %v2840 = vtanh.pop %v2830
      %v2841 = vmul.f32 %v2831, 0.5
      %v2842 = vtanh.pop %v2841
      %v2843 = vmul.f32 %v2842, 0.5
      %v2844 = vadd.f32 %v2843, 0.5
      %v2845 = vmul.f32 %v2839, %v2678
      %v2846 = vmul.f32 %v2835, %v2840
      %v2847 = vadd.f32 %v2845, %v2846
      %v2848 = vtanh.pop %v2847
      %v2849 = vmul.f32 %v2844, %v2848
      %2850 = vst [vmem:[%s1057] sm:$0xff] %v2849
      %v2851 = vld [vmem:[%s1061] sm:$0xff]
      %v2852 = vld [vmem:[%s1061 + $0x8] sm:$0xff]
      %v2853 = vld [vmem:[%s1061 + $0x10] sm:$0xff]
      %v2854 = vld [vmem:[%s1061 + $0x18] sm:$0xff]
      %2855 = vmatprep.subr.mxu0 %v2450
      %2856 = vmatpush1.msra.mxu0 %v2449
      %2857 = vmatprep.subr.mxu0 %v2454
      %2858 = vmatpush1.msra.mxu0 %v2453
      %2859 = vmatprep.subr.mxu0 %v2458
      %2860 = vmatpush1.msra.mxu0 %v2457
      %2861 = vmatprep.subr.mxu0 %v2462
      %2862 = vmatpush1.msra.mxu0 %v2461
      %2863 = vmatprep.subr.mxu0 %v2466
      %2864 = vmatpush1.msra.mxu0 %v2465
      %2865 = vmatprep.subr.mxu0 %v2470
      %2866 = vmatpush1.msra.mxu0 %v2469
      %2867 = vmatprep.subr.mxu0 %v2474
      %2868 = vmatpush1.msra.mxu0 %v2473
      %2869 = vmatprep.subr.mxu0 %v2478
      %2870 = vmatpush1.msra.mxu0 %v2477
      %2871 = vmatprep.subr.mxu0 %v2482
      %2872 = vmatpush1.msra.mxu0 %v2481
      %2873 = vmatprep.subr.mxu0 %v2486
      %2874 = vmatpush1.msra.mxu0 %v2485
      %2875 = vmatprep.subr.mxu0 %v2490
      %2876 = vmatpush1.msra.mxu0 %v2489
      %2877 = vmatprep.subr.mxu0 %v2494
      %2878 = vmatpush1.msra.mxu0 %v2493
      %2879 = vmatprep.subr.mxu0 %v2498
      %2880 = vmatpush1.msra.mxu0 %v2497
      %2881 = vmatprep.subr.mxu0 %v2502
      %2882 = vmatpush1.msra.mxu0 %v2501
      %2883 = vmatprep.subr.mxu0 %v2506
      %2884 = vmatpush1.msra.mxu0 %v2505
      %2885 = vmatprep.subr.mxu0 %v2510
      %2886 = vmatpush1.msra.mxu0 %v2509
      %2887 = vmatprep.subr.mxu0 0.0
      %2888 = vmatpush1.msra.mxu0 0.0
      %2889 = vmatprep.subr.mxu0 0.0
      %2890 = vmatpush1.msra.mxu0 0.0
      %2891 = vmatprep.subr.mxu0 0.0
      %2892 = vmatpush1.msra.mxu0 0.0
      %2893 = vmatprep.subr.mxu0 0.0
      %2894 = vmatpush1.msra.mxu0 0.0
      %2895 = vmatprep.subr.mxu0 0.0
      %2896 = vmatpush1.msra.mxu0 0.0
      %2897 = vmatprep.subr.mxu0 0.0
      %2898 = vmatpush1.msra.mxu0 0.0
      %2899 = vmatprep.subr.mxu0 0.0
      %2900 = vmatpush1.msra.mxu0 0.0
      %2901 = vmatprep.subr.mxu0 0.0
      %2902 = vmatpush1.msra.mxu0 0.0
      %2903 = vmatprep.subr.mxu0 0.0
      %2904 = vmatpush1.msra.mxu0 0.0
      %2905 = vmatprep.subr.mxu0 0.0
      %2906 = vmatpush1.msra.mxu0 0.0
      %2907 = vmatprep.subr.mxu0 0.0
      %2908 = vmatpush1.msra.mxu0 0.0
      %2909 = vmatprep.subr.mxu0 0.0
      %2910 = vmatpush1.msra.mxu0 0.0
      %2911 = vmatprep.subr.mxu0 0.0
      %2912 = vmatpush1.msra.mxu0 0.0
      %2913 = vmatprep.subr.mxu0 0.0
      %2914 = vmatpush1.msra.mxu0 0.0
      %2915 = vmatprep.subr.mxu0 0.0
      %2916 = vmatpush1.msra.mxu0 0.0
      %2917 = vmatprep.subr.mxu0 0.0
      %2918 = vmatpush1.msra.mxu0 0.0
      %2919 = vmatprep.mubr.f32.mxu0 0.0
      %2920 = vmatmul.mubr.f32.gmra.mrb[0].mxu0 %v2849
      %v2921 = vpop.f32.mrb[0].mxu0
      %v2922 = vadd.f32 0.0, %v2921
      %v2923 = vpop.f32.mrb[0].mxu0
      %v2924 = vadd.f32 0.0, %v2923
      %2925 = vdwg.mxu0
      %2926 = vmatprep.subr.mxu0 %v2452
      %2927 = vmatpush1.msra.mxu0 %v2451
      %2928 = vmatprep.subr.mxu0 %v2456
      %2929 = vmatpush1.msra.mxu0 %v2455
      %2930 = vmatprep.subr.mxu0 %v2460
      %2931 = vmatpush1.msra.mxu0 %v2459
      %2932 = vmatprep.subr.mxu0 %v2464
      %2933 = vmatpush1.msra.mxu0 %v2463
      %2934 = vmatprep.subr.mxu0 %v2468
      %2935 = vmatpush1.msra.mxu0 %v2467
      %2936 = vmatprep.subr.mxu0 %v2472
      %2937 = vmatpush1.msra.mxu0 %v2471
      %2938 = vmatprep.subr.mxu0 %v2476
      %2939 = vmatpush1.msra.mxu0 %v2475
      %2940 = vmatprep.subr.mxu0 %v2480
      %2941 = vmatpush1.msra.mxu0 %v2479
      %2942 = vmatprep.subr.mxu0 %v2484
      %2943 = vmatpush1.msra.mxu0 %v2483
      %2944 = vmatprep.subr.mxu0 %v2488
      %2945 = vmatpush1.msra.mxu0 %v2487
      %2946 = vmatprep.subr.mxu0 %v2492
      %2947 = vmatpush1.msra.mxu0 %v2491
      %2948 = vmatprep.subr.mxu0 %v2496
      %2949 = vmatpush1.msra.mxu0 %v2495
      %2950 = vmatprep.subr.mxu0 %v2500
      %2951 = vmatpush1.msra.mxu0 %v2499
      %2952 = vmatprep.subr.mxu0 %v2504
      %2953 = vmatpush1.msra.mxu0 %v2503
      %2954 = vmatprep.subr.mxu0 %v2508
      %2955 = vmatpush1.msra.mxu0 %v2507
      %2956 = vmatprep.subr.mxu0 %v2512
      %2957 = vmatpush1.msra.mxu0 %v2511
      %2958 = vmatprep.subr.mxu0 0.0
      %2959 = vmatpush1.msra.mxu0 0.0
      %2960 = vmatprep.subr.mxu0 0.0
      %2961 = vmatpush1.msra.mxu0 0.0
      %2962 = vmatprep.subr.mxu0 0.0
      %2963 = vmatpush1.msra.mxu0 0.0
      %2964 = vmatprep.subr.mxu0 0.0
      %2965 = vmatpush1.msra.mxu0 0.0
      %2966 = vmatprep.subr.mxu0 0.0
      %2967 = vmatpush1.msra.mxu0 0.0
      %2968 = vmatprep.subr.mxu0 0.0
      %2969 = vmatpush1.msra.mxu0 0.0
      %2970 = vmatprep.subr.mxu0 0.0
      %2971 = vmatpush1.msra.mxu0 0.0
      %2972 = vmatprep.subr.mxu0 0.0
      %2973 = vmatpush1.msra.mxu0 0.0
      %2974 = vmatprep.subr.mxu0 0.0
      %2975 = vmatpush1.msra.mxu0 0.0
      %2976 = vmatprep.subr.mxu0 0.0
      %2977 = vmatpush1.msra.mxu0 0.0
      %2978 = vmatprep.subr.mxu0 0.0
      %2979 = vmatpush1.msra.mxu0 0.0
      %2980 = vmatprep.subr.mxu0 0.0
      %2981 = vmatpush1.msra.mxu0 0.0
      %2982 = vmatprep.subr.mxu0 0.0
      %2983 = vmatpush1.msra.mxu0 0.0
      %2984 = vmatprep.subr.mxu0 0.0
      %2985 = vmatpush1.msra.mxu0 0.0
      %2986 = vmatprep.subr.mxu0 0.0
      %2987 = vmatpush1.msra.mxu0 0.0
      %2988 = vmatprep.subr.mxu0 0.0
      %2989 = vmatpush1.msra.mxu0 0.0
      %2990 = vmatprep.mubr.f32.mxu0 0.0
      %2991 = vmatmul.mubr.f32.gmra.mrb[0].mxu0 %v2849
      %v2992 = vpop.f32.mrb[0].mxu0
      %v2993 = vadd.f32 0.0, %v2992
      %v2994 = vpop.f32.mrb[0].mxu0
      %v2995 = vadd.f32 0.0, %v2994
      %2996 = vdwg.mxu0
      %v2997 = vadd.f32 %v2851, %v2922
      %v2998 = vadd.f32 %v2852, %v2924
      %v2999 = vadd.f32 %v2853, %v2993
      %v3000 = vadd.f32 %v2854, %v2995
      %v3001 = vmul.f32 %v2997, 0.5
      %v3002 = vtanh.pop %v3001
      %v3003 = vmul.f32 %v3002, 0.5
      %v3004 = vadd.f32 %v3003, 0.5
      %v3005 = vmul.f32 %v2998, 0.5
      %v3006 = vtanh.pop %v3005
      %v3007 = vmul.f32 %v3006, 0.5
      %v3008 = vadd.f32 %v3007, 0.5
      %v3009 = vtanh.pop %v2999
      %v3010 = vmul.f32 %v3000, 0.5
      %v3011 = vtanh.pop %v3010
      %v3012 = vmul.f32 %v3011, 0.5
      %v3013 = vadd.f32 %v3012, 0.5
      %v3014 = vmul.f32 %v3008, %v2847
      %v3015 = vmul.f32 %v3004, %v3009
      %v3016 = vadd.f32 %v3014, %v3015
      %v3017 = vtanh.pop %v3016
      %v3018 = vmul.f32 %v3013, %v3017
      %3019 = vst [vmem:[%s1230] sm:$0xff] %v3018
      %v3020 = vld [vmem:[%s1234] sm:$0xff]
      %v3021 = vld [vmem:[%s1234 + $0x8] sm:$0xff]
      %v3022 = vld [vmem:[%s1234 + $0x10] sm:$0xff]
      %v3023 = vld [vmem:[%s1234 + $0x18] sm:$0xff]
      %3024 = vmatprep.subr.mxu0 %v2450
      %3025 = vmatpush1.msra.mxu0 %v2449
      %3026 = vmatprep.subr.mxu0 %v2454
      %3027 = vmatpush1.msra.mxu0 %v2453
      %3028 = vmatprep.subr.mxu0 %v2458
      %3029 = vmatpush1.msra.mxu0 %v2457
      %3030 = vmatprep.subr.mxu0 %v2462
      %3031 = vmatpush1.msra.mxu0 %v2461
      %3032 = vmatprep.subr.mxu0 %v2466
      %3033 = vmatpush1.msra.mxu0 %v2465
      %3034 = vmatprep.subr.mxu0 %v2470
      %3035 = vmatpush1.msra.mxu0 %v2469
      %3036 = vmatprep.subr.mxu0 %v2474
      %3037 = vmatpush1.msra.mxu0 %v2473
      %3038 = vmatprep.subr.mxu0 %v2478
      %3039 = vmatpush1.msra.mxu0 %v2477
      %3040 = vmatprep.subr.mxu0 %v2482
      %3041 = vmatpush1.msra.mxu0 %v2481
      %3042 = vmatprep.subr.mxu0 %v2486
      %3043 = vmatpush1.msra.mxu0 %v2485
      %3044 = vmatprep.subr.mxu0 %v2490
      %3045 = vmatpush1.msra.mxu0 %v2489
      %3046 = vmatprep.subr.mxu0 %v2494
      %3047 = vmatpush1.msra.mxu0 %v2493
      %3048 = vmatprep.subr.mxu0 %v2498
      %3049 = vmatpush1.msra.mxu0 %v2497
      %3050 = vmatprep.subr.mxu0 %v2502
      %3051 = vmatpush1.msra.mxu0 %v2501
      %3052 = vmatprep.subr.mxu0 %v2506
      %3053 = vmatpush1.msra.mxu0 %v2505
      %3054 = vmatprep.subr.mxu0 %v2510
      %3055 = vmatpush1.msra.mxu0 %v2509
      %3056 = vmatprep.subr.mxu0 0.0
      %3057 = vmatpush1.msra.mxu0 0.0
      %3058 = vmatprep.subr.mxu0 0.0
      %3059 = vmatpush1.msra.mxu0 0.0
      %3060 = vmatprep.subr.mxu0 0.0
      %3061 = vmatpush1.msra.mxu0 0.0
      %3062 = vmatprep.subr.mxu0 0.0
      %3063 = vmatpush1.msra.mxu0 0.0
      %3064 = vmatprep.subr.mxu0 0.0
      %3065 = vmatpush1.msra.mxu0 0.0
      %3066 = vmatprep.subr.mxu0 0.0
      %3067 = vmatpush1.msra.mxu0 0.0
      %3068 = vmatprep.subr.mxu0 0.0
      %3069 = vmatpush1.msra.mxu0 0.0
      %3070 = vmatprep.subr.mxu0 0.0
      %3071 = vmatpush1.msra.mxu0 0.0
      %3072 = vmatprep.subr.mxu0 0.0
      %3073 = vmatpush1.msra.mxu0 0.0
      %3074 = vmatprep.subr.mxu0 0.0
      %3075 = vmatpush1.msra.mxu0 0.0
      %3076 = vmatprep.subr.mxu0 0.0
      %3077 = vmatpush1.msra.mxu0 0.0
      %3078 = vmatprep.subr.mxu0 0.0
      %3079 = vmatpush1.msra.mxu0 0.0
      %3080 = vmatprep.subr.mxu0 0.0
      %3081 = vmatpush1.msra.mxu0 0.0
      %3082 = vmatprep.subr.mxu0 0.0
      %3083 = vmatpush1.msra.mxu0 0.0
      %3084 = vmatprep.subr.mxu0 0.0
      %3085 = vmatpush1.msra.mxu0 0.0
      %3086 = vmatprep.subr.mxu0 0.0
      %3087 = vmatpush1.msra.mxu0 0.0
      %3088 = vmatprep.mubr.f32.mxu0 0.0
      %3089 = vmatmul.mubr.f32.gmra.mrb[0].mxu0 %v3018
      %v3090 = vpop.f32.mrb[0].mxu0
      %v3091 = vadd.f32 0.0, %v3090
      %v3092 = vpop.f32.mrb[0].mxu0
      %v3093 = vadd.f32 0.0, %v3092
      %3094 = vdwg.mxu0
      %3095 = vmatprep.subr.mxu0 %v2452
      %3096 = vmatpush1.msra.mxu0 %v2451
      %3097 = vmatprep.subr.mxu0 %v2456
      %3098 = vmatpush1.msra.mxu0 %v2455
      %3099 = vmatprep.subr.mxu0 %v2460
      %3100 = vmatpush1.msra.mxu0 %v2459
      %3101 = vmatprep.subr.mxu0 %v2464
      %3102 = vmatpush1.msra.mxu0 %v2463
      %3103 = vmatprep.subr.mxu0 %v2468
      %3104 = vmatpush1.msra.mxu0 %v2467
      %3105 = vmatprep.subr.mxu0 %v2472
      %3106 = vmatpush1.msra.mxu0 %v2471
      %3107 = vmatprep.subr.mxu0 %v2476
      %3108 = vmatpush1.msra.mxu0 %v2475
      %3109 = vmatprep.subr.mxu0 %v2480
      %3110 = vmatpush1.msra.mxu0 %v2479
      %3111 = vmatprep.subr.mxu0 %v2484
      %3112 = vmatpush1.msra.mxu0 %v2483
      %3113 = vmatprep.subr.mxu0 %v2488
      %3114 = vmatpush1.msra.mxu0 %v2487
      %3115 = vmatprep.subr.mxu0 %v2492
      %3116 = vmatpush1.msra.mxu0 %v2491
      %3117 = vmatprep.subr.mxu0 %v2496
      %3118 = vmatpush1.msra.mxu0 %v2495
      %3119 = vmatprep.subr.mxu0 %v2500
      %3120 = vmatpush1.msra.mxu0 %v2499
      %3121 = vmatprep.subr.mxu0 %v2504
      %3122 = vmatpush1.msra.mxu0 %v2503
      %3123 = vmatprep.subr.mxu0 %v2508
      %3124 = vmatpush1.msra.mxu0 %v2507
      %3125 = vmatprep.subr.mxu0 %v2512
      %3126 = vmatpush1.msra.mxu0 %v2511
      %3127 = vmatprep.subr.mxu0 0.0
      %3128 = vmatpush1.msra.mxu0 0.0
      %3129 = vmatprep.subr.mxu0 0.0
      %3130 = vmatpush1.msra.mxu0 0.0
      %3131 = vmatprep.subr.mxu0 0.0
      %3132 = vmatpush1.msra.mxu0 0.0
      %3133 = vmatprep.subr.mxu0 0.0
      %3134 = vmatpush1.msra.mxu0 0.0
      %3135 = vmatprep.subr.mxu0 0.0
      %3136 = vmatpush1.msra.mxu0 0.0
      %3137 = vmatprep.subr.mxu0 0.0
      %3138 = vmatpush1.msra.mxu0 0.0
      %3139 = vmatprep.subr.mxu0 0.0
      %3140 = vmatpush1.msra.mxu0 0.0
      %3141 = vmatprep.subr.mxu0 0.0
      %3142 = vmatpush1.msra.mxu0 0.0
      %3143 = vmatprep.subr.mxu0 0.0
      %3144 = vmatpush1.msra.mxu0 0.0
      %3145 = vmatprep.subr.mxu0 0.0
      %3146 = vmatpush1.msra.mxu0 0.0
      %3147 = vmatprep.subr.mxu0 0.0
      %3148 = vmatpush1.msra.mxu0 0.0
      %3149 = vmatprep.subr.mxu0 0.0
      %3150 = vmatpush1.msra.mxu0 0.0
      %3151 = vmatprep.subr.mxu0 0.0
      %3152 = vmatpush1.msra.mxu0 0.0
      %3153 = vmatprep.subr.mxu0 0.0
      %3154 = vmatpush1.msra.mxu0 0.0
      %3155 = vmatprep.subr.mxu0 0.0
      %3156 = vmatpush1.msra.mxu0 0.0
      %3157 = vmatprep.subr.mxu0 0.0
      %3158 = vmatpush1.msra.mxu0 0.0
      %3159 = vmatprep.mubr.f32.mxu0 0.0
      %3160 = vmatmul.mubr.f32.gmra.mrb[0].mxu0 %v3018
      %v3161 = vpop.f32.mrb[0].mxu0
      %v3162 = vadd.f32 0.0, %v3161
      %v3163 = vpop.f32.mrb[0].mxu0
      %v3164 = vadd.f32 0.0, %v3163
      %3165 = vdwg.mxu0
      %v3166 = vadd.f32 %v3020, %v3091
      %v3167 = vadd.f32 %v3021, %v3093
      %v3168 = vadd.f32 %v3022, %v3162
      %v3169 = vadd.f32 %v3023, %v3164
      %v3170 = vmul.f32 %v3166, 0.5
      %v3171 = vtanh.pop %v3170
      %v3172 = vmul.f32 %v3171, 0.5
      %v3173 = vadd.f32 %v3172, 0.5
      %v3174 = vmul.f32 %v3167, 0.5
      %v3175 = vtanh.pop %v3174
      %v3176 = vmul.f32 %v3175, 0.5
      %v3177 = vadd.f32 %v3176, 0.5
      %v3178 = vtanh.pop %v3168
      %v3179 = vmul.f32 %v3169, 0.5
      %v3180 = vtanh.pop %v3179
      %v3181 = vmul.f32 %v3180, 0.5
      %v3182 = vadd.f32 %v3181, 0.5
      %v3183 = vmul.f32 %v3177, %v3016
      %v3184 = vmul.f32 %v3173, %v3178
      %v3185 = vadd.f32 %v3183, %v3184
      %v3186 = vtanh.pop %v3185
      %v3187 = vmul.f32 %v3182, %v3186
      %3188 = vst [vmem:[%s1403] sm:$0xff] %v3187
      %v3189 = vld [vmem:[%s1407] sm:$0xff]
      %v3190 = vld [vmem:[%s1407 + $0x8] sm:$0xff]
      %v3191 = vld [vmem:[%s1407 + $0x10] sm:$0xff]
      %v3192 = vld [vmem:[%s1407 + $0x18] sm:$0xff]
      %3193 = vmatprep.subr.mxu0 %v2450
      %3194 = vmatpush1.msra.mxu0 %v2449
      %3195 = vmatprep.subr.mxu0 %v2454
      %3196 = vmatpush1.msra.mxu0 %v2453
      %3197 = vmatprep.subr.mxu0 %v2458
      %3198 = vmatpush1.msra.mxu0 %v2457
      %3199 = vmatprep.subr.mxu0 %v2462
      %3200 = vmatpush1.msra.mxu0 %v2461
      %3201 = vmatprep.subr.mxu0 %v2466
      %3202 = vmatpush1.msra.mxu0 %v2465
      %3203 = vmatprep.subr.mxu0 %v2470
      %3204 = vmatpush1.msra.mxu0 %v2469
      %3205 = vmatprep.subr.mxu0 %v2474
      %3206 = vmatpush1.msra.mxu0 %v2473
      %3207 = vmatprep.subr.mxu0 %v2478
      %3208 = vmatpush1.msra.mxu0 %v2477
      %3209 = vmatprep.subr.mxu0 %v2482
      %3210 = vmatpush1.msra.mxu0 %v2481
      %3211 = vmatprep.subr.mxu0 %v2486
      %3212 = vmatpush1.msra.mxu0 %v2485
      %3213 = vmatprep.subr.mxu0 %v2490
      %3214 = vmatpush1.msra.mxu0 %v2489
      %3215 = vmatprep.subr.mxu0 %v2494
      %3216 = vmatpush1.msra.mxu0 %v2493
      %3217 = vmatprep.subr.mxu0 %v2498
      %3218 = vmatpush1.msra.mxu0 %v2497
      %3219 = vmatprep.subr.mxu0 %v2502
      %3220 = vmatpush1.msra.mxu0 %v2501
      %3221 = vmatprep.subr.mxu0 %v2506
      %3222 = vmatpush1.msra.mxu0 %v2505
      %3223 = vmatprep.subr.mxu0 %v2510
      %3224 = vmatpush1.msra.mxu0 %v2509
      %3225 = vmatprep.subr.mxu0 0.0
      %3226 = vmatpush1.msra.mxu0 0.0
      %3227 = vmatprep.subr.mxu0 0.0
      %3228 = vmatpush1.msra.mxu0 0.0
      %3229 = vmatprep.subr.mxu0 0.0
      %3230 = vmatpush1.msra.mxu0 0.0
      %3231 = vmatprep.subr.mxu0 0.0
      %3232 = vmatpush1.msra.mxu0 0.0
      %3233 = vmatprep.subr.mxu0 0.0
      %3234 = vmatpush1.msra.mxu0 0.0
      %3235 = vmatprep.subr.mxu0 0.0
      %3236 = vmatpush1.msra.mxu0 0.0
      %3237 = vmatprep.subr.mxu0 0.0
      %3238 = vmatpush1.msra.mxu0 0.0
      %3239 = vmatprep.subr.mxu0 0.0
      %3240 = vmatpush1.msra.mxu0 0.0
      %3241 = vmatprep.subr.mxu0 0.0
      %3242 = vmatpush1.msra.mxu0 0.0
      %3243 = vmatprep.subr.mxu0 0.0
      %3244 = vmatpush1.msra.mxu0 0.0
      %3245 = vmatprep.subr.mxu0 0.0
      %3246 = vmatpush1.msra.mxu0 0.0
      %3247 = vmatprep.subr.mxu0 0.0
      %3248 = vmatpush1.msra.mxu0 0.0
      %3249 = vmatprep.subr.mxu0 0.0
      %3250 = vmatpush1.msra.mxu0 0.0
      %3251 = vmatprep.subr.mxu0 0.0
      %3252 = vmatpush1.msra.mxu0 0.0
      %3253 = vmatprep.subr.mxu0 0.0
      %3254 = vmatpush1.msra.mxu0 0.0
      %3255 = vmatprep.subr.mxu0 0.0
      %3256 = vmatpush1.msra.mxu0 0.0
      %3257 = vmatprep.mubr.f32.mxu0 0.0
      %3258 = vmatmul.mubr.f32.gmra.mrb[0].mxu0 %v3187
      %v3259 = vpop.f32.mrb[0].mxu0
      %v3260 = vadd.f32 0.0, %v3259
      %v3261 = vpop.f32.mrb[0].mxu0
      %v3262 = vadd.f32 0.0, %v3261
      %3263 = vdwg.mxu0
      %3264 = vmatprep.subr.mxu0 %v2452
      %3265 = vmatpush1.msra.mxu0 %v2451
      %3266 = vmatprep.subr.mxu0 %v2456
      %3267 = vmatpush1.msra.mxu0 %v2455
      %3268 = vmatprep.subr.mxu0 %v2460
      %3269 = vmatpush1.msra.mxu0 %v2459
      %3270 = vmatprep.subr.mxu0 %v2464
      %3271 = vmatpush1.msra.mxu0 %v2463
      %3272 = vmatprep.subr.mxu0 %v2468
      %3273 = vmatpush1.msra.mxu0 %v2467
      %3274 = vmatprep.subr.mxu0 %v2472
      %3275 = vmatpush1.msra.mxu0 %v2471
      %3276 = vmatprep.subr.mxu0 %v2476
      %3277 = vmatpush1.msra.mxu0 %v2475
      %3278 = vmatprep.subr.mxu0 %v2480
      %3279 = vmatpush1.msra.mxu0 %v2479
      %3280 = vmatprep.subr.mxu0 %v2484
      %3281 = vmatpush1.msra.mxu0 %v2483
      %3282 = vmatprep.subr.mxu0 %v2488
      %3283 = vmatpush1.msra.mxu0 %v2487
      %3284 = vmatprep.subr.mxu0 %v2492
      %3285 = vmatpush1.msra.mxu0 %v2491
      %3286 = vmatprep.subr.mxu0 %v2496
      %3287 = vmatpush1.msra.mxu0 %v2495
      %3288 = vmatprep.subr.mxu0 %v2500
      %3289 = vmatpush1.msra.mxu0 %v2499
      %3290 = vmatprep.subr.mxu0 %v2504
      %3291 = vmatpush1.msra.mxu0 %v2503
      %3292 = vmatprep.subr.mxu0 %v2508
      %3293 = vmatpush1.msra.mxu0 %v2507
      %3294 = vmatprep.subr.mxu0 %v2512
      %3295 = vmatpush1.msra.mxu0 %v2511
      %3296 = vmatprep.subr.mxu0 0.0
      %3297 = vmatpush1.msra.mxu0 0.0
      %3298 = vmatprep.subr.mxu0 0.0
      %3299 = vmatpush1.msra.mxu0 0.0
      %3300 = vmatprep.subr.mxu0 0.0
      %3301 = vmatpush1.msra.mxu0 0.0
      %3302 = vmatprep.subr.mxu0 0.0
      %3303 = vmatpush1.msra.mxu0 0.0
      %3304 = vmatprep.subr.mxu0 0.0
      %3305 = vmatpush1.msra.mxu0 0.0
      %3306 = vmatprep.subr.mxu0 0.0
      %3307 = vmatpush1.msra.mxu0 0.0
      %3308 = vmatprep.subr.mxu0 0.0
      %3309 = vmatpush1.msra.mxu0 0.0
      %3310 = vmatprep.subr.mxu0 0.0
      %3311 = vmatpush1.msra.mxu0 0.0
      %3312 = vmatprep.subr.mxu0 0.0
      %3313 = vmatpush1.msra.mxu0 0.0
      %3314 = vmatprep.subr.mxu0 0.0
      %3315 = vmatpush1.msra.mxu0 0.0
      %3316 = vmatprep.subr.mxu0 0.0
      %3317 = vmatpush1.msra.mxu0 0.0
      %3318 = vmatprep.subr.mxu0 0.0
      %3319 = vmatpush1.msra.mxu0 0.0
      %3320 = vmatprep.subr.mxu0 0.0
      %3321 = vmatpush1.msra.mxu0 0.0
      %3322 = vmatprep.subr.mxu0 0.0
      %3323 = vmatpush1.msra.mxu0 0.0
      %3324 = vmatprep.subr.mxu0 0.0
      %3325 = vmatpush1.msra.mxu0 0.0
      %3326 = vmatprep.subr.mxu0 0.0
      %3327 = vmatpush1.msra.mxu0 0.0
      %3328 = vmatprep.mubr.f32.mxu0 0.0
      %3329 = vmatmul.mubr.f32.gmra.mrb[0].mxu0 %v3187
      %v3330 = vpop.f32.mrb[0].mxu0
      %v3331 = vadd.f32 0.0, %v3330
      %v3332 = vpop.f32.mrb[0].mxu0
      %v3333 = vadd.f32 0.0, %v3332
      %3334 = vdwg.mxu0
      %v3335 = vadd.f32 %v3189, %v3260
      %v3336 = vadd.f32 %v3190, %v3262
      %v3337 = vadd.f32 %v3191, %v3331
      %v3338 = vadd.f32 %v3192, %v3333
      %v3339 = vmul.f32 %v3335, 0.5
      %v3340 = vtanh.pop %v3339
      %v3341 = vmul.f32 %v3340, 0.5
      %v3342 = vadd.f32 %v3341, 0.5
      %v3343 = vmul.f32 %v3336, 0.5
      %v3344 = vtanh.pop %v3343
      %v3345 = vmul.f32 %v3344, 0.5
      %v3346 = vadd.f32 %v3345, 0.5
      %v3347 = vtanh.pop %v3337
      %v3348 = vmul.f32 %v3338, 0.5
      %v3349 = vtanh.pop %v3348
      %v3350 = vmul.f32 %v3349, 0.5
      %v3351 = vadd.f32 %v3350, 0.5
      %v3352 = vmul.f32 %v3346, %v3185
      %v3353 = vmul.f32 %v3342, %v3347
      %v3354 = vadd.f32 %v3352, %v3353
      %v3355 = vtanh.pop %v3354
      %v3356 = vmul.f32 %v3351, %v3355
      %3357 = vst [vmem:[%s1576] sm:$0xff] %v3356
      %v3358 = vld [vmem:[%s1580] sm:$0xff]
      %v3359 = vld [vmem:[%s1580 + $0x8] sm:$0xff]
      %v3360 = vld [vmem:[%s1580 + $0x10] sm:$0xff]
      %v3361 = vld [vmem:[%s1580 + $0x18] sm:$0xff]
      %3362 = vmatprep.subr.mxu0 %v2450
      %3363 = vmatpush1.msra.mxu0 %v2449
      %3364 = vmatprep.subr.mxu0 %v2454
      %3365 = vmatpush1.msra.mxu0 %v2453
      %3366 = vmatprep.subr.mxu0 %v2458
      %3367 = vmatpush1.msra.mxu0 %v2457
      %3368 = vmatprep.subr.mxu0 %v2462
      %3369 = vmatpush1.msra.mxu0 %v2461
      %3370 = vmatprep.subr.mxu0 %v2466
      %3371 = vmatpush1.msra.mxu0 %v2465
      %3372 = vmatprep.subr.mxu0 %v2470
      %3373 = vmatpush1.msra.mxu0 %v2469
      %3374 = vmatprep.subr.mxu0 %v2474
      %3375 = vmatpush1.msra.mxu0 %v2473
      %3376 = vmatprep.subr.mxu0 %v2478
      %3377 = vmatpush1.msra.mxu0 %v2477
      %3378 = vmatprep.subr.mxu0 %v2482
      %3379 = vmatpush1.msra.mxu0 %v2481
      %3380 = vmatprep.subr.mxu0 %v2486
      %3381 = vmatpush1.msra.mxu0 %v2485
      %3382 = vmatprep.subr.mxu0 %v2490
      %3383 = vmatpush1.msra.mxu0 %v2489
      %3384 = vmatprep.subr.mxu0 %v2494
      %3385 = vmatpush1.msra.mxu0 %v2493
      %3386 = vmatprep.subr.mxu0 %v2498
      %3387 = vmatpush1.msra.mxu0 %v2497
      %3388 = vmatprep.subr.mxu0 %v2502
      %3389 = vmatpush1.msra.mxu0 %v2501
      %3390 = vmatprep.subr.mxu0 %v2506
      %3391 = vmatpush1.msra.mxu0 %v2505
      %3392 = vmatprep.subr.mxu0 %v2510
      %3393 = vmatpush1.msra.mxu0 %v2509
      %3394 = vmatprep.subr.mxu0 0.0
      %3395 = vmatpush1.msra.mxu0 0.0
      %3396 = vmatprep.subr.mxu0 0.0
      %3397 = vmatpush1.msra.mxu0 0.0
      %3398 = vmatprep.subr.mxu0 0.0
      %3399 = vmatpush1.msra.mxu0 0.0
      %3400 = vmatprep.subr.mxu0 0.0
      %3401 = vmatpush1.msra.mxu0 0.0
      %3402 = vmatprep.subr.mxu0 0.0
      %3403 = vmatpush1.msra.mxu0 0.0
      %3404 = vmatprep.subr.mxu0 0.0
      %3405 = vmatpush1.msra.mxu0 0.0
      %3406 = vmatprep.subr.mxu0 0.0
      %3407 = vmatpush1.msra.mxu0 0.0
      %3408 = vmatprep.subr.mxu0 0.0
      %3409 = vmatpush1.msra.mxu0 0.0
      %3410 = vmatprep.subr.mxu0 0.0
      %3411 = vmatpush1.msra.mxu0 0.0
      %3412 = vmatprep.subr.mxu0 0.0
      %3413 = vmatpush1.msra.mxu0 0.0
      %3414 = vmatprep.subr.mxu0 0.0
      %3415 = vmatpush1.msra.mxu0 0.0
      %3416 = vmatprep.subr.mxu0 0.0
      %3417 = vmatpush1.msra.mxu0 0.0
      %3418 = vmatprep.subr.mxu0 0.0
      %3419 = vmatpush1.msra.mxu0 0.0
      %3420 = vmatprep.subr.mxu0 0.0
      %3421 = vmatpush1.msra.mxu0 0.0
      %3422 = vmatprep.subr.mxu0 0.0
      %3423 = vmatpush1.msra.mxu0 0.0
      %3424 = vmatprep.subr.mxu0 0.0
      %3425 = vmatpush1.msra.mxu0 0.0
      %3426 = vmatprep.mubr.f32.mxu0 0.0
      %3427 = vmatmul.mubr.f32.gmra.mrb[0].mxu0 %v3356
      %v3428 = vpop.f32.mrb[0].mxu0
      %v3429 = vadd.f32 0.0, %v3428
      %v3430 = vpop.f32.mrb[0].mxu0
      %v3431 = vadd.f32 0.0, %v3430
      %3432 = vdwg.mxu0
      %3433 = vmatprep.subr.mxu0 %v2452
      %3434 = vmatpush1.msra.mxu0 %v2451
      %3435 = vmatprep.subr.mxu0 %v2456
      %3436 = vmatpush1.msra.mxu0 %v2455
      %3437 = vmatprep.subr.mxu0 %v2460
      %3438 = vmatpush1.msra.mxu0 %v2459
      %3439 = vmatprep.subr.mxu0 %v2464
      %3440 = vmatpush1.msra.mxu0 %v2463
      %3441 = vmatprep.subr.mxu0 %v2468
      %3442 = vmatpush1.msra.mxu0 %v2467
      %3443 = vmatprep.subr.mxu0 %v2472
      %3444 = vmatpush1.msra.mxu0 %v2471
      %3445 = vmatprep.subr.mxu0 %v2476
      %3446 = vmatpush1.msra.mxu0 %v2475
      %3447 = vmatprep.subr.mxu0 %v2480
      %3448 = vmatpush1.msra.mxu0 %v2479
      %3449 = vmatprep.subr.mxu0 %v2484
      %3450 = vmatpush1.msra.mxu0 %v2483
      %3451 = vmatprep.subr.mxu0 %v2488
      %3452 = vmatpush1.msra.mxu0 %v2487
      %3453 = vmatprep.subr.mxu0 %v2492
      %3454 = vmatpush1.msra.mxu0 %v2491
      %3455 = vmatprep.subr.mxu0 %v2496
      %3456 = vmatpush1.msra.mxu0 %v2495
      %3457 = vmatprep.subr.mxu0 %v2500
      %3458 = vmatpush1.msra.mxu0 %v2499
      %3459 = vmatprep.subr.mxu0 %v2504
      %3460 = vmatpush1.msra.mxu0 %v2503
      %3461 = vmatprep.subr.mxu0 %v2508
      %3462 = vmatpush1.msra.mxu0 %v2507
      %3463 = vmatprep.subr.mxu0 %v2512
      %3464 = vmatpush1.msra.mxu0 %v2511
      %3465 = vmatprep.subr.mxu0 0.0
      %3466 = vmatpush1.msra.mxu0 0.0
      %3467 = vmatprep.subr.mxu0 0.0
      %3468 = vmatpush1.msra.mxu0 0.0
      %3469 = vmatprep.subr.mxu0 0.0
      %3470 = vmatpush1.msra.mxu0 0.0
      %3471 = vmatprep.subr.mxu0 0.0
      %3472 = vmatpush1.msra.mxu0 0.0
      %3473 = vmatprep.subr.mxu0 0.0
      %3474 = vmatpush1.msra.mxu0 0.0
      %3475 = vmatprep.subr.mxu0 0.0
      %3476 = vmatpush1.msra.mxu0 0.0
      %3477 = vmatprep.subr.mxu0 0.0
      %3478 = vmatpush1.msra.mxu0 0.0
      %3479 = vmatprep.subr.mxu0 0.0
      %3480 = vmatpush1.msra.mxu0 0.0
      %3481 = vmatprep.subr.mxu0 0.0
      %3482 = vmatpush1.msra.mxu0 0.0
      %3483 = vmatprep.subr.mxu0 0.0
      %3484 = vmatpush1.msra.mxu0 0.0
      %3485 = vmatprep.subr.mxu0 0.0
      %3486 = vmatpush1.msra.mxu0 0.0
      %3487 = vmatprep.subr.mxu0 0.0
      %3488 = vmatpush1.msra.mxu0 0.0
      %3489 = vmatprep.subr.mxu0 0.0
      %3490 = vmatpush1.msra.mxu0 0.0
      %3491 = vmatprep.subr.mxu0 0.0
      %3492 = vmatpush1.msra.mxu0 0.0
      %3493 = vmatprep.subr.mxu0 0.0
      %3494 = vmatpush1.msra.mxu0 0.0
      %3495 = vmatprep.subr.mxu0 0.0
      %3496 = vmatpush1.msra.mxu0 0.0
      %3497 = vmatprep.mubr.f32.mxu0 0.0
      %3498 = vmatmul.mubr.f32.gmra.mrb[0].mxu0 %v3356
      %v3499 = vpop.f32.mrb[0].mxu0
      %v3500 = vadd.f32 0.0, %v3499
      %v3501 = vpop.f32.mrb[0].mxu0
      %v3502 = vadd.f32 0.0, %v3501
      %3503 = vdwg.mxu0
      %v3504 = vadd.f32 %v3358, %v3429
      %v3505 = vadd.f32 %v3359, %v3431
      %v3506 = vadd.f32 %v3360, %v3500
      %v3507 = vadd.f32 %v3361, %v3502
      %v3508 = vmul.f32 %v3504, 0.5
      %v3509 = vtanh.pop %v3508
      %v3510 = vmul.f32 %v3509, 0.5
      %v3511 = vadd.f32 %v3510, 0.5
      %v3512 = vmul.f32 %v3505, 0.5
      %v3513 = vtanh.pop %v3512
      %v3514 = vmul.f32 %v3513, 0.5
      %v3515 = vadd.f32 %v3514, 0.5
      %v3516 = vtanh.pop %v3506
      %v3517 = vmul.f32 %v3507, 0.5
      %v3518 = vtanh.pop %v3517
      %v3519 = vmul.f32 %v3518, 0.5
      %v3520 = vadd.f32 %v3519, 0.5
      %v3521 = vmul.f32 %v3515, %v3354
      %v3522 = vmul.f32 %v3511, %v3516
      %v3523 = vadd.f32 %v3521, %v3522
      %v3524 = vtanh.pop %v3523
      %v3525 = vmul.f32 %v3520, %v3524
      %3526 = vst [vmem:[%s1749] sm:$0xff] %v3525
      %v3527 = vld [vmem:[%s1753] sm:$0xff]
      %v3528 = vld [vmem:[%s1753 + $0x8] sm:$0xff]
      %v3529 = vld [vmem:[%s1753 + $0x10] sm:$0xff]
      %v3530 = vld [vmem:[%s1753 + $0x18] sm:$0xff]
      %3531 = vmatprep.subr.mxu0 %v2450
      %3532 = vmatpush1.msra.mxu0 %v2449
      %3533 = vmatprep.subr.mxu0 %v2454
      %3534 = vmatpush1.msra.mxu0 %v2453
      %3535 = vmatprep.subr.mxu0 %v2458
      %3536 = vmatpush1.msra.mxu0 %v2457
      %3537 = vmatprep.subr.mxu0 %v2462
      %3538 = vmatpush1.msra.mxu0 %v2461
      %3539 = vmatprep.subr.mxu0 %v2466
      %3540 = vmatpush1.msra.mxu0 %v2465
      %3541 = vmatprep.subr.mxu0 %v2470
      %3542 = vmatpush1.msra.mxu0 %v2469
      %3543 = vmatprep.subr.mxu0 %v2474
      %3544 = vmatpush1.msra.mxu0 %v2473
      %3545 = vmatprep.subr.mxu0 %v2478
      %3546 = vmatpush1.msra.mxu0 %v2477
      %3547 = vmatprep.subr.mxu0 %v2482
      %3548 = vmatpush1.msra.mxu0 %v2481
      %3549 = vmatprep.subr.mxu0 %v2486
      %3550 = vmatpush1.msra.mxu0 %v2485
      %3551 = vmatprep.subr.mxu0 %v2490
      %3552 = vmatpush1.msra.mxu0 %v2489
      %3553 = vmatprep.subr.mxu0 %v2494
      %3554 = vmatpush1.msra.mxu0 %v2493
      %3555 = vmatprep.subr.mxu0 %v2498
      %3556 = vmatpush1.msra.mxu0 %v2497
      %3557 = vmatprep.subr.mxu0 %v2502
      %3558 = vmatpush1.msra.mxu0 %v2501
      %3559 = vmatprep.subr.mxu0 %v2506
      %3560 = vmatpush1.msra.mxu0 %v2505
      %3561 = vmatprep.subr.mxu0 %v2510
      %3562 = vmatpush1.msra.mxu0 %v2509
      %3563 = vmatprep.subr.mxu0 0.0
      %3564 = vmatpush1.msra.mxu0 0.0
      %3565 = vmatprep.subr.mxu0 0.0
      %3566 = vmatpush1.msra.mxu0 0.0
      %3567 = vmatprep.subr.mxu0 0.0
      %3568 = vmatpush1.msra.mxu0 0.0
      %3569 = vmatprep.subr.mxu0 0.0
      %3570 = vmatpush1.msra.mxu0 0.0
      %3571 = vmatprep.subr.mxu0 0.0
      %3572 = vmatpush1.msra.mxu0 0.0
      %3573 = vmatprep.subr.mxu0 0.0
      %3574 = vmatpush1.msra.mxu0 0.0
      %3575 = vmatprep.subr.mxu0 0.0
      %3576 = vmatpush1.msra.mxu0 0.0
      %3577 = vmatprep.subr.mxu0 0.0
      %3578 = vmatpush1.msra.mxu0 0.0
      %3579 = vmatprep.subr.mxu0 0.0
      %3580 = vmatpush1.msra.mxu0 0.0
      %3581 = vmatprep.subr.mxu0 0.0
      %3582 = vmatpush1.msra.mxu0 0.0
      %3583 = vmatprep.subr.mxu0 0.0
      %3584 = vmatpush1.msra.mxu0 0.0
      %3585 = vmatprep.subr.mxu0 0.0
      %3586 = vmatpush1.msra.mxu0 0.0
      %3587 = vmatprep.subr.mxu0 0.0
      %3588 = vmatpush1.msra.mxu0 0.0
      %3589 = vmatprep.subr.mxu0 0.0
      %3590 = vmatpush1.msra.mxu0 0.0
      %3591 = vmatprep.subr.mxu0 0.0
      %3592 = vmatpush1.msra.mxu0 0.0
      %3593 = vmatprep.subr.mxu0 0.0
      %3594 = vmatpush1.msra.mxu0 0.0
      %3595 = vmatprep.mubr.f32.mxu0 0.0
      %3596 = vmatmul.mubr.f32.gmra.mrb[0].mxu0 %v3525
      %v3597 = vpop.f32.mrb[0].mxu0
      %v3598 = vadd.f32 0.0, %v3597
      %v3599 = vpop.f32.mrb[0].mxu0
      %v3600 = vadd.f32 0.0, %v3599
      %3601 = vdwg.mxu0
      %3602 = vmatprep.subr.mxu0 %v2452
      %3603 = vmatpush1.msra.mxu0 %v2451
      %3604 = vmatprep.subr.mxu0 %v2456
      %3605 = vmatpush1.msra.mxu0 %v2455
      %3606 = vmatprep.subr.mxu0 %v2460
      %3607 = vmatpush1.msra.mxu0 %v2459
      %3608 = vmatprep.subr.mxu0 %v2464
      %3609 = vmatpush1.msra.mxu0 %v2463
      %3610 = vmatprep.subr.mxu0 %v2468
      %3611 = vmatpush1.msra.mxu0 %v2467
      %3612 = vmatprep.subr.mxu0 %v2472
      %3613 = vmatpush1.msra.mxu0 %v2471
      %3614 = vmatprep.subr.mxu0 %v2476
      %3615 = vmatpush1.msra.mxu0 %v2475
      %3616 = vmatprep.subr.mxu0 %v2480
      %3617 = vmatpush1.msra.mxu0 %v2479
      %3618 = vmatprep.subr.mxu0 %v2484
      %3619 = vmatpush1.msra.mxu0 %v2483
      %3620 = vmatprep.subr.mxu0 %v2488
      %3621 = vmatpush1.msra.mxu0 %v2487
      %3622 = vmatprep.subr.mxu0 %v2492
      %3623 = vmatpush1.msra.mxu0 %v2491
      %3624 = vmatprep.subr.mxu0 %v2496
      %3625 = vmatpush1.msra.mxu0 %v2495
      %3626 = vmatprep.subr.mxu0 %v2500
      %3627 = vmatpush1.msra.mxu0 %v2499
      %3628 = vmatprep.subr.mxu0 %v2504
      %3629 = vmatpush1.msra.mxu0 %v2503
      %3630 = vmatprep.subr.mxu0 %v2508
      %3631 = vmatpush1.msra.mxu0 %v2507
      %3632 = vmatprep.subr.mxu0 %v2512
      %3633 = vmatpush1.msra.mxu0 %v2511
      %3634 = vmatprep.subr.mxu0 0.0
      %3635 = vmatpush1.msra.mxu0 0.0
      %3636 = vmatprep.subr.mxu0 0.0
      %3637 = vmatpush1.msra.mxu0 0.0
      %3638 = vmatprep.subr.mxu0 0.0
      %3639 = vmatpush1.msra.mxu0 0.0
      %3640 = vmatprep.subr.mxu0 0.0
      %3641 = vmatpush1.msra.mxu0 0.0
      %3642 = vmatprep.subr.mxu0 0.0
      %3643 = vmatpush1.msra.mxu0 0.0
      %3644 = vmatprep.subr.mxu0 0.0
      %3645 = vmatpush1.msra.mxu0 0.0
      %3646 = vmatprep.subr.mxu0 0.0
      %3647 = vmatpush1.msra.mxu0 0.0
      %3648 = vmatprep.subr.mxu0 0.0
      %3649 = vmatpush1.msra.mxu0 0.0
      %3650 = vmatprep.subr.mxu0 0.0
      %3651 = vmatpush1.msra.mxu0 0.0
      %3652 = vmatprep.subr.mxu0 0.0
      %3653 = vmatpush1.msra.mxu0 0.0
      %3654 = vmatprep.subr.mxu0 0.0
      %3655 = vmatpush1.msra.mxu0 0.0
      %3656 = vmatprep.subr.mxu0 0.0
      %3657 = vmatpush1.msra.mxu0 0.0
      %3658 = vmatprep.subr.mxu0 0.0
      %3659 = vmatpush1.msra.mxu0 0.0
      %3660 = vmatprep.subr.mxu0 0.0
      %3661 = vmatpush1.msra.mxu0 0.0
      %3662 = vmatprep.subr.mxu0 0.0
      %3663 = vmatpush1.msra.mxu0 0.0
      %3664 = vmatprep.subr.mxu0 0.0
      %3665 = vmatpush1.msra.mxu0 0.0
      %3666 = vmatprep.mubr.f32.mxu0 0.0
      %3667 = vmatmul.mubr.f32.gmra.mrb[0].mxu0 %v3525
      %v3668 = vpop.f32.mrb[0].mxu0
      %v3669 = vadd.f32 0.0, %v3668
      %v3670 = vpop.f32.mrb[0].mxu0
      %v3671 = vadd.f32 0.0, %v3670
      %3672 = vdwg.mxu0
      %v3673 = vadd.f32 %v3527, %v3598
      %v3674 = vadd.f32 %v3528, %v3600
      %v3675 = vadd.f32 %v3529, %v3669
      %v3676 = vadd.f32 %v3530, %v3671
      %v3677 = vmul.f32 %v3673, 0.5
      %v3678 = vtanh.pop %v3677
      %v3679 = vmul.f32 %v3678, 0.5
      %v3680 = vadd.f32 %v3679, 0.5
      %v3681 = vmul.f32 %v3674, 0.5
      %v3682 = vtanh.pop %v3681
      %v3683 = vmul.f32 %v3682, 0.5
      %v3684 = vadd.f32 %v3683, 0.5
      %v3685 = vtanh.pop %v3675
      %v3686 = vmul.f32 %v3676, 0.5
      %v3687 = vtanh.pop %v3686
      %v3688 = vmul.f32 %v3687, 0.5
      %v3689 = vadd.f32 %v3688, 0.5
      %v3690 = vmul.f32 %v3684, %v3523
      %v3691 = vmul.f32 %v3680, %v3685
      %v3692 = vadd.f32 %v3690, %v3691
      %v3693 = vtanh.pop %v3692
      %v3694 = vmul.f32 %v3689, %v3693
      %3695 = vst [vmem:[%s1922] sm:$0xff] %v3694
      %v3696 = vld [vmem:[%s1926] sm:$0xff]
      %v3697 = vld [vmem:[%s1926 + $0x8] sm:$0xff]
      %v3698 = vld [vmem:[%s1926 + $0x10] sm:$0xff]
      %v3699 = vld [vmem:[%s1926 + $0x18] sm:$0xff]
      %3700 = vmatprep.subr.mxu0 %v2450
      %3701 = vmatpush1.msra.mxu0 %v2449
      %3702 = vmatprep.subr.mxu0 %v2454
      %3703 = vmatpush1.msra.mxu0 %v2453
      %3704 = vmatprep.subr.mxu0 %v2458
      %3705 = vmatpush1.msra.mxu0 %v2457
      %3706 = vmatprep.subr.mxu0 %v2462
      %3707 = vmatpush1.msra.mxu0 %v2461
      %3708 = vmatprep.subr.mxu0 %v2466
      %3709 = vmatpush1.msra.mxu0 %v2465
      %3710 = vmatprep.subr.mxu0 %v2470
      %3711 = vmatpush1.msra.mxu0 %v2469
      %3712 = vmatprep.subr.mxu0 %v2474
      %3713 = vmatpush1.msra.mxu0 %v2473
      %3714 = vmatprep.subr.mxu0 %v2478
      %3715 = vmatpush1.msra.mxu0 %v2477
      %3716 = vmatprep.subr.mxu0 %v2482
      %3717 = vmatpush1.msra.mxu0 %v2481
      %3718 = vmatprep.subr.mxu0 %v2486
      %3719 = vmatpush1.msra.mxu0 %v2485
      %3720 = vmatprep.subr.mxu0 %v2490
      %3721 = vmatpush1.msra.mxu0 %v2489
      %3722 = vmatprep.subr.mxu0 %v2494
      %3723 = vmatpush1.msra.mxu0 %v2493
      %3724 = vmatprep.subr.mxu0 %v2498
      %3725 = vmatpush1.msra.mxu0 %v2497
      %3726 = vmatprep.subr.mxu0 %v2502
      %3727 = vmatpush1.msra.mxu0 %v2501
      %3728 = vmatprep.subr.mxu0 %v2506
      %3729 = vmatpush1.msra.mxu0 %v2505
      %3730 = vmatprep.subr.mxu0 %v2510
      %3731 = vmatpush1.msra.mxu0 %v2509
      %3732 = vmatprep.subr.mxu0 0.0
      %3733 = vmatpush1.msra.mxu0 0.0
      %3734 = vmatprep.subr.mxu0 0.0
      %3735 = vmatpush1.msra.mxu0 0.0
      %3736 = vmatprep.subr.mxu0 0.0
      %3737 = vmatpush1.msra.mxu0 0.0
      %3738 = vmatprep.subr.mxu0 0.0
      %3739 = vmatpush1.msra.mxu0 0.0
      %3740 = vmatprep.subr.mxu0 0.0
      %3741 = vmatpush1.msra.mxu0 0.0
      %3742 = vmatprep.subr.mxu0 0.0
      %3743 = vmatpush1.msra.mxu0 0.0
      %3744 = vmatprep.subr.mxu0 0.0
      %3745 = vmatpush1.msra.mxu0 0.0
      %3746 = vmatprep.subr.mxu0 0.0
      %3747 = vmatpush1.msra.mxu0 0.0
      %3748 = vmatprep.subr.mxu0 0.0
      %3749 = vmatpush1.msra.mxu0 0.0
      %3750 = vmatprep.subr.mxu0 0.0
      %3751 = vmatpush1.msra.mxu0 0.0
      %3752 = vmatprep.subr.mxu0 0.0
      %3753 = vmatpush1.msra.mxu0 0.0
      %3754 = vmatprep.subr.mxu0 0.0
      %3755 = vmatpush1.msra.mxu0 0.0
      %3756 = vmatprep.subr.mxu0 0.0
      %3757 = vmatpush1.msra.mxu0 0.0
      %3758 = vmatprep.subr.mxu0 0.0
      %3759 = vmatpush1.msra.mxu0 0.0
      %3760 = vmatprep.subr.mxu0 0.0
      %3761 = vmatpush1.msra.mxu0 0.0
      %3762 = vmatprep.subr.mxu0 0.0
      %3763 = vmatpush1.msra.mxu0 0.0
      %3764 = vmatprep.mubr.f32.mxu0 0.0
      %3765 = vmatmul.mubr.f32.gmra.mrb[0].mxu0 %v3694
      %v3766 = vpop.f32.mrb[0].mxu0
      %v3767 = vadd.f32 0.0, %v3766
      %v3768 = vpop.f32.mrb[0].mxu0
      %v3769 = vadd.f32 0.0, %v3768
      %3770 = vdwg.mxu0
      %3771 = vmatprep.subr.mxu0 %v2452
      %3772 = vmatpush1.msra.mxu0 %v2451
      %3773 = vmatprep.subr.mxu0 %v2456
      %3774 = vmatpush1.msra.mxu0 %v2455
      %3775 = vmatprep.subr.mxu0 %v2460
      %3776 = vmatpush1.msra.mxu0 %v2459
      %3777 = vmatprep.subr.mxu0 %v2464
      %3778 = vmatpush1.msra.mxu0 %v2463
      %3779 = vmatprep.subr.mxu0 %v2468
      %3780 = vmatpush1.msra.mxu0 %v2467
      %3781 = vmatprep.subr.mxu0 %v2472
      %3782 = vmatpush1.msra.mxu0 %v2471
      %3783 = vmatprep.subr.mxu0 %v2476
      %3784 = vmatpush1.msra.mxu0 %v2475
      %3785 = vmatprep.subr.mxu0 %v2480
      %3786 = vmatpush1.msra.mxu0 %v2479
      %3787 = vmatprep.subr.mxu0 %v2484
      %3788 = vmatpush1.msra.mxu0 %v2483
      %3789 = vmatprep.subr.mxu0 %v2488
      %3790 = vmatpush1.msra.mxu0 %v2487
      %3791 = vmatprep.subr.mxu0 %v2492
      %3792 = vmatpush1.msra.mxu0 %v2491
      %3793 = vmatprep.subr.mxu0 %v2496
      %3794 = vmatpush1.msra.mxu0 %v2495
      %3795 = vmatprep.subr.mxu0 %v2500
      %3796 = vmatpush1.msra.mxu0 %v2499
      %3797 = vmatprep.subr.mxu0 %v2504
      %3798 = vmatpush1.msra.mxu0 %v2503
      %3799 = vmatprep.subr.mxu0 %v2508
      %3800 = vmatpush1.msra.mxu0 %v2507
      %3801 = vmatprep.subr.mxu0 %v2512
      %3802 = vmatpush1.msra.mxu0 %v2511
      %3803 = vmatprep.subr.mxu0 0.0
      %3804 = vmatpush1.msra.mxu0 0.0
      %3805 = vmatprep.subr.mxu0 0.0
      %3806 = vmatpush1.msra.mxu0 0.0
      %3807 = vmatprep.subr.mxu0 0.0
      %3808 = vmatpush1.msra.mxu0 0.0
      %3809 = vmatprep.subr.mxu0 0.0
      %3810 = vmatpush1.msra.mxu0 0.0
      %3811 = vmatprep.subr.mxu0 0.0
      %3812 = vmatpush1.msra.mxu0 0.0
      %3813 = vmatprep.subr.mxu0 0.0
      %3814 = vmatpush1.msra.mxu0 0.0
      %3815 = vmatprep.subr.mxu0 0.0
      %3816 = vmatpush1.msra.mxu0 0.0
      %3817 = vmatprep.subr.mxu0 0.0
      %3818 = vmatpush1.msra.mxu0 0.0
      %3819 = vmatprep.subr.mxu0 0.0
      %3820 = vmatpush1.msra.mxu0 0.0
      %3821 = vmatprep.subr.mxu0 0.0
      %3822 = vmatpush1.msra.mxu0 0.0
      %3823 = vmatprep.subr.mxu0 0.0
      %3824 = vmatpush1.msra.mxu0 0.0
      %3825 = vmatprep.subr.mxu0 0.0
      %3826 = vmatpush1.msra.mxu0 0.0
      %3827 = vmatprep.subr.mxu0 0.0
      %3828 = vmatpush1.msra.mxu0 0.0
      %3829 = vmatprep.subr.mxu0 0.0
      %3830 = vmatpush1.msra.mxu0 0.0
      %3831 = vmatprep.subr.mxu0 0.0
      %3832 = vmatpush1.msra.mxu0 0.0
      %3833 = vmatprep.subr.mxu0 0.0
      %3834 = vmatpush1.msra.mxu0 0.0
      %3835 = vmatprep.mubr.f32.mxu0 0.0
      %3836 = vmatmul.mubr.f32.gmra.mrb[0].mxu0 %v3694
      %v3837 = vpop.f32.mrb[0].mxu0
      %v3838 = vadd.f32 0.0, %v3837
      %v3839 = vpop.f32.mrb[0].mxu0
      %v3840 = vadd.f32 0.0, %v3839
      %3841 = vdwg.mxu0
      %v3842 = vadd.f32 %v3696, %v3767
      %v3843 = vadd.f32 %v3697, %v3769
      %v3844 = vadd.f32 %v3698, %v3838
      %v3845 = vadd.f32 %v3699, %v3840
      %v3846 = vmul.f32 %v3842, 0.5
      %v3847 = vtanh.pop %v3846
      %v3848 = vmul.f32 %v3847, 0.5
      %v3849 = vadd.f32 %v3848, 0.5
      %v3850 = vmul.f32 %v3843, 0.5
      %v3851 = vtanh.pop %v3850
      %v3852 = vmul.f32 %v3851, 0.5
      %v3853 = vadd.f32 %v3852, 0.5
      %v3854 = vtanh.pop %v3844
      %v3855 = vmul.f32 %v3845, 0.5
      %v3856 = vtanh.pop %v3855
      %v3857 = vmul.f32 %v3856, 0.5
      %v3858 = vadd.f32 %v3857, 0.5
      %v3859 = vmul.f32 %v3853, %v3692
      %v3860 = vmul.f32 %v3849, %v3854
      %v3861 = vadd.f32 %v3859, %v3860
      %v3862 = vtanh.pop %v3861
      %v3863 = vmul.f32 %v3858, %v3862
      %3864 = vst [vmem:[%s2095] sm:$0xff] %v3863
      %v3865 = vld [vmem:[#allocation3] sm:$0xff]
      %v3866 = vld [vmem:[#allocation3 + $0x8] sm:$0xff]
      %v3867 = vld [vmem:[#allocation3 + $0x10] sm:$0xff]
      %v3868 = vld [vmem:[#allocation3 + $0x18] sm:$0xff]
      %v3869 = vld [vmem:[#allocation3 + $0x20] sm:$0xff]
      %v3870 = vld [vmem:[#allocation3 + $0x28] sm:$0xff]
      %v3871 = vld [vmem:[#allocation3 + $0x30] sm:$0xff]
      %v3872 = vld [vmem:[#allocation3 + $0x38] sm:$0xff]
      %v3873 = vld [vmem:[%s7] sm:$0xff]
      %v3874 = vld [vmem:[%s7 + $0x8] sm:$0xff]
      %v3875 = vld [vmem:[%s7 + $0x10] sm:$0xff]
      %v3876 = vld [vmem:[%s7 + $0x18] sm:$0xff]
      %v3877 = vld [vmem:[%s7 + $0x20] sm:$0xff]
      %v3878 = vld [vmem:[%s7 + $0x28] sm:$0xff]
      %v3879 = vld [vmem:[%s7 + $0x30] sm:$0xff]
      %v3880 = vld [vmem:[%s7 + $0x38] sm:$0xff]
      %v3881 = vld [vmem:[%s7 + $0x40] sm:$0xff]
      %v3882 = vld [vmem:[%s7 + $0x48] sm:$0xff]
      %v3883 = vld [vmem:[%s7 + $0x50] sm:$0xff]
      %v3884 = vld [vmem:[%s7 + $0x58] sm:$0xff]
      %v3885 = vld [vmem:[%s7 + $0x60] sm:$0xff]
      %v3886 = vld [vmem:[%s7 + $0x68] sm:$0xff]
      %v3887 = vld [vmem:[%s7 + $0x70] sm:$0xff]
      %v3888 = vld [vmem:[%s7 + $0x78] sm:$0xff]
      %v3889 = vld [vmem:[%s8] sm:$0x1]
      %v3891 = vlaneseq
      %v3892 = vshrl.u32 %v3891, 7
      %v3893 = vsub.s32 0, %v3892
      %v3894 = vrot.slane %v3889, %v3893
      %3896 = vmatprep.subr.mxu0 0.0
      %3897 = vmatpush1.msra.mxu0 %v3873
      %3898 = vmatprep.subr.mxu0 0.0
      %3899 = vmatpush1.msra.mxu0 %v3874
      %3900 = vmatprep.subr.mxu0 0.0
      %3901 = vmatpush1.msra.mxu0 %v3875
      %3902 = vmatprep.subr.mxu0 0.0
      %3903 = vmatpush1.msra.mxu0 %v3876
      %3904 = vmatprep.subr.mxu0 0.0
      %3905 = vmatpush1.msra.mxu0 %v3877
      %3906 = vmatprep.subr.mxu0 0.0
      %3907 = vmatpush1.msra.mxu0 %v3878
      %3908 = vmatprep.subr.mxu0 0.0
      %3909 = vmatpush1.msra.mxu0 %v3879
      %3910 = vmatprep.subr.mxu0 0.0
      %3911 = vmatpush1.msra.mxu0 %v3880
      %3912 = vmatprep.subr.mxu0 0.0
      %3913 = vmatpush1.msra.mxu0 %v3881
      %3914 = vmatprep.subr.mxu0 0.0
      %3915 = vmatpush1.msra.mxu0 %v3882
      %3916 = vmatprep.subr.mxu0 0.0
      %3917 = vmatpush1.msra.mxu0 %v3883
      %3918 = vmatprep.subr.mxu0 0.0
      %3919 = vmatpush1.msra.mxu0 %v3884
      %3920 = vmatprep.subr.mxu0 0.0
      %3921 = vmatpush1.msra.mxu0 %v3885
      %3922 = vmatprep.subr.mxu0 0.0
      %3923 = vmatpush1.msra.mxu0 %v3886
      %3924 = vmatprep.subr.mxu0 0.0
      %3925 = vmatpush1.msra.mxu0 %v3887
      %3926 = vmatprep.subr.mxu0 0.0
      %3927 = vmatpush1.msra.mxu0 %v3888
      %3928 = vmatprep.subr.mxu0 0.0
      %3929 = vmatpush1.msra.mxu0 0.0
      %3930 = vmatprep.subr.mxu0 0.0
      %3931 = vmatpush1.msra.mxu0 0.0
      %3932 = vmatprep.subr.mxu0 0.0
      %3933 = vmatpush1.msra.mxu0 0.0
      %3934 = vmatprep.subr.mxu0 0.0
      %3935 = vmatpush1.msra.mxu0 0.0
      %3936 = vmatprep.subr.mxu0 0.0
      %3937 = vmatpush1.msra.mxu0 0.0
      %3938 = vmatprep.subr.mxu0 0.0
      %3939 = vmatpush1.msra.mxu0 0.0
      %3940 = vmatprep.subr.mxu0 0.0
      %3941 = vmatpush1.msra.mxu0 0.0
      %3942 = vmatprep.subr.mxu0 0.0
      %3943 = vmatpush1.msra.mxu0 0.0
      %3944 = vmatprep.subr.mxu0 0.0
      %3945 = vmatpush1.msra.mxu0 0.0
      %3946 = vmatprep.subr.mxu0 0.0
      %3947 = vmatpush1.msra.mxu0 0.0
      %3948 = vmatprep.subr.mxu0 0.0
      %3949 = vmatpush1.msra.mxu0 0.0
      %3950 = vmatprep.subr.mxu0 0.0
      %3951 = vmatpush1.msra.mxu0 0.0
      %3952 = vmatprep.subr.mxu0 0.0
      %3953 = vmatpush1.msra.mxu0 0.0
      %3954 = vmatprep.subr.mxu0 0.0
      %3955 = vmatpush1.msra.mxu0 0.0
      %3956 = vmatprep.subr.mxu0 0.0
      %3957 = vmatpush1.msra.mxu0 0.0
      %3958 = vmatprep.subr.mxu0 0.0
      %3959 = vmatpush1.msra.mxu0 0.0
      %3960 = vmatprep.mubr.f32.mxu0 0.0
      %3961 = vmatmul.mubr.f32.gmra.mrb[0].mxu0 %v3865
      %v3962 = vpop.f32.mrb[0].mxu0
      %v3963 = vadd.f32 %v3894, %v3962
      %v3964 = vpop.f32.mrb[0].mxu0
      %3965 = vmatprep.mubr.f32.mxu0 0.0
      %3966 = vmatmul.mubr.f32.gmra.mrb[0].mxu0 %v3866
      %v3967 = vpop.f32.mrb[0].mxu0
      %v3968 = vadd.f32 %v3894, %v3967
      %v3969 = vpop.f32.mrb[0].mxu0
      %3970 = vmatprep.mubr.f32.mxu0 0.0
      %3971 = vmatmul.mubr.f32.gmra.mrb[0].mxu0 %v3867
      %v3972 = vpop.f32.mrb[0].mxu0
      %v3973 = vadd.f32 %v3894, %v3972
      %v3974 = vpop.f32.mrb[0].mxu0
      %3975 = vmatprep.mubr.f32.mxu0 0.0
      %3976 = vmatmul.mubr.f32.gmra.mrb[0].mxu0 %v3868
      %v3977 = vpop.f32.mrb[0].mxu0
      %v3978 = vadd.f32 %v3894, %v3977
      %v3979 = vpop.f32.mrb[0].mxu0
      %3980 = vmatprep.mubr.f32.mxu0 0.0
      %3981 = vmatmul.mubr.f32.gmra.mrb[0].mxu0 %v3869
      %v3982 = vpop.f32.mrb[0].mxu0
      %v3983 = vadd.f32 %v3894, %v3982
      %v3984 = vpop.f32.mrb[0].mxu0
      %3985 = vmatprep.mubr.f32.mxu0 0.0
      %3986 = vmatmul.mubr.f32.gmra.mrb[0].mxu0 %v3870
      %v3987 = vpop.f32.mrb[0].mxu0
      %v3988 = vadd.f32 %v3894, %v3987
      %v3989 = vpop.f32.mrb[0].mxu0
      %3990 = vmatprep.mubr.f32.mxu0 0.0
      %3991 = vmatmul.mubr.f32.gmra.mrb[0].mxu0 %v3871
      %v3992 = vpop.f32.mrb[0].mxu0
      %v3993 = vadd.f32 %v3894, %v3992
      %v3994 = vpop.f32.mrb[0].mxu0
      %3995 = vmatprep.mubr.f32.mxu0 0.0
      %3996 = vmatmul.mubr.f32.gmra.mrb[0].mxu0 %v3872
      %v3997 = vpop.f32.mrb[0].mxu0
      %v3998 = vadd.f32 %v3894, %v3997
      %v3999 = vpop.f32.mrb[0].mxu0
      %4000 = vdwg.mxu0
      %4001 = vst [vmem:[%s332] sm:$0xff] %v3963
      %4002 = vst [vmem:[%s332 + $0x8] sm:$0xff] %v3968
      %4003 = vst [vmem:[%s332 + $0x10] sm:$0xff] %v3973
      %4004 = vst [vmem:[%s332 + $0x18] sm:$0xff] %v3978
      %4005 = vst [vmem:[%s332 + $0x20] sm:$0xff] %v3983
      %4006 = vst [vmem:[%s332 + $0x28] sm:$0xff] %v3988
      %4007 = vst [vmem:[%s332 + $0x30] sm:$0xff] %v3993
      %4008 = vst [vmem:[%s332 + $0x38] sm:$0xff] %v3998
      %p4009 = scmp.lt.s32.totalorder %s20, 1
      %s4010 = scalar_select %p4009, %s20, 1
      %s4011 = smul.addr %s4010, 8
      %s4012 = smul.addr %s4011, 8
      %s4013 = scalar_lea.vmem %s9, %s4012
      // Predicated region
      $region57: #{lstm_model_forward.1} parent=55 // pred_check
        %p4014 = pneg %p232
      $region58: #{lstm_model_forward.1} parent=55 // pred_check_branch
        %4016 = sbr.rel (%p4014) target = $region60
      $region59: #{lstm_model_forward.1} parent=55 // pred_region
        _
      $region60: #{lstm_model_forward.1} parent=55 // pred_fallthru
        _
    $region56: #{lstm_model_forward.1} parent=5 // pred_fallthru
      _
    %p4017 = scmp.le.s32.totalorder 2, %s15
    // Predicated region
    $region61: #{lstm_model_forward.1} parent=5 // pred_check
      %p4018 = pneg %p4017
    $region62: #{lstm_model_forward.1} parent=5 // pred_check_branch
      %4020 = sbr.rel (%p4018) target = $region64
    $region63: #{lstm_model_forward.1} parent=5 // pred_region
      %s4021 = ssub.s32 %s15, 2
      // Predicated region
      $region65: #{lstm_model_forward.1} parent=63 // pred_check
        %p4022 = pneg %p238
      $region66: #{lstm_model_forward.1} parent=63 // pred_check_branch
        %4024 = sbr.rel (%p4022) target = $region68
      $region67: #{lstm_model_forward.1} parent=63 // pred_region
        %p4025 = scmp.lt.s32.totalorder %s21, 1
        %s4026 = scalar_select %p4025, %s21, 1
        %s4027 = smul.addr %s4026, 8
        %s4028 = smul.addr %s4027, 8
        %s4029 = scalar_lea.vmem %s9, %s4028
      $region68: #{lstm_model_forward.1} parent=63 // pred_fallthru
        _
    $region64: #{lstm_model_forward.1} parent=5 // pred_fallthru
      _
  $region6: #{lstm_model_forward.1} parent=0 // loop_footer
    %s19 = sadd.s32 1, %s15
  $region7: #{lstm_model_forward.1} parent=0 // loop_footer_branch
    %14 = sbr.rel target = $region3
  $region8: #{lstm_model_forward.1} parent=0 // loop_exit
    _

</llo_original>
